<compile_context>
chip_gen: v5e
topology: v5e:2x2
jax: 0.10.0
libtpu: 0.0.40
codegen_flags: <defaults>
</compile_context>

<pallas_src>
import functools

import jax
import jax.numpy as jnp
from jax import lax
from jax.experimental import pallas as pl
from jax.experimental.pallas import tpu as pltpu


# ---------------------------------------------------------------------------
# The fused kernel: one grid step == TB samples, everything stays on-chip.
# Rows of every activation are ordered (spatial, batch) with batch minor.
# ---------------------------------------------------------------------------
def _net0_kernel(x_ref, w1b_ref, b1_ref, w2b_ref, b2_ref,
                 wf1_ref, bf1_ref, wf2_ref, bf2_ref, o_ref, *, tb):
    f32 = jnp.float32

    # ---- conv1 (5x5, 1->10) + 2x2 maxpool + relu ----------------------------
    # Height im2col = 5 accumulating matmuls over row-shifted slabs of x;
    # width im2col + width-pool are folded into the banded weight w1b.
    y1 = jnp.dot(x_ref[0, 0:24 * tb, :], w1b_ref[0, :, :],
                 preferred_element_type=f32)                       # (24*tb, 240)
    for kh in range(1, 5):
        y1 = y1 + jnp.dot(x_ref[0, kh * tb:(kh + 24) * tb, :], w1b_ref[kh, :, :],
                          preferred_element_type=f32)
    y1 = jnp.maximum(y1[:, :120], y1[:, 120:])                     # width pool  -> (24*tb, 120)
    y1 = y1.reshape(12, 2 * tb, 120)                               # free major-dim split
    y1 = jnp.maximum(y1[:, :tb, :], y1[:, tb:, :])                 # height pool -> (12, tb, 120)
    h1 = jnp.maximum(y1.reshape(12 * tb, 120) + b1_ref[...], 0.0)  # rows=(h,b), cols=(w,c)

    # ---- conv2 (5x5, 10->20) + 2x2 maxpool + relu ----------------------------
    y2 = jnp.dot(h1[0:8 * tb, :], w2b_ref[0, :, :],
                 preferred_element_type=f32)                       # (8*tb, 160)
    for kh in range(1, 5):
        y2 = y2 + jnp.dot(h1[kh * tb:(kh + 8) * tb, :], w2b_ref[kh, :, :],
                          preferred_element_type=f32)
    y2 = jnp.maximum(y2[:, :80], y2[:, 80:])                       # width pool  -> (8*tb, 80)
    y2 = y2.reshape(4, 2 * tb, 80)
    y2 = jnp.maximum(y2[:, :tb, :], y2[:, tb:, :])                 # height pool -> (4, tb, 80)
    h2 = jnp.maximum(y2.reshape(4 * tb, 80) + b2_ref[...], 0.0)    # rows=(h,b), cols=(w,c)

    # ---- fc1 (320->50) + relu: accumulate over the 4 feature-map rows --------
    # (fc1 weight rows pre-permuted to (h, w, c) order in prepare_params)
    z1 = jnp.dot(h2[0:tb, :], wf1_ref[0, :, :], preferred_element_type=f32)
    for h in range(1, 4):
        z1 = z1 + jnp.dot(h2[h * tb:(h + 1) * tb, :], wf1_ref[h, :, :],
                          preferred_element_type=f32)              # (tb, 50)
    z1 = jnp.maximum(z1 + bf1_ref[...], 0.0)

    # ---- fc2 (50->10) + log_softmax ------------------------------------------
    z2 = jnp.dot(z1, wf2_ref[...], preferred_element_type=f32) + bf2_ref[...]   # (tb, 10)
    m = jnp.max(z2, axis=-1, keepdims=True)
    lse = jnp.log(jnp.sum(jnp.exp(z2 - m), axis=-1, keepdims=True)) + m
    o_ref[...] = z2 - lse


# ---------------------------------------------------------------------------
# One-time (hoisted) parameter preparation.
# ---------------------------------------------------------------------------
def _banded_pooled_conv_weight(w, in_w):
    """Fold the width-direction im2col + width half of the 2x2 pool into the weight.

    w: (Cout, Cin, KH, KW) torch-layout conv weight.
    Returns (KH, in_w*Cin, out_w*Cout): slab kh has rows = w_pos*Cin + cin and
    output columns permuted to [all even j | all odd j] (co minor), so the 2x2
    pool's width-max becomes max(left_half, right_half).
    """
    cout, cin, KH, KW = w.shape
    out_w = in_w - KW + 1
    wt = jnp.transpose(w, (2, 3, 1, 0))                        # (KH, KW, Cin, Cout)
    big = jnp.zeros((KH, in_w, cin, out_w, cout), w.dtype)
    for j in range(out_w):
        big = big.at[:, j:j + KW, :, j, :].set(wt)
    big = big.reshape(KH, in_w * cin, out_w, cout)
    half = (out_w // 2) * cout
    return jnp.concatenate(
        [big[:, :, 0::2, :].reshape(KH, in_w * cin, half),
         big[:, :, 1::2, :].reshape(KH, in_w * cin, half)], axis=-1)


def prepare_params(params):
    (w_c1, b_c1, w_c2, b_c2, w_f1, b_f1, w_f2, b_f2) = params
    w1b = _banded_pooled_conv_weight(w_c1, in_w=28)            # (5, 28, 240)
    w2b = _banded_pooled_conv_weight(w_c2, in_w=12)            # (5, 120, 160)
    b1 = jnp.tile(b_c1, 12).reshape(1, 120)                    # per (w', co) column
    b2 = jnp.tile(b_c2, 4).reshape(1, 80)
    # fc1: torch flatten order is (c, h, w); our row blocks are h-major with
    # columns (w, c) -> permute weight to (h, (w, c), out).
    wf1 = jnp.transpose(w_f1.reshape(50, 20, 4, 4), (2, 3, 1, 0)).reshape(4, 80, 50)
    wf2 = w_f2.T                                               # (50, 10)
    bf1 = b_f1.reshape(1, 50)
    bf2 = b_f2.reshape(1, 10)
    return (w1b, b1, w2b, b2, wf1, bf1, wf2, bf2)


# ---------------------------------------------------------------------------
# Forward pass: one pallas_call, TB samples per grid step.
# ---------------------------------------------------------------------------
def net0_forward(x_nchw, prepped, *, block_batch=16):
    (w1b, b1, w2b, b2, wf1, bf1, wf2, bf2) = prepped
    n = x_nchw.shape[0]
    tb = block_batch
    assert tb % 8 == 0, "block_batch must be a multiple of 8 (sublane tile)"
    n_pad = ((n + tb - 1) // tb) * tb
    x = x_nchw.reshape(n, 28, 28).astype(jnp.float32)          # Cin == 1: free reshape
    if n_pad != n:
        x = jnp.pad(x, ((0, n_pad - n), (0, 0), (0, 0)))
    nb = n_pad // tb
    # One contiguous (28*tb, 28) slab per grid step, rows ordered (h, batch) so
    # every in-kernel slice lands on a sublane-aligned offset.
    x_t = (x.reshape(nb, tb, 28, 28)
            .transpose(0, 2, 1, 3)
            .reshape(nb, 28 * tb, 28))

    def const(a):
        nd = a.ndim
        return pl.BlockSpec(a.shape, lambda b: (0,) * nd)

    out = pl.pallas_call(
        functools.partial(_net0_kernel, tb=tb),
        grid=(nb,),
        out_shape=jax.ShapeDtypeStruct((n_pad, 10), jnp.float32),
        in_specs=[
            pl.BlockSpec((1, 28 * tb, 28), lambda b: (b, 0, 0)),   # per-step batch slab
            const(w1b), const(b1), const(w2b), const(b2),
            const(wf1), const(bf1), const(wf2), const(bf2),
        ],
        out_specs=pl.BlockSpec((tb, 10), lambda b: (b, 0)),
        compiler_params=pltpu.CompilerParams(
            dimension_semantics=("parallel",)),                 # v7x: 2 TCs split the grid
    )(x_t, w1b, b1, w2b, b2, wf1, bf1, wf2, bf2)
    return out[:n]


# ---------------------------------------------------------------------------
# Pure-JAX reference (numerical sanity check against the original semantics).
# ---------------------------------------------------------------------------
def _reference(x_nchw, params):
    (w_c1, b_c1, w_c2, b_c2, w_f1, b_f1, w_f2, b_f2) = params
    dn = ("NCHW", "OIHW", "NCHW")
    hi = lax.Precision.HIGHEST
    y = lax.conv_general_dilated(x_nchw, w_c1, (1, 1), "VALID",
                                 dimension_numbers=dn, precision=hi)
    y = y + b_c1.reshape(1, -1, 1, 1)
    y = lax.reduce_window(y, -jnp.inf, lax.max, (1, 1, 2, 2), (1, 1, 2, 2), "VALID")
    y = jnp.maximum(y, 0.0)
    y = lax.conv_general_dilated(y, w_c2, (1, 1), "VALID",
                                 dimension_numbers=dn, precision=hi)
    y = y + b_c2.reshape(1, -1, 1, 1)
    y = lax.reduce_window(y, -jnp.inf, lax.max, (1, 1, 2, 2), (1, 1, 2, 2), "VALID")
    y = jnp.maximum(y, 0.0)
    y = y.reshape(y.shape[0], -1)
    y = jnp.maximum(jnp.dot(y, w_f1.T, precision=hi) + b_f1, 0.0)
    y = jnp.dot(y, w_f2.T, precision=hi) + b_f2
    return jax.nn.log_softmax(y, axis=-1)


def _init_params(key):
    # Deterministic, PyTorch-default-style uniform(+-1/sqrt(fan_in)) init.
    def uinit(k, shape, fan_in):
        bound = float(fan_in) ** -0.5
        return jax.random.uniform(k, shape, jnp.float32, -bound, bound)

    ks = jax.random.split(key, 8)
    return (
        uinit(ks[0], (10, 1, 5, 5), 25), uinit(ks[1], (10,), 25),
        uinit(ks[2], (20, 10, 5, 5), 250), uinit(ks[3], (20,), 250),
        uinit(ks[4], (50, 320), 320), uinit(ks[5], (50,), 320),
        uinit(ks[6], (10, 50), 50), uinit(ks[7], (10,), 50),
    )


if __name__ == "__main__":
    batch = 32  # spatial size 28x28 is forced by fc1's 320 = 20*4*4
    kx, kp = jax.random.split(jax.random.PRNGKey(0))
    x = jax.random.normal(kx, (batch, 1, 28, 28), jnp.float32)
    params = _init_params(kp)
    prepped = prepare_params(params)          # hoisted one-time constant prep

    fwd = jax.jit(functools.partial(net0_forward, block_batch=16))  # grid=(2,)
    out = jax.block_until_ready(fwd(x, prepped))

    ref = _reference(x, params)
    assert out.shape == (batch, 10)
    err = float(jnp.max(jnp.abs(out - ref)))
    assert bool(jnp.allclose(out, ref, atol=2e-3, rtol=2e-3)), (
        "max abs err = %g" % err)
    print("KERNEL_OK")
</pallas_src>

<mosaic_0001>
module attributes {stable_mosaic.version = 11 : i64} {
  func.func @_net0_kernel(%arg0: i32, %arg1: memref<1x448x28xf32, #tpu.memory_space<vmem>>, %arg2: memref<5x28x240xf32, #tpu.memory_space<vmem>>, %arg3: memref<1x120xf32, #tpu.memory_space<vmem>>, %arg4: memref<5x120x160xf32, #tpu.memory_space<vmem>>, %arg5: memref<1x80xf32, #tpu.memory_space<vmem>>, %arg6: memref<4x80x50xf32, #tpu.memory_space<vmem>>, %arg7: memref<1x50xf32, #tpu.memory_space<vmem>>, %arg8: memref<50x10xf32, #tpu.memory_space<vmem>>, %arg9: memref<1x10xf32, #tpu.memory_space<vmem>>, %arg10: memref<16x10xf32, #tpu.memory_space<vmem>>) attributes {dimension_semantics = [#tpu.dimension_semantics<parallel>], iteration_bounds = array<i64: 2>, scalar_prefetch = 0 : i64, scratch_operands = 0 : i64, tpu.core_type = #tpu.core_type<tc>, window_params = [{transform_indices = @transform_0, window_bounds = array<i64: 1, 448, 28>}, {pipeline_mode = #tpu.pipeline_mode<synchronous>, transform_indices = @transform_1, window_bounds = array<i64: 5, 28, 240>}, {pipeline_mode = #tpu.pipeline_mode<synchronous>, transform_indices = @transform_2, window_bounds = array<i64: 1, 120>}, {pipeline_mode = #tpu.pipeline_mode<synchronous>, transform_indices = @transform_3, window_bounds = array<i64: 5, 120, 160>}, {pipeline_mode = #tpu.pipeline_mode<synchronous>, transform_indices = @transform_4, window_bounds = array<i64: 1, 80>}, {pipeline_mode = #tpu.pipeline_mode<synchronous>, transform_indices = @transform_5, window_bounds = array<i64: 4, 80, 50>}, {pipeline_mode = #tpu.pipeline_mode<synchronous>, transform_indices = @transform_6, window_bounds = array<i64: 1, 50>}, {pipeline_mode = #tpu.pipeline_mode<synchronous>, transform_indices = @transform_7, window_bounds = array<i64: 50, 10>}, {pipeline_mode = #tpu.pipeline_mode<synchronous>, transform_indices = @transform_8, window_bounds = array<i64: 1, 10>}, {transform_indices = @transform_9, window_bounds = array<i64: 16, 10>}]} {
    %c0 = arith.constant 0 : index
    %c0_0 = arith.constant 0 : index
    %c0_1 = arith.constant 0 : index
    %0 = vector.load %arg1[%c0, %c0_0, %c0_1] : memref<1x448x28xf32, #tpu.memory_space<vmem>>, vector<1x384x28xf32>
    %1 = vector.shape_cast %0 : vector<1x384x28xf32> to vector<384x28xf32>
    %c0_2 = arith.constant 0 : index
    %c0_3 = arith.constant 0 : index
    %c0_4 = arith.constant 0 : index
    %2 = vector.load %arg2[%c0_2, %c0_3, %c0_4] : memref<5x28x240xf32, #tpu.memory_space<vmem>>, vector<1x28x240xf32>
    %3 = vector.shape_cast %2 : vector<1x28x240xf32> to vector<28x240xf32>
    %cst = arith.constant dense<0.000000e+00> : vector<384x240xf32>
    %4 = tpu.matmul %1, %3, %cst {dimension_numbers = #tpu.dot_dimension_numbers<[1], [0], [0], [1], [0, 0, 1, 1], [], []>} : vector<384x28xf32>, vector<28x240xf32>, vector<384x240xf32> -> vector<384x240xf32>
    %c0_5 = arith.constant 0 : index
    %c16 = arith.constant 16 : index
    %c0_6 = arith.constant 0 : index
    %5 = vector.load %arg1[%c0_5, %c16, %c0_6] : memref<1x448x28xf32, #tpu.memory_space<vmem>>, vector<1x384x28xf32>
    %6 = vector.shape_cast %5 : vector<1x384x28xf32> to vector<384x28xf32>
    %c1 = arith.constant 1 : index
    %c0_7 = arith.constant 0 : index
    %c0_8 = arith.constant 0 : index
    %7 = vector.load %arg2[%c1, %c0_7, %c0_8] : memref<5x28x240xf32, #tpu.memory_space<vmem>>, vector<1x28x240xf32>
    %8 = vector.shape_cast %7 : vector<1x28x240xf32> to vector<28x240xf32>
    %cst_9 = arith.constant dense<0.000000e+00> : vector<384x240xf32>
    %9 = tpu.matmul %6, %8, %cst_9 {dimension_numbers = #tpu.dot_dimension_numbers<[1], [0], [0], [1], [0, 0, 1, 1], [], []>} : vector<384x28xf32>, vector<28x240xf32>, vector<384x240xf32> -> vector<384x240xf32>
    %10 = arith.addf %4, %9 : vector<384x240xf32>
    %c0_10 = arith.constant 0 : index
    %c32 = arith.constant 32 : index
    %c0_11 = arith.constant 0 : index
    %11 = vector.load %arg1[%c0_10, %c32, %c0_11] : memref<1x448x28xf32, #tpu.memory_space<vmem>>, vector<1x384x28xf32>
    %12 = vector.shape_cast %11 : vector<1x384x28xf32> to vector<384x28xf32>
    %c2 = arith.constant 2 : index
    %c0_12 = arith.constant 0 : index
    %c0_13 = arith.constant 0 : index
    %13 = vector.load %arg2[%c2, %c0_12, %c0_13] : memref<5x28x240xf32, #tpu.memory_space<vmem>>, vector<1x28x240xf32>
    %14 = vector.shape_cast %13 : vector<1x28x240xf32> to vector<28x240xf32>
    %cst_14 = arith.constant dense<0.000000e+00> : vector<384x240xf32>
    %15 = tpu.matmul %12, %14, %cst_14 {dimension_numbers = #tpu.dot_dimension_numbers<[1], [0], [0], [1], [0, 0, 1, 1], [], []>} : vector<384x28xf32>, vector<28x240xf32>, vector<384x240xf32> -> vector<384x240xf32>
    %16 = arith.addf %10, %15 : vector<384x240xf32>
    %c0_15 = arith.constant 0 : index
    %c48 = arith.constant 48 : index
    %c0_16 = arith.constant 0 : index
    %17 = vector.load %arg1[%c0_15, %c48, %c0_16] : memref<1x448x28xf32, #tpu.memory_space<vmem>>, vector<1x384x28xf32>
    %18 = vector.shape_cast %17 : vector<1x384x28xf32> to vector<384x28xf32>
    %c3 = arith.constant 3 : index
    %c0_17 = arith.constant 0 : index
    %c0_18 = arith.constant 0 : index
    %19 = vector.load %arg2[%c3, %c0_17, %c0_18] : memref<5x28x240xf32, #tpu.memory_space<vmem>>, vector<1x28x240xf32>
    %20 = vector.shape_cast %19 : vector<1x28x240xf32> to vector<28x240xf32>
    %cst_19 = arith.constant dense<0.000000e+00> : vector<384x240xf32>
    %21 = tpu.matmul %18, %20, %cst_19 {dimension_numbers = #tpu.dot_dimension_numbers<[1], [0], [0], [1], [0, 0, 1, 1], [], []>} : vector<384x28xf32>, vector<28x240xf32>, vector<384x240xf32> -> vector<384x240xf32>
    %22 = arith.addf %16, %21 : vector<384x240xf32>
    %c0_20 = arith.constant 0 : index
    %c64 = arith.constant 64 : index
    %c0_21 = arith.constant 0 : index
    %23 = vector.load %arg1[%c0_20, %c64, %c0_21] : memref<1x448x28xf32, #tpu.memory_space<vmem>>, vector<1x384x28xf32>
    %24 = vector.shape_cast %23 : vector<1x384x28xf32> to vector<384x28xf32>
    %c4 = arith.constant 4 : index
    %c0_22 = arith.constant 0 : index
    %c0_23 = arith.constant 0 : index
    %25 = vector.load %arg2[%c4, %c0_22, %c0_23] : memref<5x28x240xf32, #tpu.memory_space<vmem>>, vector<1x28x240xf32>
    %26 = vector.shape_cast %25 : vector<1x28x240xf32> to vector<28x240xf32>
    %cst_24 = arith.constant dense<0.000000e+00> : vector<384x240xf32>
    %27 = tpu.matmul %24, %26, %cst_24 {dimension_numbers = #tpu.dot_dimension_numbers<[1], [0], [0], [1], [0, 0, 1, 1], [], []>} : vector<384x28xf32>, vector<28x240xf32>, vector<384x240xf32> -> vector<384x240xf32>
    %28 = arith.addf %22, %27 : vector<384x240xf32>
    %29 = vector.extract_strided_slice %28 {offsets = [0, 0], sizes = [384, 120], strides = [1, 1]} : vector<384x240xf32> to vector<384x120xf32>
    %30 = vector.extract_strided_slice %28 {offsets = [0, 120], sizes = [384, 120], strides = [1, 1]} : vector<384x240xf32> to vector<384x120xf32>
    %31 = arith.maximumf %29, %30 : vector<384x120xf32>
    %32 = vector.shape_cast %31 : vector<384x120xf32> to vector<12x32x120xf32>
    %33 = vector.extract_strided_slice %32 {offsets = [0, 0, 0], sizes = [12, 16, 120], strides = [1, 1, 1]} : vector<12x32x120xf32> to vector<12x16x120xf32>
    %34 = vector.extract_strided_slice %32 {offsets = [0, 16, 0], sizes = [12, 16, 120], strides = [1, 1, 1]} : vector<12x32x120xf32> to vector<12x16x120xf32>
    %35 = arith.maximumf %33, %34 : vector<12x16x120xf32>
    %36 = vector.shape_cast %35 : vector<12x16x120xf32> to vector<192x120xf32>
    %c0_25 = arith.constant 0 : index
    %c0_26 = arith.constant 0 : index
    %37 = vector.load %arg3[%c0_25, %c0_26] : memref<1x120xf32, #tpu.memory_space<vmem>>, vector<1x120xf32>
    %38 = vector.broadcast %37 : vector<1x120xf32> to vector<192x120xf32>
    %39 = arith.addf %36, %38 : vector<192x120xf32>
    %cst_27 = arith.constant 0.000000e+00 : f32
    %40 = vector.broadcast %cst_27 : f32 to vector<192x120xf32>
    %41 = arith.maximumf %39, %40 : vector<192x120xf32>
    %42 = vector.extract_strided_slice %41 {offsets = [0, 0], sizes = [128, 120], strides = [1, 1]} : vector<192x120xf32> to vector<128x120xf32>
    %c0_28 = arith.constant 0 : index
    %c0_29 = arith.constant 0 : index
    %c0_30 = arith.constant 0 : index
    %43 = vector.load %arg4[%c0_28, %c0_29, %c0_30] : memref<5x120x160xf32, #tpu.memory_space<vmem>>, vector<1x120x160xf32>
    %44 = vector.shape_cast %43 : vector<1x120x160xf32> to vector<120x160xf32>
    %cst_31 = arith.constant dense<0.000000e+00> : vector<128x160xf32>
    %45 = tpu.matmul %42, %44, %cst_31 {dimension_numbers = #tpu.dot_dimension_numbers<[1], [0], [0], [1], [0, 0, 1, 1], [], []>} : vector<128x120xf32>, vector<120x160xf32>, vector<128x160xf32> -> vector<128x160xf32>
    %46 = vector.extract_strided_slice %41 {offsets = [16, 0], sizes = [128, 120], strides = [1, 1]} : vector<192x120xf32> to vector<128x120xf32>
    %c1_32 = arith.constant 1 : index
    %c0_33 = arith.constant 0 : index
    %c0_34 = arith.constant 0 : index
    %47 = vector.load %arg4[%c1_32, %c0_33, %c0_34] : memref<5x120x160xf32, #tpu.memory_space<vmem>>, vector<1x120x160xf32>
    %48 = vector.shape_cast %47 : vector<1x120x160xf32> to vector<120x160xf32>
    %cst_35 = arith.constant dense<0.000000e+00> : vector<128x160xf32>
    %49 = tpu.matmul %46, %48, %cst_35 {dimension_numbers = #tpu.dot_dimension_numbers<[1], [0], [0], [1], [0, 0, 1, 1], [], []>} : vector<128x120xf32>, vector<120x160xf32>, vector<128x160xf32> -> vector<128x160xf32>
    %50 = arith.addf %45, %49 : vector<128x160xf32>
    %51 = vector.extract_strided_slice %41 {offsets = [32, 0], sizes = [128, 120], strides = [1, 1]} : vector<192x120xf32> to vector<128x120xf32>
    %c2_36 = arith.constant 2 : index
    %c0_37 = arith.constant 0 : index
    %c0_38 = arith.constant 0 : index
    %52 = vector.load %arg4[%c2_36, %c0_37, %c0_38] : memref<5x120x160xf32, #tpu.memory_space<vmem>>, vector<1x120x160xf32>
    %53 = vector.shape_cast %52 : vector<1x120x160xf32> to vector<120x160xf32>
    %cst_39 = arith.constant dense<0.000000e+00> : vector<128x160xf32>
    %54 = tpu.matmul %51, %53, %cst_39 {dimension_numbers = #tpu.dot_dimension_numbers<[1], [0], [0], [1], [0, 0, 1, 1], [], []>} : vector<128x120xf32>, vector<120x160xf32>, vector<128x160xf32> -> vector<128x160xf32>
    %55 = arith.addf %50, %54 : vector<128x160xf32>
    %56 = vector.extract_strided_slice %41 {offsets = [48, 0], sizes = [128, 120], strides = [1, 1]} : vector<192x120xf32> to vector<128x120xf32>
    %c3_40 = arith.constant 3 : index
    %c0_41 = arith.constant 0 : index
    %c0_42 = arith.constant 0 : index
    %57 = vector.load %arg4[%c3_40, %c0_41, %c0_42] : memref<5x120x160xf32, #tpu.memory_space<vmem>>, vector<1x120x160xf32>
    %58 = vector.shape_cast %57 : vector<1x120x160xf32> to vector<120x160xf32>
    %cst_43 = arith.constant dense<0.000000e+00> : vector<128x160xf32>
    %59 = tpu.matmul %56, %58, %cst_43 {dimension_numbers = #tpu.dot_dimension_numbers<[1], [0], [0], [1], [0, 0, 1, 1], [], []>} : vector<128x120xf32>, vector<120x160xf32>, vector<128x160xf32> -> vector<128x160xf32>
    %60 = arith.addf %55, %59 : vector<128x160xf32>
    %61 = vector.extract_strided_slice %41 {offsets = [64, 0], sizes = [128, 120], strides = [1, 1]} : vector<192x120xf32> to vector<128x120xf32>
    %c4_44 = arith.constant 4 : index
    %c0_45 = arith.constant 0 : index
    %c0_46 = arith.constant 0 : index
    %62 = vector.load %arg4[%c4_44, %c0_45, %c0_46] : memref<5x120x160xf32, #tpu.memory_space<vmem>>, vector<1x120x160xf32>
    %63 = vector.shape_cast %62 : vector<1x120x160xf32> to vector<120x160xf32>
    %cst_47 = arith.constant dense<0.000000e+00> : vector<128x160xf32>
    %64 = tpu.matmul %61, %63, %cst_47 {dimension_numbers = #tpu.dot_dimension_numbers<[1], [0], [0], [1], [0, 0, 1, 1], [], []>} : vector<128x120xf32>, vector<120x160xf32>, vector<128x160xf32> -> vector<128x160xf32>
    %65 = arith.addf %60, %64 : vector<128x160xf32>
    %66 = vector.extract_strided_slice %65 {offsets = [0, 0], sizes = [128, 80], strides = [1, 1]} : vector<128x160xf32> to vector<128x80xf32>
    %67 = vector.extract_strided_slice %65 {offsets = [0, 80], sizes = [128, 80], strides = [1, 1]} : vector<128x160xf32> to vector<128x80xf32>
    %68 = arith.maximumf %66, %67 : vector<128x80xf32>
    %69 = vector.shape_cast %68 : vector<128x80xf32> to vector<4x32x80xf32>
    %70 = vector.extract_strided_slice %69 {offsets = [0, 0, 0], sizes = [4, 16, 80], strides = [1, 1, 1]} : vector<4x32x80xf32> to vector<4x16x80xf32>
    %71 = vector.extract_strided_slice %69 {offsets = [0, 16, 0], sizes = [4, 16, 80], strides = [1, 1, 1]} : vector<4x32x80xf32> to vector<4x16x80xf32>
    %72 = arith.maximumf %70, %71 : vector<4x16x80xf32>
    %73 = vector.shape_cast %72 : vector<4x16x80xf32> to vector<64x80xf32>
    %c0_48 = arith.constant 0 : index
    %c0_49 = arith.constant 0 : index
    %74 = vector.load %arg5[%c0_48, %c0_49] : memref<1x80xf32, #tpu.memory_space<vmem>>, vector<1x80xf32>
    %75 = vector.broadcast %74 : vector<1x80xf32> to vector<64x80xf32>
    %76 = arith.addf %73, %75 : vector<64x80xf32>
    %cst_50 = arith.constant 0.000000e+00 : f32
    %77 = vector.broadcast %cst_50 : f32 to vector<64x80xf32>
    %78 = arith.maximumf %76, %77 : vector<64x80xf32>
    %79 = vector.extract_strided_slice %78 {offsets = [0, 0], sizes = [16, 80], strides = [1, 1]} : vector<64x80xf32> to vector<16x80xf32>
    %c0_51 = arith.constant 0 : index
    %c0_52 = arith.constant 0 : index
    %c0_53 = arith.constant 0 : index
    %80 = vector.load %arg6[%c0_51, %c0_52, %c0_53] : memref<4x80x50xf32, #tpu.memory_space<vmem>>, vector<1x80x50xf32>
    %81 = vector.shape_cast %80 : vector<1x80x50xf32> to vector<80x50xf32>
    %cst_54 = arith.constant dense<0.000000e+00> : vector<16x50xf32>
    %82 = tpu.matmul %79, %81, %cst_54 {dimension_numbers = #tpu.dot_dimension_numbers<[1], [0], [0], [1], [0, 0, 1, 1], [], []>} : vector<16x80xf32>, vector<80x50xf32>, vector<16x50xf32> -> vector<16x50xf32>
    %83 = vector.extract_strided_slice %78 {offsets = [16, 0], sizes = [16, 80], strides = [1, 1]} : vector<64x80xf32> to vector<16x80xf32>
    %c1_55 = arith.constant 1 : index
    %c0_56 = arith.constant 0 : index
    %c0_57 = arith.constant 0 : index
    %84 = vector.load %arg6[%c1_55, %c0_56, %c0_57] : memref<4x80x50xf32, #tpu.memory_space<vmem>>, vector<1x80x50xf32>
    %85 = vector.shape_cast %84 : vector<1x80x50xf32> to vector<80x50xf32>
    %cst_58 = arith.constant dense<0.000000e+00> : vector<16x50xf32>
    %86 = tpu.matmul %83, %85, %cst_58 {dimension_numbers = #tpu.dot_dimension_numbers<[1], [0], [0], [1], [0, 0, 1, 1], [], []>} : vector<16x80xf32>, vector<80x50xf32>, vector<16x50xf32> -> vector<16x50xf32>
    %87 = arith.addf %82, %86 : vector<16x50xf32>
    %88 = vector.extract_strided_slice %78 {offsets = [32, 0], sizes = [16, 80], strides = [1, 1]} : vector<64x80xf32> to vector<16x80xf32>
    %c2_59 = arith.constant 2 : index
    %c0_60 = arith.constant 0 : index
    %c0_61 = arith.constant 0 : index
    %89 = vector.load %arg6[%c2_59, %c0_60, %c0_61] : memref<4x80x50xf32, #tpu.memory_space<vmem>>, vector<1x80x50xf32>
    %90 = vector.shape_cast %89 : vector<1x80x50xf32> to vector<80x50xf32>
    %cst_62 = arith.constant dense<0.000000e+00> : vector<16x50xf32>
    %91 = tpu.matmul %88, %90, %cst_62 {dimension_numbers = #tpu.dot_dimension_numbers<[1], [0], [0], [1], [0, 0, 1, 1], [], []>} : vector<16x80xf32>, vector<80x50xf32>, vector<16x50xf32> -> vector<16x50xf32>
    %92 = arith.addf %87, %91 : vector<16x50xf32>
    %93 = vector.extract_strided_slice %78 {offsets = [48, 0], sizes = [16, 80], strides = [1, 1]} : vector<64x80xf32> to vector<16x80xf32>
    %c3_63 = arith.constant 3 : index
    %c0_64 = arith.constant 0 : index
    %c0_65 = arith.constant 0 : index
    %94 = vector.load %arg6[%c3_63, %c0_64, %c0_65] : memref<4x80x50xf32, #tpu.memory_space<vmem>>, vector<1x80x50xf32>
    %95 = vector.shape_cast %94 : vector<1x80x50xf32> to vector<80x50xf32>
    %cst_66 = arith.constant dense<0.000000e+00> : vector<16x50xf32>
    %96 = tpu.matmul %93, %95, %cst_66 {dimension_numbers = #tpu.dot_dimension_numbers<[1], [0], [0], [1], [0, 0, 1, 1], [], []>} : vector<16x80xf32>, vector<80x50xf32>, vector<16x50xf32> -> vector<16x50xf32>
    %97 = arith.addf %92, %96 : vector<16x50xf32>
    %c0_67 = arith.constant 0 : index
    %c0_68 = arith.constant 0 : index
    %98 = vector.load %arg7[%c0_67, %c0_68] : memref<1x50xf32, #tpu.memory_space<vmem>>, vector<1x50xf32>
    %99 = vector.broadcast %98 : vector<1x50xf32> to vector<16x50xf32>
    %100 = arith.addf %97, %99 : vector<16x50xf32>
    %cst_69 = arith.constant 0.000000e+00 : f32
    %101 = vector.broadcast %cst_69 : f32 to vector<16x50xf32>
    %102 = arith.maximumf %100, %101 : vector<16x50xf32>
    %c0_70 = arith.constant 0 : index
    %c0_71 = arith.constant 0 : index
    %103 = vector.load %arg8[%c0_70, %c0_71] : memref<50x10xf32, #tpu.memory_space<vmem>>, vector<50x10xf32>
    %cst_72 = arith.constant dense<0.000000e+00> : vector<16x10xf32>
    %104 = tpu.matmul %102, %103, %cst_72 {dimension_numbers = #tpu.dot_dimension_numbers<[1], [0], [0], [1], [0, 0, 1, 1], [], []>} : vector<16x50xf32>, vector<50x10xf32>, vector<16x10xf32> -> vector<16x10xf32>
    %c0_73 = arith.constant 0 : index
    %c0_74 = arith.constant 0 : index
    %105 = vector.load %arg9[%c0_73, %c0_74] : memref<1x10xf32, #tpu.memory_space<vmem>>, vector<1x10xf32>
    %106 = vector.broadcast %105 : vector<1x10xf32> to vector<16x10xf32>
    %107 = arith.addf %104, %106 : vector<16x10xf32>
    %cst_75 = arith.constant dense<0xFF800000> : vector<16xf32>
    %108 = vector.multi_reduction <maximumf>, %107, %cst_75 [1] : vector<16x10xf32> to vector<16xf32>
    %109 = vector.shape_cast %108 : vector<16xf32> to vector<16x1xf32>
    %110 = vector.broadcast %109 : vector<16x1xf32> to vector<16x10xf32>
    %111 = arith.subf %107, %110 : vector<16x10xf32>
    %112 = math.exp %111 : vector<16x10xf32>
    %cst_76 = arith.constant dense<0.000000e+00> : vector<16xf32>
    %113 = vector.multi_reduction <add>, %112, %cst_76 [1] : vector<16x10xf32> to vector<16xf32>
    %114 = vector.shape_cast %113 : vector<16xf32> to vector<16x1xf32>
    %115 = math.log %114 : vector<16x1xf32>
    %116 = arith.addf %115, %109 : vector<16x1xf32>
    %117 = vector.broadcast %116 : vector<16x1xf32> to vector<16x10xf32>
    %118 = arith.subf %107, %117 : vector<16x10xf32>
    %c0_77 = arith.constant 0 : index
    %c0_78 = arith.constant 0 : index
    %119 = vector.load %arg10[%c0_77, %c0_78] : memref<16x10xf32, #tpu.memory_space<vmem>>, vector<16x10xf32>
    tpu.vector_store %arg10[%c0_77, %c0_78], %118 {strides = array<i32>} : memref<16x10xf32, #tpu.memory_space<vmem>>, vector<16x10xf32>,
    return
  }
  func.func @transform_0(%arg0: i32) -> (i32, i32, i32) {
    %c0_i32 = arith.constant 0 : i32
    %c0_i32_0 = arith.constant 0 : i32
    %c0_i32_1 = arith.constant 0 : i32
    return %arg0, %c0_i32, %c0_i32_0 : i32, i32, i32
  }
  func.func @transform_1(%arg0: i32) -> (i32, i32, i32) {
    %c0_i32 = arith.constant 0 : i32
    %c0_i32_0 = arith.constant 0 : i32
    %c0_i32_1 = arith.constant 0 : i32
    %c0_i32_2 = arith.constant 0 : i32
    return %c0_i32, %c0_i32_0, %c0_i32_1 : i32, i32, i32
  }
  func.func @transform_2(%arg0: i32) -> (i32, i32) {
    %c0_i32 = arith.constant 0 : i32
    %c0_i32_0 = arith.constant 0 : i32
    %c0_i32_1 = arith.constant 0 : i32
    return %c0_i32, %c0_i32_0 : i32, i32
  }
  func.func @transform_3(%arg0: i32) -> (i32, i32, i32) {
    %c0_i32 = arith.constant 0 : i32
    %c0_i32_0 = arith.constant 0 : i32
    %c0_i32_1 = arith.constant 0 : i32
    %c0_i32_2 = arith.constant 0 : i32
    return %c0_i32, %c0_i32_0, %c0_i32_1 : i32, i32, i32
  }
  func.func @transform_4(%arg0: i32) -> (i32, i32) {
    %c0_i32 = arith.constant 0 : i32
    %c0_i32_0 = arith.constant 0 : i32
    %c0_i32_1 = arith.constant 0 : i32
    return %c0_i32, %c0_i32_0 : i32, i32
  }
  func.func @transform_5(%arg0: i32) -> (i32, i32, i32) {
    %c0_i32 = arith.constant 0 : i32
    %c0_i32_0 = arith.constant 0 : i32
    %c0_i32_1 = arith.constant 0 : i32
    %c0_i32_2 = arith.constant 0 : i32
    return %c0_i32, %c0_i32_0, %c0_i32_1 : i32, i32, i32
  }
  func.func @transform_6(%arg0: i32) -> (i32, i32) {
    %c0_i32 = arith.constant 0 : i32
    %c0_i32_0 = arith.constant 0 : i32
    %c0_i32_1 = arith.constant 0 : i32
    return %c0_i32, %c0_i32_0 : i32, i32
  }
  func.func @transform_7(%arg0: i32) -> (i32, i32) {
    %c0_i32 = arith.constant 0 : i32
    %c0_i32_0 = arith.constant 0 : i32
    %c0_i32_1 = arith.constant 0 : i32
    return %c0_i32, %c0_i32_0 : i32, i32
  }
  func.func @transform_8(%arg0: i32) -> (i32, i32) {
    %c0_i32 = arith.constant 0 : i32
    %c0_i32_0 = arith.constant 0 : i32
    %c0_i32_1 = arith.constant 0 : i32
    return %c0_i32, %c0_i32_0 : i32, i32
  }
  func.func @transform_9(%arg0: i32) -> (i32, i32) {
    %c0_i32 = arith.constant 0 : i32
    %c0_i32_0 = arith.constant 0 : i32
    return %arg0, %c0_i32 : i32, i32
  }
}

</mosaic_0001>

<llo_original>
// kernel: net0_forward.1
$region0: #{net0_forward.1}
  #allocation0 [shape = 'u32[]', space=smem, size = 0x4, offset = 0x4, fixed_abs, tag = 'smem constant byte address 0x4 - core index']
  #allocation1 [shape = 'u32[72,128]{1,0:T(1,128)}', space=vmem, size = 0x9000, scoped, tag = 'internal scratch']
  %s0 = inlined_call_operand.vmem [shape: f32[2,448,28], index: 0, kind: input, shape index: {}]
  %s1 = inlined_call_operand.vmem [shape: f32[5,28,240], index: 1, kind: input, shape index: {}]
  %s2 = inlined_call_operand.vmem [shape: f32[1,120], index: 2, kind: input, shape index: {}]
  %s3 = inlined_call_operand.vmem [shape: f32[5,120,160], index: 3, kind: input, shape index: {}]
  %s4 = inlined_call_operand.vmem [shape: f32[1,80], index: 4, kind: input, shape index: {}]
  %s5 = inlined_call_operand.vmem [shape: f32[4,80,50], index: 5, kind: input, shape index: {}]
  %s6 = inlined_call_operand.vmem [shape: f32[1,50], index: 6, kind: input, shape index: {}]
  %s7 = inlined_call_operand.vmem [shape: f32[50,10], index: 7, kind: input, shape index: {}]
  %s8 = inlined_call_operand.vmem [shape: f32[1,10], index: 8, kind: input, shape index: {}]
  %s9 = inlined_call_operand.vmem [shape: f32[32,10], index: 9, kind: output, shape index: {}]
  %s10 = sld [smem:[#allocation0]]
  $region69: #{net0_forward.1} parent=0
    _
  %s12 = ssub.s32 1, %s10
  %s13 = scalar_select 0, %s12, %s10
  loop: start=0, step=1, limit=4
  $region2: #{net0_forward.1} parent=0 // loop_pre_header
    _
  $region3: #{net0_forward.1} parent=0 // loop_header
    %s15 = sphi 0, %s19
    %p16 = scmp.ge.s32.totalorder %s15, 4
    %s25 = sphi 0, %s27
    %s28 = sphi 0, %s25
    %s29 = sphi 0, %s28
    %s45 = sphi 0, %s29
    %s49 = sphi 0, %s49
    %s51 = sphi 0, %s49
    %s52 = sphi 0, %s51
    %s66 = sphi 0, %s52
    %s70 = sphi 0, %s70
    %s72 = sphi 0, %s70
    %s73 = sphi 0, %s72
    %s87 = sphi 0, %s73
    %s91 = sphi 0, %s91
    %s93 = sphi 0, %s91
    %s94 = sphi 0, %s93
    %s108 = sphi 0, %s94
    %s112 = sphi 0, %s112
    %s114 = sphi 0, %s112
    %s115 = sphi 0, %s114
    %s129 = sphi 0, %s115
    %s133 = sphi 0, %s133
    %s135 = sphi 0, %s133
    %s136 = sphi 0, %s135
    %s150 = sphi 0, %s136
    %s154 = sphi 0, %s154
    %s156 = sphi 0, %s154
    %s157 = sphi 0, %s156
    %s171 = sphi 0, %s157
    %s175 = sphi 0, %s175
    %s177 = sphi 0, %s175
    %s178 = sphi 0, %s177
    %s192 = sphi 0, %s178
    %s196 = sphi 0, %s196
    %s198 = sphi 0, %s196
    %s199 = sphi 0, %s198
    %s213 = sphi 0, %s199
    %s219 = sphi 0, %s221
    %s222 = sphi 0, %s219
    %s223 = sphi 0, %s222
    %s239 = sphi 0, %s223
  $region4: #{net0_forward.1} parent=0 // loop_header_branch
    %18 = sbr.rel (%p16) target = $region8
  $region5: #{net0_forward.1} parent=0 // loop_body
    %s20 = ssub.s32 %s15, 1
    %s21 = ssub.s32 %s15, 2
    %s22 = sadd.s32 %s15, 1
    %s23 = ssub.s32 %s15, %s22
    %p24 = scmp.eq.s32.totalorder %s23, 0
    %s26 = sadd.s32 %s25, 1
    %s27 = scalar_select %p24, %s25, %s26
    %p30 = pneg %p24
    %p31 = scmp.eq.s32.totalorder %s15, 1
    %p32 = por %p30, %p31
    %p33 = scmp.ne.s32.totalorder %s25, %s28
    %p34 = scmp.eq.s32.totalorder %s15, 0
    %p35 = por %p33, %p34
    %p36 = scmp.ne.s32.totalorder %s25, %s28
    %p37 = scmp.eq.s32.totalorder %s20, 1
    %p38 = por %p36, %p37
    %p39 = scmp.ne.s32.totalorder %s28, %s29
    %p40 = scmp.eq.s32.totalorder %s20, 0
    %p41 = por %p39, %p40
    %p42 = scmp.ne.s32.totalorder %s28, %s29
    %p43 = scmp.eq.s32.totalorder %s21, 1
    %p44 = por %p42, %p43
    %p46 = scmp.ne.s32.totalorder %s29, %s45
    %p47 = scmp.eq.s32.totalorder %s21, 0
    %p48 = por %p46, %p47
    %s50 = sadd.s32 %s49, 1
    %p53 = scmp.eq.s32.totalorder %s15, 1
    %p54 = scmp.ne.s32.totalorder %s49, %s51
    %p55 = scmp.eq.s32.totalorder %s15, 0
    %p56 = por %p54, %p55
    %p57 = scmp.ne.s32.totalorder %s49, %s51
    %p58 = scmp.eq.s32.totalorder %s20, 1
    %p59 = por %p57, %p58
    %p60 = scmp.ne.s32.totalorder %s51, %s52
    %p61 = scmp.eq.s32.totalorder %s20, 0
    %p62 = por %p60, %p61
    %p63 = scmp.ne.s32.totalorder %s51, %s52
    %p64 = scmp.eq.s32.totalorder %s21, 1
    %p65 = por %p63, %p64
    %p67 = scmp.ne.s32.totalorder %s52, %s66
    %p68 = scmp.eq.s32.totalorder %s21, 0
    %p69 = por %p67, %p68
    %s71 = sadd.s32 %s70, 1
    %p74 = scmp.eq.s32.totalorder %s15, 1
    %p75 = scmp.ne.s32.totalorder %s70, %s72
    %p76 = scmp.eq.s32.totalorder %s15, 0
    %p77 = por %p75, %p76
    %p78 = scmp.ne.s32.totalorder %s70, %s72
    %p79 = scmp.eq.s32.totalorder %s20, 1
    %p80 = por %p78, %p79
    %p81 = scmp.ne.s32.totalorder %s72, %s73
    %p82 = scmp.eq.s32.totalorder %s20, 0
    %p83 = por %p81, %p82
    %p84 = scmp.ne.s32.totalorder %s72, %s73
    %p85 = scmp.eq.s32.totalorder %s21, 1
    %p86 = por %p84, %p85
    %p88 = scmp.ne.s32.totalorder %s73, %s87
    %p89 = scmp.eq.s32.totalorder %s21, 0
    %p90 = por %p88, %p89
    %s92 = sadd.s32 %s91, 1
    %p95 = scmp.eq.s32.totalorder %s15, 1
    %p96 = scmp.ne.s32.totalorder %s91, %s93
    %p97 = scmp.eq.s32.totalorder %s15, 0
    %p98 = por %p96, %p97
    %p99 = scmp.ne.s32.totalorder %s91, %s93
    %p100 = scmp.eq.s32.totalorder %s20, 1
    %p101 = por %p99, %p100
    %p102 = scmp.ne.s32.totalorder %s93, %s94
    %p103 = scmp.eq.s32.totalorder %s20, 0
    %p104 = por %p102, %p103
    %p105 = scmp.ne.s32.totalorder %s93, %s94
    %p106 = scmp.eq.s32.totalorder %s21, 1
    %p107 = por %p105, %p106
    %p109 = scmp.ne.s32.totalorder %s94, %s108
    %p110 = scmp.eq.s32.totalorder %s21, 0
    %p111 = por %p109, %p110
    %s113 = sadd.s32 %s112, 1
    %p116 = scmp.eq.s32.totalorder %s15, 1
    %p117 = scmp.ne.s32.totalorder %s112, %s114
    %p118 = scmp.eq.s32.totalorder %s15, 0
    %p119 = por %p117, %p118
    %p120 = scmp.ne.s32.totalorder %s112, %s114
    %p121 = scmp.eq.s32.totalorder %s20, 1
    %p122 = por %p120, %p121
    %p123 = scmp.ne.s32.totalorder %s114, %s115
    %p124 = scmp.eq.s32.totalorder %s20, 0
    %p125 = por %p123, %p124
    %p126 = scmp.ne.s32.totalorder %s114, %s115
    %p127 = scmp.eq.s32.totalorder %s21, 1
    %p128 = por %p126, %p127
    %p130 = scmp.ne.s32.totalorder %s115, %s129
    %p131 = scmp.eq.s32.totalorder %s21, 0
    %p132 = por %p130, %p131
    %s134 = sadd.s32 %s133, 1
    %p137 = scmp.eq.s32.totalorder %s15, 1
    %p138 = scmp.ne.s32.totalorder %s133, %s135
    %p139 = scmp.eq.s32.totalorder %s15, 0
    %p140 = por %p138, %p139
    %p141 = scmp.ne.s32.totalorder %s133, %s135
    %p142 = scmp.eq.s32.totalorder %s20, 1
    %p143 = por %p141, %p142
    %p144 = scmp.ne.s32.totalorder %s135, %s136
    %p145 = scmp.eq.s32.totalorder %s20, 0
    %p146 = por %p144, %p145
    %p147 = scmp.ne.s32.totalorder %s135, %s136
    %p148 = scmp.eq.s32.totalorder %s21, 1
    %p149 = por %p147, %p148
    %p151 = scmp.ne.s32.totalorder %s136, %s150
    %p152 = scmp.eq.s32.totalorder %s21, 0
    %p153 = por %p151, %p152
    %s155 = sadd.s32 %s154, 1
    %p158 = scmp.eq.s32.totalorder %s15, 1
    %p159 = scmp.ne.s32.totalorder %s154, %s156
    %p160 = scmp.eq.s32.totalorder %s15, 0
    %p161 = por %p159, %p160
    %p162 = scmp.ne.s32.totalorder %s154, %s156
    %p163 = scmp.eq.s32.totalorder %s20, 1
    %p164 = por %p162, %p163
    %p165 = scmp.ne.s32.totalorder %s156, %s157
    %p166 = scmp.eq.s32.totalorder %s20, 0
    %p167 = por %p165, %p166
    %p168 = scmp.ne.s32.totalorder %s156, %s157
    %p169 = scmp.eq.s32.totalorder %s21, 1
    %p170 = por %p168, %p169
    %p172 = scmp.ne.s32.totalorder %s157, %s171
    %p173 = scmp.eq.s32.totalorder %s21, 0
    %p174 = por %p172, %p173
    %s176 = sadd.s32 %s175, 1
    %p179 = scmp.eq.s32.totalorder %s15, 1
    %p180 = scmp.ne.s32.totalorder %s175, %s177
    %p181 = scmp.eq.s32.totalorder %s15, 0
    %p182 = por %p180, %p181
    %p183 = scmp.ne.s32.totalorder %s175, %s177
    %p184 = scmp.eq.s32.totalorder %s20, 1
    %p185 = por %p183, %p184
    %p186 = scmp.ne.s32.totalorder %s177, %s178
    %p187 = scmp.eq.s32.totalorder %s20, 0
    %p188 = por %p186, %p187
    %p189 = scmp.ne.s32.totalorder %s177, %s178
    %p190 = scmp.eq.s32.totalorder %s21, 1
    %p191 = por %p189, %p190
    %p193 = scmp.ne.s32.totalorder %s178, %s192
    %p194 = scmp.eq.s32.totalorder %s21, 0
    %p195 = por %p193, %p194
    %s197 = sadd.s32 %s196, 1
    %p200 = scmp.eq.s32.totalorder %s15, 1
    %p201 = scmp.ne.s32.totalorder %s196, %s198
    %p202 = scmp.eq.s32.totalorder %s15, 0
    %p203 = por %p201, %p202
    %p204 = scmp.ne.s32.totalorder %s196, %s198
    %p205 = scmp.eq.s32.totalorder %s20, 1
    %p206 = por %p204, %p205
    %p207 = scmp.ne.s32.totalorder %s198, %s199
    %p208 = scmp.eq.s32.totalorder %s20, 0
    %p209 = por %p207, %p208
    %p210 = scmp.ne.s32.totalorder %s198, %s199
    %p211 = scmp.eq.s32.totalorder %s21, 1
    %p212 = por %p210, %p211
    %p214 = scmp.ne.s32.totalorder %s199, %s213
    %p215 = scmp.eq.s32.totalorder %s21, 0
    %p216 = por %p214, %p215
    %s217 = ssub.s32 %s15, %s22
    %p218 = scmp.eq.s32.totalorder %s217, 0
    %s220 = sadd.s32 %s219, 1
    %s221 = scalar_select %p218, %s219, %s220
    %p224 = pneg %p218
    %p225 = scmp.eq.s32.totalorder %s15, 1
    %p226 = por %p224, %p225
    %p227 = scmp.ne.s32.totalorder %s219, %s222
    %p228 = scmp.eq.s32.totalorder %s15, 0
    %p229 = por %p227, %p228
    %p230 = scmp.ne.s32.totalorder %s219, %s222
    %p231 = scmp.eq.s32.totalorder %s20, 1
    %p232 = por %p230, %p231
    %p233 = scmp.ne.s32.totalorder %s222, %s223
    %p234 = scmp.eq.s32.totalorder %s20, 0
    %p235 = por %p233, %p234
    %p236 = scmp.ne.s32.totalorder %s222, %s223
    %p237 = scmp.eq.s32.totalorder %s21, 1
    %p238 = por %p236, %p237
    %p240 = scmp.ne.s32.totalorder %s223, %s239
    %p241 = scmp.eq.s32.totalorder %s21, 0
    %p242 = por %p240, %p241
    %p243 = scmp.le.s32.totalorder 1, %s15
    %p244 = scmp.lt.s32.totalorder %s15, 3
    %p245 = pnand %p243, %p244
    %p246 = pneg %p245
    // Predicated region
    $region9: #{net0_forward.1} parent=5 // pred_check
      _
    $region10: #{net0_forward.1} parent=5 // pred_check_branch
      %248 = sbr.rel (%p245) target = $region12
    $region11: #{net0_forward.1} parent=5 // pred_region
      %s249 = ssub.s32 %s15, 1
      // Predicated region
      $region13: #{net0_forward.1} parent=11 // pred_check
        %p250 = pneg %p62
      $region14: #{net0_forward.1} parent=11 // pred_check_branch
        %252 = sbr.rel (%p250) target = $region16
      $region15: #{net0_forward.1} parent=11 // pred_region
        _
      $region16: #{net0_forward.1} parent=11 // pred_fallthru
        _
      // Predicated region
      $region17: #{net0_forward.1} parent=11 // pred_check
        %p253 = pneg %p83
      $region18: #{net0_forward.1} parent=11 // pred_check_branch
        %255 = sbr.rel (%p253) target = $region20
      $region19: #{net0_forward.1} parent=11 // pred_region
        _
      $region20: #{net0_forward.1} parent=11 // pred_fallthru
        _
      // Predicated region
      $region21: #{net0_forward.1} parent=11 // pred_check
        %p256 = pneg %p104
      $region22: #{net0_forward.1} parent=11 // pred_check_branch
        %258 = sbr.rel (%p256) target = $region24
      $region23: #{net0_forward.1} parent=11 // pred_region
        _
      $region24: #{net0_forward.1} parent=11 // pred_fallthru
        _
      // Predicated region
      $region25: #{net0_forward.1} parent=11 // pred_check
        %p259 = pneg %p125
      $region26: #{net0_forward.1} parent=11 // pred_check_branch
        %261 = sbr.rel (%p259) target = $region28
      $region27: #{net0_forward.1} parent=11 // pred_region
        _
      $region28: #{net0_forward.1} parent=11 // pred_fallthru
        _
      // Predicated region
      $region29: #{net0_forward.1} parent=11 // pred_check
        %p262 = pneg %p146
      $region30: #{net0_forward.1} parent=11 // pred_check_branch
        %264 = sbr.rel (%p262) target = $region32
      $region31: #{net0_forward.1} parent=11 // pred_region
        _
      $region32: #{net0_forward.1} parent=11 // pred_fallthru
        _
      // Predicated region
      $region33: #{net0_forward.1} parent=11 // pred_check
        %p265 = pneg %p167
      $region34: #{net0_forward.1} parent=11 // pred_check_branch
        %267 = sbr.rel (%p265) target = $region36
      $region35: #{net0_forward.1} parent=11 // pred_region
        _
      $region36: #{net0_forward.1} parent=11 // pred_fallthru
        _
      // Predicated region
      $region37: #{net0_forward.1} parent=11 // pred_check
        %p268 = pneg %p188
      $region38: #{net0_forward.1} parent=11 // pred_check_branch
        %270 = sbr.rel (%p268) target = $region40
      $region39: #{net0_forward.1} parent=11 // pred_region
        _
      $region40: #{net0_forward.1} parent=11 // pred_fallthru
        _
      // Predicated region
      $region41: #{net0_forward.1} parent=11 // pred_check
        %p271 = pneg %p209
      $region42: #{net0_forward.1} parent=11 // pred_check_branch
        %273 = sbr.rel (%p271) target = $region44
      $region43: #{net0_forward.1} parent=11 // pred_region
        _
      $region44: #{net0_forward.1} parent=11 // pred_fallthru
        _
    $region12: #{net0_forward.1} parent=5 // pred_fallthru
      _
    %p274 = scmp.lt.s32.totalorder %s15, 2
    // Predicated region
    $region45: #{net0_forward.1} parent=5 // pred_check
      %p275 = pneg %p274
    $region46: #{net0_forward.1} parent=5 // pred_check_branch
      %277 = sbr.rel (%p275) target = $region48
    $region47: #{net0_forward.1} parent=5 // pred_region
      // Predicated region
      $region49: #{net0_forward.1} parent=47 // pred_check
        %p278 = pneg %p35
      $region50: #{net0_forward.1} parent=47 // pred_check_branch
        %280 = sbr.rel (%p278) target = $region52
      $region51: #{net0_forward.1} parent=47 // pred_region
        %p281 = scmp.lt.s32.totalorder %s15, 1
        %s282 = scalar_select %p281, %s15, 1
        %s283 = smul.addr %s282, 56
        %s284 = smul.addr %s283, 8
        %s285 = scalar_lea.vmem %s0, %s284
      $region52: #{net0_forward.1} parent=47 // pred_fallthru
        _
    $region48: #{net0_forward.1} parent=5 // pred_fallthru
      _
    %p286 = scmp.le.s32.totalorder 1, %s15
    %p287 = scmp.lt.s32.totalorder %s15, 3
    %p288 = pnand %p286, %p287
    %p289 = pneg %p288
    // Predicated region
    $region53: #{net0_forward.1} parent=5 // pred_check
      _
    $region54: #{net0_forward.1} parent=5 // pred_check_branch
      %291 = sbr.rel (%p288) target = $region56
    $region55: #{net0_forward.1} parent=5 // pred_region
      %s292 = ssub.s32 %s15, 1
      %p293 = scmp.lt.s32.totalorder %s20, 1
      %s294 = scalar_select %p293, %s20, 1
      %s295 = smul.addr %s294, 56
      %s296 = smul.addr %s295, 8
      %s297 = scalar_lea.vmem %s0, %s296
      %p298 = pneg %p41
      %p299 = pneg %p38
      %p300 = pneg %p62
      %p301 = pneg %p59
      %p302 = pneg %p83
      %p303 = pneg %p80
      %p304 = pneg %p104
      %p305 = pneg %p101
      %p306 = pneg %p125
      %p307 = pneg %p122
      %p308 = pneg %p146
      %p309 = pneg %p143
      %p310 = pneg %p167
      %p311 = pneg %p164
      %p312 = pneg %p188
      %p313 = pneg %p185
      %p314 = pneg %p209
      %p315 = pneg %p206
      %p316 = pneg %p235
      %p317 = pneg %p232
      %s318 = smul.u32 2, %s20
      %p319 = scmp.lt.s32.totalorder %s318, 3
      %s320 = scalar_select %p319, %s318, 3
      %s321 = smul.addr %s320, 8
      %s322 = scalar_lea.vmem %s9, %s321
      %p323 = scmp.lt.s32.totalorder %s20, 1
      %s324 = scalar_select %p323, %s20, 1
      %s325 = smul.addr %s324, 56
      %s326 = smul.addr %s325, 8
      %s327 = scalar_lea.vmem %s0, %s326
      %s328 = smul.u32 2, %s20
      %p329 = scmp.lt.s32.totalorder %s328, 3
      %s330 = scalar_select %p329, %s328, 3
      %s331 = smul.addr %s330, 8
      %s332 = scalar_lea.vmem %s9, %s331
      %s333 = smul.u32 2, %s20
      %v334 = vld [vmem:[%s327] sm:$0xff]
      %v335 = vld [vmem:[%s327 + $0x8] sm:$0xff]
      %v336 = vld [vmem:[%s327 + $0x10] sm:$0xff]
      %v337 = vld [vmem:[%s327 + $0x18] sm:$0xff]
      %v338 = vld [vmem:[%s327 + $0x20] sm:$0xff]
      %v339 = vld [vmem:[%s327 + $0x28] sm:$0xff]
      %v340 = vld [vmem:[%s327 + $0x30] sm:$0xff]
      %v341 = vld [vmem:[%s327 + $0x38] sm:$0xff]
      %v342 = vld [vmem:[%s327 + $0x40] sm:$0xff]
      %v343 = vld [vmem:[%s327 + $0x48] sm:$0xff]
      %v344 = vld [vmem:[%s327 + $0x50] sm:$0xff]
      %v345 = vld [vmem:[%s327 + $0x58] sm:$0xff]
      %v346 = vld [vmem:[%s327 + $0x60] sm:$0xff]
      %v347 = vld [vmem:[%s327 + $0x68] sm:$0xff]
      %v348 = vld [vmem:[%s327 + $0x70] sm:$0xff]
      %v349 = vld [vmem:[%s327 + $0x78] sm:$0xff]
      %v350 = vld [vmem:[%s327 + $0x80] sm:$0xff]
      %v351 = vld [vmem:[%s327 + $0x88] sm:$0xff]
      %v352 = vld [vmem:[%s327 + $0x90] sm:$0xff]
      %v353 = vld [vmem:[%s327 + $0x98] sm:$0xff]
      %v354 = vld [vmem:[%s327 + $0xa0] sm:$0xff]
      %v355 = vld [vmem:[%s327 + $0xa8] sm:$0xff]
      %v356 = vld [vmem:[%s327 + $0xb0] sm:$0xff]
      %v357 = vld [vmem:[%s327 + $0xb8] sm:$0xff]
      %v358 = vld [vmem:[%s327 + $0xc0] sm:$0xff]
      %v359 = vld [vmem:[%s327 + $0xc8] sm:$0xff]
      %v360 = vld [vmem:[%s327 + $0xd0] sm:$0xff]
      %v361 = vld [vmem:[%s327 + $0xd8] sm:$0xff]
      %v362 = vld [vmem:[%s327 + $0xe0] sm:$0xff]
      %v363 = vld [vmem:[%s327 + $0xe8] sm:$0xff]
      %v364 = vld [vmem:[%s327 + $0xf0] sm:$0xff]
      %v365 = vld [vmem:[%s327 + $0xf8] sm:$0xff]
      %v366 = vld [vmem:[%s327 + $0x100] sm:$0xff]
      %v367 = vld [vmem:[%s327 + $0x108] sm:$0xff]
      %v368 = vld [vmem:[%s327 + $0x110] sm:$0xff]
      %v369 = vld [vmem:[%s327 + $0x118] sm:$0xff]
      %v370 = vld [vmem:[%s327 + $0x120] sm:$0xff]
      %v371 = vld [vmem:[%s327 + $0x128] sm:$0xff]
      %v372 = vld [vmem:[%s327 + $0x130] sm:$0xff]
      %v373 = vld [vmem:[%s327 + $0x138] sm:$0xff]
      %v374 = vld [vmem:[%s327 + $0x140] sm:$0xff]
      %v375 = vld [vmem:[%s327 + $0x148] sm:$0xff]
      %v376 = vld [vmem:[%s327 + $0x150] sm:$0xff]
      %v377 = vld [vmem:[%s327 + $0x158] sm:$0xff]
      %v378 = vld [vmem:[%s327 + $0x160] sm:$0xff]
      %v379 = vld [vmem:[%s327 + $0x168] sm:$0xff]
      %v380 = vld [vmem:[%s327 + $0x170] sm:$0xff]
      %v381 = vld [vmem:[%s327 + $0x178] sm:$0xff]
      %v382 = vld [vmem:[%s1] sm:$0xff]
      %v383 = vld [vmem:[%s1 + $0x8] sm:$0xff]
      %v384 = vld [vmem:[%s1 + $0x10] sm:$0xff]
      %v385 = vld [vmem:[%s1 + $0x18] sm:$0xff]
      %v386 = vld [vmem:[%s1 + $0x20] sm:$0xff]
      %v387 = vld [vmem:[%s1 + $0x28] sm:$0xff]
      %v388 = vld [vmem:[%s1 + $0x30] sm:$0xf]
      %v389 = vld [vmem:[%s1 + $0x38] sm:$0xf]
      %v390 = vld [vmem:[%s327 + $0x180] sm:$0xff]
      %v391 = vld [vmem:[%s327 + $0x188] sm:$0xff]
      %s392 = scalar_lea.vmem %s1, 64
      %v393 = vld [vmem:[%s392] sm:$0xff]
      %v394 = vld [vmem:[%s392 + $0x8] sm:$0xff]
      %v395 = vld [vmem:[%s392 + $0x10] sm:$0xff]
      %v396 = vld [vmem:[%s392 + $0x18] sm:$0xff]
      %v397 = vld [vmem:[%s392 + $0x20] sm:$0xff]
      %v398 = vld [vmem:[%s392 + $0x28] sm:$0xff]
      %v399 = vld [vmem:[%s392 + $0x30] sm:$0xf]
      %v400 = vld [vmem:[%s392 + $0x38] sm:$0xf]
      %vm401 = vcmask 228352
      %v403 = vsel %vm401, %v336, 0
      %v406 = vsel %vm401, %v337, 0
      %v409 = vsel %vm401, %v338, 0
      %v412 = vsel %vm401, %v339, 0
      %v415 = vsel %vm401, %v340, 0
      %v418 = vsel %vm401, %v341, 0
      %v421 = vsel %vm401, %v342, 0
      %v424 = vsel %vm401, %v343, 0
      %v427 = vsel %vm401, %v344, 0
      %v430 = vsel %vm401, %v345, 0
      %v433 = vsel %vm401, %v346, 0
      %v436 = vsel %vm401, %v347, 0
      %v439 = vsel %vm401, %v348, 0
      %v442 = vsel %vm401, %v349, 0
      %v445 = vsel %vm401, %v350, 0
      %v448 = vsel %vm401, %v351, 0
      %v451 = vsel %vm401, %v352, 0
      %v454 = vsel %vm401, %v353, 0
      %v457 = vsel %vm401, %v354, 0
      %v460 = vsel %vm401, %v355, 0
      %v463 = vsel %vm401, %v356, 0
      %v466 = vsel %vm401, %v357, 0
      %v469 = vsel %vm401, %v358, 0
      %v472 = vsel %vm401, %v359, 0
      %v475 = vsel %vm401, %v360, 0
      %v478 = vsel %vm401, %v361, 0
      %v481 = vsel %vm401, %v362, 0
      %v484 = vsel %vm401, %v363, 0
      %v487 = vsel %vm401, %v364, 0
      %v490 = vsel %vm401, %v365, 0
      %v493 = vsel %vm401, %v366, 0
      %v496 = vsel %vm401, %v367, 0
      %v499 = vsel %vm401, %v368, 0
      %v502 = vsel %vm401, %v369, 0
      %v505 = vsel %vm401, %v370, 0
      %v508 = vsel %vm401, %v371, 0
      %v511 = vsel %vm401, %v372, 0
      %v514 = vsel %vm401, %v373, 0
      %v517 = vsel %vm401, %v374, 0
      %v520 = vsel %vm401, %v375, 0
      %v523 = vsel %vm401, %v376, 0
      %v526 = vsel %vm401, %v377, 0
      %v529 = vsel %vm401, %v378, 0
      %v532 = vsel %vm401, %v379, 0
      %v535 = vsel %vm401, %v380, 0
      %v538 = vsel %vm401, %v381, 0
      %v541 = vsel %vm401, %v390, 0
      %v544 = vsel %vm401, %v391, 0
      %vm546 = vcmask 1043456
      %v548 = vsel %vm546, %v399, 0
      %v551 = vsel %vm546, %v400, 0
      %553 = vmatpush.msra.mxu0 0.0
      %554 = vmatpush.msra.mxu0 0.0
      %555 = vmatpush.msra.mxu0 0.0
      %556 = vmatpush.msra.mxu0 0.0
      %557 = vmatpush.msra.mxu0 0.0
      %558 = vmatpush.msra.mxu0 0.0
      %559 = vmatpush.msra.mxu0 0.0
      %560 = vmatpush.msra.mxu0 0.0
      %561 = vmatpush.msra.mxu0 0.0
      %562 = vmatpush.msra.mxu0 0.0
      %563 = vmatpush.msra.mxu0 0.0
      %564 = vmatpush.msra.mxu0 0.0
      %565 = vmatpush.msra.mxu0 %v548
      %566 = vmatpush.msra.mxu0 %v397
      %567 = vmatpush.msra.mxu0 %v395
      %568 = vmatpush.msra.mxu0 %v393
      %569 = vmatmul.f32.gmra.mxu0 %v403
      %v570 = vpop.f32.mrf.mxu0
      %v571 = vadd.f32 0.0, %v570
      %572 = vmatmul.f32.gmra.mxu0 %v406
      %v573 = vpop.f32.mrf.mxu0
      %v574 = vadd.f32 0.0, %v573
      %575 = vmatmul.f32.gmra.mxu0 %v409
      %v576 = vpop.f32.mrf.mxu0
      %v577 = vadd.f32 0.0, %v576
      %578 = vmatmul.f32.gmra.mxu0 %v412
      %v579 = vpop.f32.mrf.mxu0
      %v580 = vadd.f32 0.0, %v579
      %581 = vmatmul.f32.gmra.mxu0 %v415
      %v582 = vpop.f32.mrf.mxu0
      %v583 = vadd.f32 0.0, %v582
      %584 = vmatmul.f32.gmra.mxu0 %v418
      %v585 = vpop.f32.mrf.mxu0
      %v586 = vadd.f32 0.0, %v585
      %587 = vmatmul.f32.gmra.mxu0 %v421
      %v588 = vpop.f32.mrf.mxu0
      %v589 = vadd.f32 0.0, %v588
      %590 = vmatmul.f32.gmra.mxu0 %v424
      %v591 = vpop.f32.mrf.mxu0
      %v592 = vadd.f32 0.0, %v591
      %593 = vmatmul.f32.gmra.mxu0 %v427
      %v594 = vpop.f32.mrf.mxu0
      %v595 = vadd.f32 0.0, %v594
      %596 = vmatmul.f32.gmra.mxu0 %v430
      %v597 = vpop.f32.mrf.mxu0
      %v598 = vadd.f32 0.0, %v597
      %599 = vmatmul.f32.gmra.mxu0 %v433
      %v600 = vpop.f32.mrf.mxu0
      %v601 = vadd.f32 0.0, %v600
      %602 = vmatmul.f32.gmra.mxu0 %v436
      %v603 = vpop.f32.mrf.mxu0
      %v604 = vadd.f32 0.0, %v603
      %605 = vmatmul.f32.gmra.mxu0 %v439
      %v606 = vpop.f32.mrf.mxu0
      %v607 = vadd.f32 0.0, %v606
      %608 = vmatmul.f32.gmra.mxu0 %v442
      %v609 = vpop.f32.mrf.mxu0
      %v610 = vadd.f32 0.0, %v609
      %611 = vmatmul.f32.gmra.mxu0 %v445
      %v612 = vpop.f32.mrf.mxu0
      %v613 = vadd.f32 0.0, %v612
      %614 = vmatmul.f32.gmra.mxu0 %v448
      %v615 = vpop.f32.mrf.mxu0
      %v616 = vadd.f32 0.0, %v615
      %617 = vmatmul.f32.gmra.mxu0 %v451
      %v618 = vpop.f32.mrf.mxu0
      %v619 = vadd.f32 0.0, %v618
      %620 = vmatmul.f32.gmra.mxu0 %v454
      %v621 = vpop.f32.mrf.mxu0
      %v622 = vadd.f32 0.0, %v621
      %623 = vmatmul.f32.gmra.mxu0 %v457
      %v624 = vpop.f32.mrf.mxu0
      %v625 = vadd.f32 0.0, %v624
      %626 = vmatmul.f32.gmra.mxu0 %v460
      %v627 = vpop.f32.mrf.mxu0
      %v628 = vadd.f32 0.0, %v627
      %629 = vmatmul.f32.gmra.mxu0 %v463
      %v630 = vpop.f32.mrf.mxu0
      %v631 = vadd.f32 0.0, %v630
      %632 = vmatmul.f32.gmra.mxu0 %v466
      %v633 = vpop.f32.mrf.mxu0
      %v634 = vadd.f32 0.0, %v633
      %635 = vmatmul.f32.gmra.mxu0 %v469
      %v636 = vpop.f32.mrf.mxu0
      %v637 = vadd.f32 0.0, %v636
      %638 = vmatmul.f32.gmra.mxu0 %v472
      %v639 = vpop.f32.mrf.mxu0
      %v640 = vadd.f32 0.0, %v639
      %641 = vmatmul.f32.gmra.mxu0 %v475
      %v642 = vpop.f32.mrf.mxu0
      %v643 = vadd.f32 0.0, %v642
      %644 = vmatmul.f32.gmra.mxu0 %v478
      %v645 = vpop.f32.mrf.mxu0
      %v646 = vadd.f32 0.0, %v645
      %647 = vmatmul.f32.gmra.mxu0 %v481
      %v648 = vpop.f32.mrf.mxu0
      %v649 = vadd.f32 0.0, %v648
      %650 = vmatmul.f32.gmra.mxu0 %v484
      %v651 = vpop.f32.mrf.mxu0
      %v652 = vadd.f32 0.0, %v651
      %653 = vmatmul.f32.gmra.mxu0 %v487
      %v654 = vpop.f32.mrf.mxu0
      %v655 = vadd.f32 0.0, %v654
      %656 = vmatmul.f32.gmra.mxu0 %v490
      %v657 = vpop.f32.mrf.mxu0
      %v658 = vadd.f32 0.0, %v657
      %659 = vmatmul.f32.gmra.mxu0 %v493
      %v660 = vpop.f32.mrf.mxu0
      %v661 = vadd.f32 0.0, %v660
      %662 = vmatmul.f32.gmra.mxu0 %v496
      %v663 = vpop.f32.mrf.mxu0
      %v664 = vadd.f32 0.0, %v663
      %665 = vmatmul.f32.gmra.mxu0 %v499
      %v666 = vpop.f32.mrf.mxu0
      %v667 = vadd.f32 0.0, %v666
      %668 = vmatmul.f32.gmra.mxu0 %v502
      %v669 = vpop.f32.mrf.mxu0
      %v670 = vadd.f32 0.0, %v669
      %671 = vmatmul.f32.gmra.mxu0 %v505
      %v672 = vpop.f32.mrf.mxu0
      %v673 = vadd.f32 0.0, %v672
      %674 = vmatmul.f32.gmra.mxu0 %v508
      %v675 = vpop.f32.mrf.mxu0
      %v676 = vadd.f32 0.0, %v675
      %677 = vmatmul.f32.gmra.mxu0 %v511
      %v678 = vpop.f32.mrf.mxu0
      %v679 = vadd.f32 0.0, %v678
      %680 = vmatmul.f32.gmra.mxu0 %v514
      %v681 = vpop.f32.mrf.mxu0
      %v682 = vadd.f32 0.0, %v681
      %683 = vmatmul.f32.gmra.mxu0 %v517
      %v684 = vpop.f32.mrf.mxu0
      %v685 = vadd.f32 0.0, %v684
      %686 = vmatmul.f32.gmra.mxu0 %v520
      %v687 = vpop.f32.mrf.mxu0
      %v688 = vadd.f32 0.0, %v687
      %689 = vmatmul.f32.gmra.mxu0 %v523
      %v690 = vpop.f32.mrf.mxu0
      %v691 = vadd.f32 0.0, %v690
      %692 = vmatmul.f32.gmra.mxu0 %v526
      %v693 = vpop.f32.mrf.mxu0
      %v694 = vadd.f32 0.0, %v693
      %695 = vmatmul.f32.gmra.mxu0 %v529
      %v696 = vpop.f32.mrf.mxu0
      %v697 = vadd.f32 0.0, %v696
      %698 = vmatmul.f32.gmra.mxu0 %v532
      %v699 = vpop.f32.mrf.mxu0
      %v700 = vadd.f32 0.0, %v699
      %701 = vmatmul.f32.gmra.mxu0 %v535
      %v702 = vpop.f32.mrf.mxu0
      %v703 = vadd.f32 0.0, %v702
      %704 = vmatmul.f32.gmra.mxu0 %v538
      %v705 = vpop.f32.mrf.mxu0
      %v706 = vadd.f32 0.0, %v705
      %707 = vmatmul.f32.gmra.mxu0 %v541
      %v708 = vpop.f32.mrf.mxu0
      %v709 = vadd.f32 0.0, %v708
      %710 = vmatmul.f32.gmra.mxu0 %v544
      %v711 = vpop.f32.mrf.mxu0
      %v712 = vadd.f32 0.0, %v711
      %713 = vdwg.mxu0
      %714 = vmatpush.msra.mxu0 0.0
      %715 = vmatpush.msra.mxu0 0.0
      %716 = vmatpush.msra.mxu0 0.0
      %717 = vmatpush.msra.mxu0 0.0
      %718 = vmatpush.msra.mxu0 0.0
      %719 = vmatpush.msra.mxu0 0.0
      %720 = vmatpush.msra.mxu0 0.0
      %721 = vmatpush.msra.mxu0 0.0
      %722 = vmatpush.msra.mxu0 0.0
      %723 = vmatpush.msra.mxu0 0.0
      %724 = vmatpush.msra.mxu0 0.0
      %725 = vmatpush.msra.mxu0 0.0
      %726 = vmatpush.msra.mxu0 %v551
      %727 = vmatpush.msra.mxu0 %v398
      %728 = vmatpush.msra.mxu0 %v396
      %729 = vmatpush.msra.mxu0 %v394
      %730 = vmatmul.f32.gmra.mxu0 %v403
      %v731 = vpop.f32.mrf.mxu0
      %v732 = vadd.f32 0.0, %v731
      %733 = vmatmul.f32.gmra.mxu0 %v406
      %v734 = vpop.f32.mrf.mxu0
      %v735 = vadd.f32 0.0, %v734
      %736 = vmatmul.f32.gmra.mxu0 %v409
      %v737 = vpop.f32.mrf.mxu0
      %v738 = vadd.f32 0.0, %v737
      %739 = vmatmul.f32.gmra.mxu0 %v412
      %v740 = vpop.f32.mrf.mxu0
      %v741 = vadd.f32 0.0, %v740
      %742 = vmatmul.f32.gmra.mxu0 %v415
      %v743 = vpop.f32.mrf.mxu0
      %v744 = vadd.f32 0.0, %v743
      %745 = vmatmul.f32.gmra.mxu0 %v418
      %v746 = vpop.f32.mrf.mxu0
      %v747 = vadd.f32 0.0, %v746
      %748 = vmatmul.f32.gmra.mxu0 %v421
      %v749 = vpop.f32.mrf.mxu0
      %v750 = vadd.f32 0.0, %v749
      %751 = vmatmul.f32.gmra.mxu0 %v424
      %v752 = vpop.f32.mrf.mxu0
      %v753 = vadd.f32 0.0, %v752
      %754 = vmatmul.f32.gmra.mxu0 %v427
      %v755 = vpop.f32.mrf.mxu0
      %v756 = vadd.f32 0.0, %v755
      %757 = vmatmul.f32.gmra.mxu0 %v430
      %v758 = vpop.f32.mrf.mxu0
      %v759 = vadd.f32 0.0, %v758
      %760 = vmatmul.f32.gmra.mxu0 %v433
      %v761 = vpop.f32.mrf.mxu0
      %v762 = vadd.f32 0.0, %v761
      %763 = vmatmul.f32.gmra.mxu0 %v436
      %v764 = vpop.f32.mrf.mxu0
      %v765 = vadd.f32 0.0, %v764
      %766 = vmatmul.f32.gmra.mxu0 %v439
      %v767 = vpop.f32.mrf.mxu0
      %v768 = vadd.f32 0.0, %v767
      %769 = vmatmul.f32.gmra.mxu0 %v442
      %v770 = vpop.f32.mrf.mxu0
      %v771 = vadd.f32 0.0, %v770
      %772 = vmatmul.f32.gmra.mxu0 %v445
      %v773 = vpop.f32.mrf.mxu0
      %v774 = vadd.f32 0.0, %v773
      %775 = vmatmul.f32.gmra.mxu0 %v448
      %v776 = vpop.f32.mrf.mxu0
      %v777 = vadd.f32 0.0, %v776
      %778 = vmatmul.f32.gmra.mxu0 %v451
      %v779 = vpop.f32.mrf.mxu0
      %v780 = vadd.f32 0.0, %v779
      %781 = vmatmul.f32.gmra.mxu0 %v454
      %v782 = vpop.f32.mrf.mxu0
      %v783 = vadd.f32 0.0, %v782
      %784 = vmatmul.f32.gmra.mxu0 %v457
      %v785 = vpop.f32.mrf.mxu0
      %v786 = vadd.f32 0.0, %v785
      %787 = vmatmul.f32.gmra.mxu0 %v460
      %v788 = vpop.f32.mrf.mxu0
      %v789 = vadd.f32 0.0, %v788
      %790 = vmatmul.f32.gmra.mxu0 %v463
      %v791 = vpop.f32.mrf.mxu0
      %v792 = vadd.f32 0.0, %v791
      %793 = vmatmul.f32.gmra.mxu0 %v466
      %v794 = vpop.f32.mrf.mxu0
      %v795 = vadd.f32 0.0, %v794
      %796 = vmatmul.f32.gmra.mxu0 %v469
      %v797 = vpop.f32.mrf.mxu0
      %v798 = vadd.f32 0.0, %v797
      %799 = vmatmul.f32.gmra.mxu0 %v472
      %v800 = vpop.f32.mrf.mxu0
      %v801 = vadd.f32 0.0, %v800
      %802 = vmatmul.f32.gmra.mxu0 %v475
      %v803 = vpop.f32.mrf.mxu0
      %v804 = vadd.f32 0.0, %v803
      %805 = vmatmul.f32.gmra.mxu0 %v478
      %v806 = vpop.f32.mrf.mxu0
      %v807 = vadd.f32 0.0, %v806
      %808 = vmatmul.f32.gmra.mxu0 %v481
      %v809 = vpop.f32.mrf.mxu0
      %v810 = vadd.f32 0.0, %v809
      %811 = vmatmul.f32.gmra.mxu0 %v484
      %v812 = vpop.f32.mrf.mxu0
      %v813 = vadd.f32 0.0, %v812
      %814 = vmatmul.f32.gmra.mxu0 %v487
      %v815 = vpop.f32.mrf.mxu0
      %v816 = vadd.f32 0.0, %v815
      %817 = vmatmul.f32.gmra.mxu0 %v490
      %v818 = vpop.f32.mrf.mxu0
      %v819 = vadd.f32 0.0, %v818
      %820 = vmatmul.f32.gmra.mxu0 %v493
      %v821 = vpop.f32.mrf.mxu0
      %v822 = vadd.f32 0.0, %v821
      %823 = vmatmul.f32.gmra.mxu0 %v496
      %v824 = vpop.f32.mrf.mxu0
      %v825 = vadd.f32 0.0, %v824
      %826 = vmatmul.f32.gmra.mxu0 %v499
      %v827 = vpop.f32.mrf.mxu0
      %v828 = vadd.f32 0.0, %v827
      %829 = vmatmul.f32.gmra.mxu0 %v502
      %v830 = vpop.f32.mrf.mxu0
      %v831 = vadd.f32 0.0, %v830
      %832 = vmatmul.f32.gmra.mxu0 %v505
      %v833 = vpop.f32.mrf.mxu0
      %v834 = vadd.f32 0.0, %v833
      %835 = vmatmul.f32.gmra.mxu0 %v508
      %v836 = vpop.f32.mrf.mxu0
      %v837 = vadd.f32 0.0, %v836
      %838 = vmatmul.f32.gmra.mxu0 %v511
      %v839 = vpop.f32.mrf.mxu0
      %v840 = vadd.f32 0.0, %v839
      %841 = vmatmul.f32.gmra.mxu0 %v514
      %v842 = vpop.f32.mrf.mxu0
      %v843 = vadd.f32 0.0, %v842
      %844 = vmatmul.f32.gmra.mxu0 %v517
      %v845 = vpop.f32.mrf.mxu0
      %v846 = vadd.f32 0.0, %v845
      %847 = vmatmul.f32.gmra.mxu0 %v520
      %v848 = vpop.f32.mrf.mxu0
      %v849 = vadd.f32 0.0, %v848
      %850 = vmatmul.f32.gmra.mxu0 %v523
      %v851 = vpop.f32.mrf.mxu0
      %v852 = vadd.f32 0.0, %v851
      %853 = vmatmul.f32.gmra.mxu0 %v526
      %v854 = vpop.f32.mrf.mxu0
      %v855 = vadd.f32 0.0, %v854
      %856 = vmatmul.f32.gmra.mxu0 %v529
      %v857 = vpop.f32.mrf.mxu0
      %v858 = vadd.f32 0.0, %v857
      %859 = vmatmul.f32.gmra.mxu0 %v532
      %v860 = vpop.f32.mrf.mxu0
      %v861 = vadd.f32 0.0, %v860
      %862 = vmatmul.f32.gmra.mxu0 %v535
      %v863 = vpop.f32.mrf.mxu0
      %v864 = vadd.f32 0.0, %v863
      %865 = vmatmul.f32.gmra.mxu0 %v538
      %v866 = vpop.f32.mrf.mxu0
      %v867 = vadd.f32 0.0, %v866
      %868 = vmatmul.f32.gmra.mxu0 %v541
      %v869 = vpop.f32.mrf.mxu0
      %v870 = vadd.f32 0.0, %v869
      %871 = vmatmul.f32.gmra.mxu0 %v544
      %v872 = vpop.f32.mrf.mxu0
      %v873 = vadd.f32 0.0, %v872
      %874 = vdwg.mxu0
      %v876 = vsel %vm401, %v334, 0
      %v879 = vsel %vm401, %v335, 0
      %v882 = vsel %vm546, %v388, 0
      %v885 = vsel %vm546, %v389, 0
      %887 = vmatpush.msra.mxu0 0.0
      %888 = vmatpush.msra.mxu0 0.0
      %889 = vmatpush.msra.mxu0 0.0
      %890 = vmatpush.msra.mxu0 0.0
      %891 = vmatpush.msra.mxu0 0.0
      %892 = vmatpush.msra.mxu0 0.0
      %893 = vmatpush.msra.mxu0 0.0
      %894 = vmatpush.msra.mxu0 0.0
      %895 = vmatpush.msra.mxu0 0.0
      %896 = vmatpush.msra.mxu0 0.0
      %897 = vmatpush.msra.mxu0 0.0
      %898 = vmatpush.msra.mxu0 0.0
      %899 = vmatpush.msra.mxu0 %v882
      %900 = vmatpush.msra.mxu0 %v386
      %901 = vmatpush.msra.mxu0 %v384
      %902 = vmatpush.msra.mxu0 %v382
      %903 = vmatmul.f32.gmra.mxu0 %v876
      %v904 = vpop.f32.mrf.mxu0
      %v905 = vadd.f32 %v571, %v904
      %906 = vmatmul.f32.gmra.mxu0 %v879
      %v907 = vpop.f32.mrf.mxu0
      %v908 = vadd.f32 %v574, %v907
      %909 = vmatmul.f32.gmra.mxu0 %v403
      %v910 = vpop.f32.mrf.mxu0
      %v911 = vadd.f32 %v577, %v910
      %912 = vmatmul.f32.gmra.mxu0 %v406
      %v913 = vpop.f32.mrf.mxu0
      %v914 = vadd.f32 %v580, %v913
      %915 = vmatmul.f32.gmra.mxu0 %v409
      %v916 = vpop.f32.mrf.mxu0
      %v917 = vadd.f32 %v583, %v916
      %918 = vmatmul.f32.gmra.mxu0 %v412
      %v919 = vpop.f32.mrf.mxu0
      %v920 = vadd.f32 %v586, %v919
      %921 = vmatmul.f32.gmra.mxu0 %v415
      %v922 = vpop.f32.mrf.mxu0
      %v923 = vadd.f32 %v589, %v922
      %924 = vmatmul.f32.gmra.mxu0 %v418
      %v925 = vpop.f32.mrf.mxu0
      %v926 = vadd.f32 %v592, %v925
      %927 = vmatmul.f32.gmra.mxu0 %v421
      %v928 = vpop.f32.mrf.mxu0
      %v929 = vadd.f32 %v595, %v928
      %930 = vmatmul.f32.gmra.mxu0 %v424
      %v931 = vpop.f32.mrf.mxu0
      %v932 = vadd.f32 %v598, %v931
      %933 = vmatmul.f32.gmra.mxu0 %v427
      %v934 = vpop.f32.mrf.mxu0
      %v935 = vadd.f32 %v601, %v934
      %936 = vmatmul.f32.gmra.mxu0 %v430
      %v937 = vpop.f32.mrf.mxu0
      %v938 = vadd.f32 %v604, %v937
      %939 = vmatmul.f32.gmra.mxu0 %v433
      %v940 = vpop.f32.mrf.mxu0
      %v941 = vadd.f32 %v607, %v940
      %942 = vmatmul.f32.gmra.mxu0 %v436
      %v943 = vpop.f32.mrf.mxu0
      %v944 = vadd.f32 %v610, %v943
      %945 = vmatmul.f32.gmra.mxu0 %v439
      %v946 = vpop.f32.mrf.mxu0
      %v947 = vadd.f32 %v613, %v946
      %948 = vmatmul.f32.gmra.mxu0 %v442
      %v949 = vpop.f32.mrf.mxu0
      %v950 = vadd.f32 %v616, %v949
      %951 = vmatmul.f32.gmra.mxu0 %v445
      %v952 = vpop.f32.mrf.mxu0
      %v953 = vadd.f32 %v619, %v952
      %954 = vmatmul.f32.gmra.mxu0 %v448
      %v955 = vpop.f32.mrf.mxu0
      %v956 = vadd.f32 %v622, %v955
      %957 = vmatmul.f32.gmra.mxu0 %v451
      %v958 = vpop.f32.mrf.mxu0
      %v959 = vadd.f32 %v625, %v958
      %960 = vmatmul.f32.gmra.mxu0 %v454
      %v961 = vpop.f32.mrf.mxu0
      %v962 = vadd.f32 %v628, %v961
      %963 = vmatmul.f32.gmra.mxu0 %v457
      %v964 = vpop.f32.mrf.mxu0
      %v965 = vadd.f32 %v631, %v964
      %966 = vmatmul.f32.gmra.mxu0 %v460
      %v967 = vpop.f32.mrf.mxu0
      %v968 = vadd.f32 %v634, %v967
      %969 = vmatmul.f32.gmra.mxu0 %v463
      %v970 = vpop.f32.mrf.mxu0
      %v971 = vadd.f32 %v637, %v970
      %972 = vmatmul.f32.gmra.mxu0 %v466
      %v973 = vpop.f32.mrf.mxu0
      %v974 = vadd.f32 %v640, %v973
      %975 = vmatmul.f32.gmra.mxu0 %v469
      %v976 = vpop.f32.mrf.mxu0
      %v977 = vadd.f32 %v643, %v976
      %978 = vmatmul.f32.gmra.mxu0 %v472
      %v979 = vpop.f32.mrf.mxu0
      %v980 = vadd.f32 %v646, %v979
      %981 = vmatmul.f32.gmra.mxu0 %v475
      %v982 = vpop.f32.mrf.mxu0
      %v983 = vadd.f32 %v649, %v982
      %984 = vmatmul.f32.gmra.mxu0 %v478
      %v985 = vpop.f32.mrf.mxu0
      %v986 = vadd.f32 %v652, %v985
      %987 = vmatmul.f32.gmra.mxu0 %v481
      %v988 = vpop.f32.mrf.mxu0
      %v989 = vadd.f32 %v655, %v988
      %990 = vmatmul.f32.gmra.mxu0 %v484
      %v991 = vpop.f32.mrf.mxu0
      %v992 = vadd.f32 %v658, %v991
      %993 = vmatmul.f32.gmra.mxu0 %v487
      %v994 = vpop.f32.mrf.mxu0
      %v995 = vadd.f32 %v661, %v994
      %996 = vmatmul.f32.gmra.mxu0 %v490
      %v997 = vpop.f32.mrf.mxu0
      %v998 = vadd.f32 %v664, %v997
      %999 = vmatmul.f32.gmra.mxu0 %v493
      %v1000 = vpop.f32.mrf.mxu0
      %v1001 = vadd.f32 %v667, %v1000
      %1002 = vmatmul.f32.gmra.mxu0 %v496
      %v1003 = vpop.f32.mrf.mxu0
      %v1004 = vadd.f32 %v670, %v1003
      %1005 = vmatmul.f32.gmra.mxu0 %v499
      %v1006 = vpop.f32.mrf.mxu0
      %v1007 = vadd.f32 %v673, %v1006
      %1008 = vmatmul.f32.gmra.mxu0 %v502
      %v1009 = vpop.f32.mrf.mxu0
      %v1010 = vadd.f32 %v676, %v1009
      %1011 = vmatmul.f32.gmra.mxu0 %v505
      %v1012 = vpop.f32.mrf.mxu0
      %v1013 = vadd.f32 %v679, %v1012
      %1014 = vmatmul.f32.gmra.mxu0 %v508
      %v1015 = vpop.f32.mrf.mxu0
      %v1016 = vadd.f32 %v682, %v1015
      %1017 = vmatmul.f32.gmra.mxu0 %v511
      %v1018 = vpop.f32.mrf.mxu0
      %v1019 = vadd.f32 %v685, %v1018
      %1020 = vmatmul.f32.gmra.mxu0 %v514
      %v1021 = vpop.f32.mrf.mxu0
      %v1022 = vadd.f32 %v688, %v1021
      %1023 = vmatmul.f32.gmra.mxu0 %v517
      %v1024 = vpop.f32.mrf.mxu0
      %v1025 = vadd.f32 %v691, %v1024
      %1026 = vmatmul.f32.gmra.mxu0 %v520
      %v1027 = vpop.f32.mrf.mxu0
      %v1028 = vadd.f32 %v694, %v1027
      %1029 = vmatmul.f32.gmra.mxu0 %v523
      %v1030 = vpop.f32.mrf.mxu0
      %v1031 = vadd.f32 %v697, %v1030
      %1032 = vmatmul.f32.gmra.mxu0 %v526
      %v1033 = vpop.f32.mrf.mxu0
      %v1034 = vadd.f32 %v700, %v1033
      %1035 = vmatmul.f32.gmra.mxu0 %v529
      %v1036 = vpop.f32.mrf.mxu0
      %v1037 = vadd.f32 %v703, %v1036
      %1038 = vmatmul.f32.gmra.mxu0 %v532
      %v1039 = vpop.f32.mrf.mxu0
      %v1040 = vadd.f32 %v706, %v1039
      %1041 = vmatmul.f32.gmra.mxu0 %v535
      %v1042 = vpop.f32.mrf.mxu0
      %v1043 = vadd.f32 %v709, %v1042
      %1044 = vmatmul.f32.gmra.mxu0 %v538
      %v1045 = vpop.f32.mrf.mxu0
      %v1046 = vadd.f32 %v712, %v1045
      %1047 = vdwg.mxu0
      %1048 = vmatpush.msra.mxu0 0.0
      %1049 = vmatpush.msra.mxu0 0.0
      %1050 = vmatpush.msra.mxu0 0.0
      %1051 = vmatpush.msra.mxu0 0.0
      %1052 = vmatpush.msra.mxu0 0.0
      %1053 = vmatpush.msra.mxu0 0.0
      %1054 = vmatpush.msra.mxu0 0.0
      %1055 = vmatpush.msra.mxu0 0.0
      %1056 = vmatpush.msra.mxu0 0.0
      %1057 = vmatpush.msra.mxu0 0.0
      %1058 = vmatpush.msra.mxu0 0.0
      %1059 = vmatpush.msra.mxu0 0.0
      %1060 = vmatpush.msra.mxu0 %v885
      %1061 = vmatpush.msra.mxu0 %v387
      %1062 = vmatpush.msra.mxu0 %v385
      %1063 = vmatpush.msra.mxu0 %v383
      %1064 = vmatmul.f32.gmra.mxu0 %v876
      %v1065 = vpop.f32.mrf.mxu0
      %v1066 = vadd.f32 %v732, %v1065
      %1067 = vmatmul.f32.gmra.mxu0 %v879
      %v1068 = vpop.f32.mrf.mxu0
      %v1069 = vadd.f32 %v735, %v1068
      %1070 = vmatmul.f32.gmra.mxu0 %v403
      %v1071 = vpop.f32.mrf.mxu0
      %v1072 = vadd.f32 %v738, %v1071
      %1073 = vmatmul.f32.gmra.mxu0 %v406
      %v1074 = vpop.f32.mrf.mxu0
      %v1075 = vadd.f32 %v741, %v1074
      %1076 = vmatmul.f32.gmra.mxu0 %v409
      %v1077 = vpop.f32.mrf.mxu0
      %v1078 = vadd.f32 %v744, %v1077
      %1079 = vmatmul.f32.gmra.mxu0 %v412
      %v1080 = vpop.f32.mrf.mxu0
      %v1081 = vadd.f32 %v747, %v1080
      %1082 = vmatmul.f32.gmra.mxu0 %v415
      %v1083 = vpop.f32.mrf.mxu0
      %v1084 = vadd.f32 %v750, %v1083
      %1085 = vmatmul.f32.gmra.mxu0 %v418
      %v1086 = vpop.f32.mrf.mxu0
      %v1087 = vadd.f32 %v753, %v1086
      %1088 = vmatmul.f32.gmra.mxu0 %v421
      %v1089 = vpop.f32.mrf.mxu0
      %v1090 = vadd.f32 %v756, %v1089
      %1091 = vmatmul.f32.gmra.mxu0 %v424
      %v1092 = vpop.f32.mrf.mxu0
      %v1093 = vadd.f32 %v759, %v1092
      %1094 = vmatmul.f32.gmra.mxu0 %v427
      %v1095 = vpop.f32.mrf.mxu0
      %v1096 = vadd.f32 %v762, %v1095
      %1097 = vmatmul.f32.gmra.mxu0 %v430
      %v1098 = vpop.f32.mrf.mxu0
      %v1099 = vadd.f32 %v765, %v1098
      %1100 = vmatmul.f32.gmra.mxu0 %v433
      %v1101 = vpop.f32.mrf.mxu0
      %v1102 = vadd.f32 %v768, %v1101
      %1103 = vmatmul.f32.gmra.mxu0 %v436
      %v1104 = vpop.f32.mrf.mxu0
      %v1105 = vadd.f32 %v771, %v1104
      %1106 = vmatmul.f32.gmra.mxu0 %v439
      %v1107 = vpop.f32.mrf.mxu0
      %v1108 = vadd.f32 %v774, %v1107
      %1109 = vmatmul.f32.gmra.mxu0 %v442
      %v1110 = vpop.f32.mrf.mxu0
      %v1111 = vadd.f32 %v777, %v1110
      %1112 = vmatmul.f32.gmra.mxu0 %v445
      %v1113 = vpop.f32.mrf.mxu0
      %v1114 = vadd.f32 %v780, %v1113
      %1115 = vmatmul.f32.gmra.mxu0 %v448
      %v1116 = vpop.f32.mrf.mxu0
      %v1117 = vadd.f32 %v783, %v1116
      %1118 = vmatmul.f32.gmra.mxu0 %v451
      %v1119 = vpop.f32.mrf.mxu0
      %v1120 = vadd.f32 %v786, %v1119
      %1121 = vmatmul.f32.gmra.mxu0 %v454
      %v1122 = vpop.f32.mrf.mxu0
      %v1123 = vadd.f32 %v789, %v1122
      %1124 = vmatmul.f32.gmra.mxu0 %v457
      %v1125 = vpop.f32.mrf.mxu0
      %v1126 = vadd.f32 %v792, %v1125
      %1127 = vmatmul.f32.gmra.mxu0 %v460
      %v1128 = vpop.f32.mrf.mxu0
      %v1129 = vadd.f32 %v795, %v1128
      %1130 = vmatmul.f32.gmra.mxu0 %v463
      %v1131 = vpop.f32.mrf.mxu0
      %v1132 = vadd.f32 %v798, %v1131
      %1133 = vmatmul.f32.gmra.mxu0 %v466
      %v1134 = vpop.f32.mrf.mxu0
      %v1135 = vadd.f32 %v801, %v1134
      %1136 = vmatmul.f32.gmra.mxu0 %v469
      %v1137 = vpop.f32.mrf.mxu0
      %v1138 = vadd.f32 %v804, %v1137
      %1139 = vmatmul.f32.gmra.mxu0 %v472
      %v1140 = vpop.f32.mrf.mxu0
      %v1141 = vadd.f32 %v807, %v1140
      %1142 = vmatmul.f32.gmra.mxu0 %v475
      %v1143 = vpop.f32.mrf.mxu0
      %v1144 = vadd.f32 %v810, %v1143
      %1145 = vmatmul.f32.gmra.mxu0 %v478
      %v1146 = vpop.f32.mrf.mxu0
      %v1147 = vadd.f32 %v813, %v1146
      %1148 = vmatmul.f32.gmra.mxu0 %v481
      %v1149 = vpop.f32.mrf.mxu0
      %v1150 = vadd.f32 %v816, %v1149
      %1151 = vmatmul.f32.gmra.mxu0 %v484
      %v1152 = vpop.f32.mrf.mxu0
      %v1153 = vadd.f32 %v819, %v1152
      %1154 = vmatmul.f32.gmra.mxu0 %v487
      %v1155 = vpop.f32.mrf.mxu0
      %v1156 = vadd.f32 %v822, %v1155
      %1157 = vmatmul.f32.gmra.mxu0 %v490
      %v1158 = vpop.f32.mrf.mxu0
      %v1159 = vadd.f32 %v825, %v1158
      %1160 = vmatmul.f32.gmra.mxu0 %v493
      %v1161 = vpop.f32.mrf.mxu0
      %v1162 = vadd.f32 %v828, %v1161
      %1163 = vmatmul.f32.gmra.mxu0 %v496
      %v1164 = vpop.f32.mrf.mxu0
      %v1165 = vadd.f32 %v831, %v1164
      %1166 = vmatmul.f32.gmra.mxu0 %v499
      %v1167 = vpop.f32.mrf.mxu0
      %v1168 = vadd.f32 %v834, %v1167
      %1169 = vmatmul.f32.gmra.mxu0 %v502
      %v1170 = vpop.f32.mrf.mxu0
      %v1171 = vadd.f32 %v837, %v1170
      %1172 = vmatmul.f32.gmra.mxu0 %v505
      %v1173 = vpop.f32.mrf.mxu0
      %v1174 = vadd.f32 %v840, %v1173
      %1175 = vmatmul.f32.gmra.mxu0 %v508
      %v1176 = vpop.f32.mrf.mxu0
      %v1177 = vadd.f32 %v843, %v1176
      %1178 = vmatmul.f32.gmra.mxu0 %v511
      %v1179 = vpop.f32.mrf.mxu0
      %v1180 = vadd.f32 %v846, %v1179
      %1181 = vmatmul.f32.gmra.mxu0 %v514
      %v1182 = vpop.f32.mrf.mxu0
      %v1183 = vadd.f32 %v849, %v1182
      %1184 = vmatmul.f32.gmra.mxu0 %v517
      %v1185 = vpop.f32.mrf.mxu0
      %v1186 = vadd.f32 %v852, %v1185
      %1187 = vmatmul.f32.gmra.mxu0 %v520
      %v1188 = vpop.f32.mrf.mxu0
      %v1189 = vadd.f32 %v855, %v1188
      %1190 = vmatmul.f32.gmra.mxu0 %v523
      %v1191 = vpop.f32.mrf.mxu0
      %v1192 = vadd.f32 %v858, %v1191
      %1193 = vmatmul.f32.gmra.mxu0 %v526
      %v1194 = vpop.f32.mrf.mxu0
      %v1195 = vadd.f32 %v861, %v1194
      %1196 = vmatmul.f32.gmra.mxu0 %v529
      %v1197 = vpop.f32.mrf.mxu0
      %v1198 = vadd.f32 %v864, %v1197
      %1199 = vmatmul.f32.gmra.mxu0 %v532
      %v1200 = vpop.f32.mrf.mxu0
      %v1201 = vadd.f32 %v867, %v1200
      %1202 = vmatmul.f32.gmra.mxu0 %v535
      %v1203 = vpop.f32.mrf.mxu0
      %v1204 = vadd.f32 %v870, %v1203
      %1205 = vmatmul.f32.gmra.mxu0 %v538
      %v1206 = vpop.f32.mrf.mxu0
      %v1207 = vadd.f32 %v873, %v1206
      %1208 = vdwg.mxu0
      %v1209 = vld [vmem:[%s327 + $0x20] sm:$0xff]
      %v1210 = vld [vmem:[%s327 + $0x28] sm:$0xff]
      %v1211 = vld [vmem:[%s327 + $0x30] sm:$0xff]
      %v1212 = vld [vmem:[%s327 + $0x38] sm:$0xff]
      %v1213 = vld [vmem:[%s327 + $0x40] sm:$0xff]
      %v1214 = vld [vmem:[%s327 + $0x48] sm:$0xff]
      %v1215 = vld [vmem:[%s327 + $0x50] sm:$0xff]
      %v1216 = vld [vmem:[%s327 + $0x58] sm:$0xff]
      %v1217 = vld [vmem:[%s327 + $0x60] sm:$0xff]
      %v1218 = vld [vmem:[%s327 + $0x68] sm:$0xff]
      %v1219 = vld [vmem:[%s327 + $0x70] sm:$0xff]
      %v1220 = vld [vmem:[%s327 + $0x78] sm:$0xff]
      %v1221 = vld [vmem:[%s327 + $0x80] sm:$0xff]
      %v1222 = vld [vmem:[%s327 + $0x88] sm:$0xff]
      %v1223 = vld [vmem:[%s327 + $0x90] sm:$0xff]
      %v1224 = vld [vmem:[%s327 + $0x98] sm:$0xff]
      %v1225 = vld [vmem:[%s327 + $0xa0] sm:$0xff]
      %v1226 = vld [vmem:[%s327 + $0xa8] sm:$0xff]
      %v1227 = vld [vmem:[%s327 + $0xb0] sm:$0xff]
      %v1228 = vld [vmem:[%s327 + $0xb8] sm:$0xff]
      %v1229 = vld [vmem:[%s327 + $0xc0] sm:$0xff]
      %v1230 = vld [vmem:[%s327 + $0xc8] sm:$0xff]
      %v1231 = vld [vmem:[%s327 + $0xd0] sm:$0xff]
      %v1232 = vld [vmem:[%s327 + $0xd8] sm:$0xff]
      %v1233 = vld [vmem:[%s327 + $0xe0] sm:$0xff]
      %v1234 = vld [vmem:[%s327 + $0xe8] sm:$0xff]
      %v1235 = vld [vmem:[%s327 + $0xf0] sm:$0xff]
      %v1236 = vld [vmem:[%s327 + $0xf8] sm:$0xff]
      %v1237 = vld [vmem:[%s327 + $0x100] sm:$0xff]
      %v1238 = vld [vmem:[%s327 + $0x108] sm:$0xff]
      %v1239 = vld [vmem:[%s327 + $0x110] sm:$0xff]
      %v1240 = vld [vmem:[%s327 + $0x118] sm:$0xff]
      %v1241 = vld [vmem:[%s327 + $0x120] sm:$0xff]
      %v1242 = vld [vmem:[%s327 + $0x128] sm:$0xff]
      %v1243 = vld [vmem:[%s327 + $0x130] sm:$0xff]
      %v1244 = vld [vmem:[%s327 + $0x138] sm:$0xff]
      %v1245 = vld [vmem:[%s327 + $0x140] sm:$0xff]
      %v1246 = vld [vmem:[%s327 + $0x148] sm:$0xff]
      %v1247 = vld [vmem:[%s327 + $0x150] sm:$0xff]
      %v1248 = vld [vmem:[%s327 + $0x158] sm:$0xff]
      %v1249 = vld [vmem:[%s327 + $0x160] sm:$0xff]
      %v1250 = vld [vmem:[%s327 + $0x168] sm:$0xff]
      %v1251 = vld [vmem:[%s327 + $0x170] sm:$0xff]
      %v1252 = vld [vmem:[%s327 + $0x178] sm:$0xff]
      %v1253 = vld [vmem:[%s327 + $0x180] sm:$0xff]
      %v1254 = vld [vmem:[%s327 + $0x188] sm:$0xff]
      %v1255 = vld [vmem:[%s327 + $0x190] sm:$0xff]
      %v1256 = vld [vmem:[%s327 + $0x198] sm:$0xff]
      %s1257 = scalar_lea.vmem %s1, 128
      %v1258 = vld [vmem:[%s1257] sm:$0xff]
      %v1259 = vld [vmem:[%s1257 + $0x8] sm:$0xff]
      %v1260 = vld [vmem:[%s1257 + $0x10] sm:$0xff]
      %v1261 = vld [vmem:[%s1257 + $0x18] sm:$0xff]
      %v1262 = vld [vmem:[%s1257 + $0x20] sm:$0xff]
      %v1263 = vld [vmem:[%s1257 + $0x28] sm:$0xff]
      %v1264 = vld [vmem:[%s1257 + $0x30] sm:$0xf]
      %v1265 = vld [vmem:[%s1257 + $0x38] sm:$0xf]
      %v1267 = vsel %vm401, %v1209, 0
      %v1270 = vsel %vm401, %v1210, 0
      %v1273 = vsel %vm401, %v1211, 0
      %v1276 = vsel %vm401, %v1212, 0
      %v1279 = vsel %vm401, %v1213, 0
      %v1282 = vsel %vm401, %v1214, 0
      %v1285 = vsel %vm401, %v1215, 0
      %v1288 = vsel %vm401, %v1216, 0
      %v1291 = vsel %vm401, %v1217, 0
      %v1294 = vsel %vm401, %v1218, 0
      %v1297 = vsel %vm401, %v1219, 0
      %v1300 = vsel %vm401, %v1220, 0
      %v1303 = vsel %vm401, %v1221, 0
      %v1306 = vsel %vm401, %v1222, 0
      %v1309 = vsel %vm401, %v1223, 0
      %v1312 = vsel %vm401, %v1224, 0
      %v1315 = vsel %vm401, %v1225, 0
      %v1318 = vsel %vm401, %v1226, 0
      %v1321 = vsel %vm401, %v1227, 0
      %v1324 = vsel %vm401, %v1228, 0
      %v1327 = vsel %vm401, %v1229, 0
      %v1330 = vsel %vm401, %v1230, 0
      %v1333 = vsel %vm401, %v1231, 0
      %v1336 = vsel %vm401, %v1232, 0
      %v1339 = vsel %vm401, %v1233, 0
      %v1342 = vsel %vm401, %v1234, 0
      %v1345 = vsel %vm401, %v1235, 0
      %v1348 = vsel %vm401, %v1236, 0
      %v1351 = vsel %vm401, %v1237, 0
      %v1354 = vsel %vm401, %v1238, 0
      %v1357 = vsel %vm401, %v1239, 0
      %v1360 = vsel %vm401, %v1240, 0
      %v1363 = vsel %vm401, %v1241, 0
      %v1366 = vsel %vm401, %v1242, 0
      %v1369 = vsel %vm401, %v1243, 0
      %v1372 = vsel %vm401, %v1244, 0
      %v1375 = vsel %vm401, %v1245, 0
      %v1378 = vsel %vm401, %v1246, 0
      %v1381 = vsel %vm401, %v1247, 0
      %v1384 = vsel %vm401, %v1248, 0
      %v1387 = vsel %vm401, %v1249, 0
      %v1390 = vsel %vm401, %v1250, 0
      %v1393 = vsel %vm401, %v1251, 0
      %v1396 = vsel %vm401, %v1252, 0
      %v1399 = vsel %vm401, %v1253, 0
      %v1402 = vsel %vm401, %v1254, 0
      %v1405 = vsel %vm401, %v1255, 0
      %v1408 = vsel %vm401, %v1256, 0
      %v1411 = vsel %vm546, %v1264, 0
      %v1414 = vsel %vm546, %v1265, 0
      %1416 = vmatpush.msra.mxu0 0.0
      %1417 = vmatpush.msra.mxu0 0.0
      %1418 = vmatpush.msra.mxu0 0.0
      %1419 = vmatpush.msra.mxu0 0.0
      %1420 = vmatpush.msra.mxu0 0.0
      %1421 = vmatpush.msra.mxu0 0.0
      %1422 = vmatpush.msra.mxu0 0.0
      %1423 = vmatpush.msra.mxu0 0.0
      %1424 = vmatpush.msra.mxu0 0.0
      %1425 = vmatpush.msra.mxu0 0.0
      %1426 = vmatpush.msra.mxu0 0.0
      %1427 = vmatpush.msra.mxu0 0.0
      %1428 = vmatpush.msra.mxu0 %v1411
      %1429 = vmatpush.msra.mxu0 %v1262
      %1430 = vmatpush.msra.mxu0 %v1260
      %1431 = vmatpush.msra.mxu0 %v1258
      %1432 = vmatmul.f32.gmra.mxu0 %v1267
      %v1433 = vpop.f32.mrf.mxu0
      %v1434 = vadd.f32 0.0, %v1433
      %1435 = vmatmul.f32.gmra.mxu0 %v1270
      %v1436 = vpop.f32.mrf.mxu0
      %v1437 = vadd.f32 0.0, %v1436
      %1438 = vmatmul.f32.gmra.mxu0 %v1273
      %v1439 = vpop.f32.mrf.mxu0
      %v1440 = vadd.f32 0.0, %v1439
      %1441 = vmatmul.f32.gmra.mxu0 %v1276
      %v1442 = vpop.f32.mrf.mxu0
      %v1443 = vadd.f32 0.0, %v1442
      %1444 = vmatmul.f32.gmra.mxu0 %v1279
      %v1445 = vpop.f32.mrf.mxu0
      %v1446 = vadd.f32 0.0, %v1445
      %1447 = vmatmul.f32.gmra.mxu0 %v1282
      %v1448 = vpop.f32.mrf.mxu0
      %v1449 = vadd.f32 0.0, %v1448
      %1450 = vmatmul.f32.gmra.mxu0 %v1285
      %v1451 = vpop.f32.mrf.mxu0
      %v1452 = vadd.f32 0.0, %v1451
      %1453 = vmatmul.f32.gmra.mxu0 %v1288
      %v1454 = vpop.f32.mrf.mxu0
      %v1455 = vadd.f32 0.0, %v1454
      %1456 = vmatmul.f32.gmra.mxu0 %v1291
      %v1457 = vpop.f32.mrf.mxu0
      %v1458 = vadd.f32 0.0, %v1457
      %1459 = vmatmul.f32.gmra.mxu0 %v1294
      %v1460 = vpop.f32.mrf.mxu0
      %v1461 = vadd.f32 0.0, %v1460
      %1462 = vmatmul.f32.gmra.mxu0 %v1297
      %v1463 = vpop.f32.mrf.mxu0
      %v1464 = vadd.f32 0.0, %v1463
      %1465 = vmatmul.f32.gmra.mxu0 %v1300
      %v1466 = vpop.f32.mrf.mxu0
      %v1467 = vadd.f32 0.0, %v1466
      %1468 = vmatmul.f32.gmra.mxu0 %v1303
      %v1469 = vpop.f32.mrf.mxu0
      %v1470 = vadd.f32 0.0, %v1469
      %1471 = vmatmul.f32.gmra.mxu0 %v1306
      %v1472 = vpop.f32.mrf.mxu0
      %v1473 = vadd.f32 0.0, %v1472
      %1474 = vmatmul.f32.gmra.mxu0 %v1309
      %v1475 = vpop.f32.mrf.mxu0
      %v1476 = vadd.f32 0.0, %v1475
      %1477 = vmatmul.f32.gmra.mxu0 %v1312
      %v1478 = vpop.f32.mrf.mxu0
      %v1479 = vadd.f32 0.0, %v1478
      %1480 = vmatmul.f32.gmra.mxu0 %v1315
      %v1481 = vpop.f32.mrf.mxu0
      %v1482 = vadd.f32 0.0, %v1481
      %1483 = vmatmul.f32.gmra.mxu0 %v1318
      %v1484 = vpop.f32.mrf.mxu0
      %v1485 = vadd.f32 0.0, %v1484
      %1486 = vmatmul.f32.gmra.mxu0 %v1321
      %v1487 = vpop.f32.mrf.mxu0
      %v1488 = vadd.f32 0.0, %v1487
      %1489 = vmatmul.f32.gmra.mxu0 %v1324
      %v1490 = vpop.f32.mrf.mxu0
      %v1491 = vadd.f32 0.0, %v1490
      %1492 = vmatmul.f32.gmra.mxu0 %v1327
      %v1493 = vpop.f32.mrf.mxu0
      %v1494 = vadd.f32 0.0, %v1493
      %1495 = vmatmul.f32.gmra.mxu0 %v1330
      %v1496 = vpop.f32.mrf.mxu0
      %v1497 = vadd.f32 0.0, %v1496
      %1498 = vmatmul.f32.gmra.mxu0 %v1333
      %v1499 = vpop.f32.mrf.mxu0
      %v1500 = vadd.f32 0.0, %v1499
      %1501 = vmatmul.f32.gmra.mxu0 %v1336
      %v1502 = vpop.f32.mrf.mxu0
      %v1503 = vadd.f32 0.0, %v1502
      %1504 = vmatmul.f32.gmra.mxu0 %v1339
      %v1505 = vpop.f32.mrf.mxu0
      %v1506 = vadd.f32 0.0, %v1505
      %1507 = vmatmul.f32.gmra.mxu0 %v1342
      %v1508 = vpop.f32.mrf.mxu0
      %v1509 = vadd.f32 0.0, %v1508
      %1510 = vmatmul.f32.gmra.mxu0 %v1345
      %v1511 = vpop.f32.mrf.mxu0
      %v1512 = vadd.f32 0.0, %v1511
      %1513 = vmatmul.f32.gmra.mxu0 %v1348
      %v1514 = vpop.f32.mrf.mxu0
      %v1515 = vadd.f32 0.0, %v1514
      %1516 = vmatmul.f32.gmra.mxu0 %v1351
      %v1517 = vpop.f32.mrf.mxu0
      %v1518 = vadd.f32 0.0, %v1517
      %1519 = vmatmul.f32.gmra.mxu0 %v1354
      %v1520 = vpop.f32.mrf.mxu0
      %v1521 = vadd.f32 0.0, %v1520
      %1522 = vmatmul.f32.gmra.mxu0 %v1357
      %v1523 = vpop.f32.mrf.mxu0
      %v1524 = vadd.f32 0.0, %v1523
      %1525 = vmatmul.f32.gmra.mxu0 %v1360
      %v1526 = vpop.f32.mrf.mxu0
      %v1527 = vadd.f32 0.0, %v1526
      %1528 = vmatmul.f32.gmra.mxu0 %v1363
      %v1529 = vpop.f32.mrf.mxu0
      %v1530 = vadd.f32 0.0, %v1529
      %1531 = vmatmul.f32.gmra.mxu0 %v1366
      %v1532 = vpop.f32.mrf.mxu0
      %v1533 = vadd.f32 0.0, %v1532
      %1534 = vmatmul.f32.gmra.mxu0 %v1369
      %v1535 = vpop.f32.mrf.mxu0
      %v1536 = vadd.f32 0.0, %v1535
      %1537 = vmatmul.f32.gmra.mxu0 %v1372
      %v1538 = vpop.f32.mrf.mxu0
      %v1539 = vadd.f32 0.0, %v1538
      %1540 = vmatmul.f32.gmra.mxu0 %v1375
      %v1541 = vpop.f32.mrf.mxu0
      %v1542 = vadd.f32 0.0, %v1541
      %1543 = vmatmul.f32.gmra.mxu0 %v1378
      %v1544 = vpop.f32.mrf.mxu0
      %v1545 = vadd.f32 0.0, %v1544
      %1546 = vmatmul.f32.gmra.mxu0 %v1381
      %v1547 = vpop.f32.mrf.mxu0
      %v1548 = vadd.f32 0.0, %v1547
      %1549 = vmatmul.f32.gmra.mxu0 %v1384
      %v1550 = vpop.f32.mrf.mxu0
      %v1551 = vadd.f32 0.0, %v1550
      %1552 = vmatmul.f32.gmra.mxu0 %v1387
      %v1553 = vpop.f32.mrf.mxu0
      %v1554 = vadd.f32 0.0, %v1553
      %1555 = vmatmul.f32.gmra.mxu0 %v1390
      %v1556 = vpop.f32.mrf.mxu0
      %v1557 = vadd.f32 0.0, %v1556
      %1558 = vmatmul.f32.gmra.mxu0 %v1393
      %v1559 = vpop.f32.mrf.mxu0
      %v1560 = vadd.f32 0.0, %v1559
      %1561 = vmatmul.f32.gmra.mxu0 %v1396
      %v1562 = vpop.f32.mrf.mxu0
      %v1563 = vadd.f32 0.0, %v1562
      %1564 = vmatmul.f32.gmra.mxu0 %v1399
      %v1565 = vpop.f32.mrf.mxu0
      %v1566 = vadd.f32 0.0, %v1565
      %1567 = vmatmul.f32.gmra.mxu0 %v1402
      %v1568 = vpop.f32.mrf.mxu0
      %v1569 = vadd.f32 0.0, %v1568
      %1570 = vmatmul.f32.gmra.mxu0 %v1405
      %v1571 = vpop.f32.mrf.mxu0
      %v1572 = vadd.f32 0.0, %v1571
      %1573 = vmatmul.f32.gmra.mxu0 %v1408
      %v1574 = vpop.f32.mrf.mxu0
      %v1575 = vadd.f32 0.0, %v1574
      %1576 = vdwg.mxu0
      %1577 = vmatpush.msra.mxu0 0.0
      %1578 = vmatpush.msra.mxu0 0.0
      %1579 = vmatpush.msra.mxu0 0.0
      %1580 = vmatpush.msra.mxu0 0.0
      %1581 = vmatpush.msra.mxu0 0.0
      %1582 = vmatpush.msra.mxu0 0.0
      %1583 = vmatpush.msra.mxu0 0.0
      %1584 = vmatpush.msra.mxu0 0.0
      %1585 = vmatpush.msra.mxu0 0.0
      %1586 = vmatpush.msra.mxu0 0.0
      %1587 = vmatpush.msra.mxu0 0.0
      %1588 = vmatpush.msra.mxu0 0.0
      %1589 = vmatpush.msra.mxu0 %v1414
      %1590 = vmatpush.msra.mxu0 %v1263
      %1591 = vmatpush.msra.mxu0 %v1261
      %1592 = vmatpush.msra.mxu0 %v1259
      %1593 = vmatmul.f32.gmra.mxu0 %v1267
      %v1594 = vpop.f32.mrf.mxu0
      %v1595 = vadd.f32 0.0, %v1594
      %1596 = vmatmul.f32.gmra.mxu0 %v1270
      %v1597 = vpop.f32.mrf.mxu0
      %v1598 = vadd.f32 0.0, %v1597
      %1599 = vmatmul.f32.gmra.mxu0 %v1273
      %v1600 = vpop.f32.mrf.mxu0
      %v1601 = vadd.f32 0.0, %v1600
      %1602 = vmatmul.f32.gmra.mxu0 %v1276
      %v1603 = vpop.f32.mrf.mxu0
      %v1604 = vadd.f32 0.0, %v1603
      %1605 = vmatmul.f32.gmra.mxu0 %v1279
      %v1606 = vpop.f32.mrf.mxu0
      %v1607 = vadd.f32 0.0, %v1606
      %1608 = vmatmul.f32.gmra.mxu0 %v1282
      %v1609 = vpop.f32.mrf.mxu0
      %v1610 = vadd.f32 0.0, %v1609
      %1611 = vmatmul.f32.gmra.mxu0 %v1285
      %v1612 = vpop.f32.mrf.mxu0
      %v1613 = vadd.f32 0.0, %v1612
      %1614 = vmatmul.f32.gmra.mxu0 %v1288
      %v1615 = vpop.f32.mrf.mxu0
      %v1616 = vadd.f32 0.0, %v1615
      %1617 = vmatmul.f32.gmra.mxu0 %v1291
      %v1618 = vpop.f32.mrf.mxu0
      %v1619 = vadd.f32 0.0, %v1618
      %1620 = vmatmul.f32.gmra.mxu0 %v1294
      %v1621 = vpop.f32.mrf.mxu0
      %v1622 = vadd.f32 0.0, %v1621
      %1623 = vmatmul.f32.gmra.mxu0 %v1297
      %v1624 = vpop.f32.mrf.mxu0
      %v1625 = vadd.f32 0.0, %v1624
      %1626 = vmatmul.f32.gmra.mxu0 %v1300
      %v1627 = vpop.f32.mrf.mxu0
      %v1628 = vadd.f32 0.0, %v1627
      %1629 = vmatmul.f32.gmra.mxu0 %v1303
      %v1630 = vpop.f32.mrf.mxu0
      %v1631 = vadd.f32 0.0, %v1630
      %1632 = vmatmul.f32.gmra.mxu0 %v1306
      %v1633 = vpop.f32.mrf.mxu0
      %v1634 = vadd.f32 0.0, %v1633
      %1635 = vmatmul.f32.gmra.mxu0 %v1309
      %v1636 = vpop.f32.mrf.mxu0
      %v1637 = vadd.f32 0.0, %v1636
      %1638 = vmatmul.f32.gmra.mxu0 %v1312
      %v1639 = vpop.f32.mrf.mxu0
      %v1640 = vadd.f32 0.0, %v1639
      %1641 = vmatmul.f32.gmra.mxu0 %v1315
      %v1642 = vpop.f32.mrf.mxu0
      %v1643 = vadd.f32 0.0, %v1642
      %1644 = vmatmul.f32.gmra.mxu0 %v1318
      %v1645 = vpop.f32.mrf.mxu0
      %v1646 = vadd.f32 0.0, %v1645
      %1647 = vmatmul.f32.gmra.mxu0 %v1321
      %v1648 = vpop.f32.mrf.mxu0
      %v1649 = vadd.f32 0.0, %v1648
      %1650 = vmatmul.f32.gmra.mxu0 %v1324
      %v1651 = vpop.f32.mrf.mxu0
      %v1652 = vadd.f32 0.0, %v1651
      %1653 = vmatmul.f32.gmra.mxu0 %v1327
      %v1654 = vpop.f32.mrf.mxu0
      %v1655 = vadd.f32 0.0, %v1654
      %1656 = vmatmul.f32.gmra.mxu0 %v1330
      %v1657 = vpop.f32.mrf.mxu0
      %v1658 = vadd.f32 0.0, %v1657
      %1659 = vmatmul.f32.gmra.mxu0 %v1333
      %v1660 = vpop.f32.mrf.mxu0
      %v1661 = vadd.f32 0.0, %v1660
      %1662 = vmatmul.f32.gmra.mxu0 %v1336
      %v1663 = vpop.f32.mrf.mxu0
      %v1664 = vadd.f32 0.0, %v1663
      %1665 = vmatmul.f32.gmra.mxu0 %v1339
      %v1666 = vpop.f32.mrf.mxu0
      %v1667 = vadd.f32 0.0, %v1666
      %1668 = vmatmul.f32.gmra.mxu0 %v1342
      %v1669 = vpop.f32.mrf.mxu0
      %v1670 = vadd.f32 0.0, %v1669
      %1671 = vmatmul.f32.gmra.mxu0 %v1345
      %v1672 = vpop.f32.mrf.mxu0
      %v1673 = vadd.f32 0.0, %v1672
      %1674 = vmatmul.f32.gmra.mxu0 %v1348
      %v1675 = vpop.f32.mrf.mxu0
      %v1676 = vadd.f32 0.0, %v1675
      %1677 = vmatmul.f32.gmra.mxu0 %v1351
      %v1678 = vpop.f32.mrf.mxu0
      %v1679 = vadd.f32 0.0, %v1678
      %1680 = vmatmul.f32.gmra.mxu0 %v1354
      %v1681 = vpop.f32.mrf.mxu0
      %v1682 = vadd.f32 0.0, %v1681
      %1683 = vmatmul.f32.gmra.mxu0 %v1357
      %v1684 = vpop.f32.mrf.mxu0
      %v1685 = vadd.f32 0.0, %v1684
      %1686 = vmatmul.f32.gmra.mxu0 %v1360
      %v1687 = vpop.f32.mrf.mxu0
      %v1688 = vadd.f32 0.0, %v1687
      %1689 = vmatmul.f32.gmra.mxu0 %v1363
      %v1690 = vpop.f32.mrf.mxu0
      %v1691 = vadd.f32 0.0, %v1690
      %1692 = vmatmul.f32.gmra.mxu0 %v1366
      %v1693 = vpop.f32.mrf.mxu0
      %v1694 = vadd.f32 0.0, %v1693
      %1695 = vmatmul.f32.gmra.mxu0 %v1369
      %v1696 = vpop.f32.mrf.mxu0
      %v1697 = vadd.f32 0.0, %v1696
      %1698 = vmatmul.f32.gmra.mxu0 %v1372
      %v1699 = vpop.f32.mrf.mxu0
      %v1700 = vadd.f32 0.0, %v1699
      %1701 = vmatmul.f32.gmra.mxu0 %v1375
      %v1702 = vpop.f32.mrf.mxu0
      %v1703 = vadd.f32 0.0, %v1702
      %1704 = vmatmul.f32.gmra.mxu0 %v1378
      %v1705 = vpop.f32.mrf.mxu0
      %v1706 = vadd.f32 0.0, %v1705
      %1707 = vmatmul.f32.gmra.mxu0 %v1381
      %v1708 = vpop.f32.mrf.mxu0
      %v1709 = vadd.f32 0.0, %v1708
      %1710 = vmatmul.f32.gmra.mxu0 %v1384
      %v1711 = vpop.f32.mrf.mxu0
      %v1712 = vadd.f32 0.0, %v1711
      %1713 = vmatmul.f32.gmra.mxu0 %v1387
      %v1714 = vpop.f32.mrf.mxu0
      %v1715 = vadd.f32 0.0, %v1714
      %1716 = vmatmul.f32.gmra.mxu0 %v1390
      %v1717 = vpop.f32.mrf.mxu0
      %v1718 = vadd.f32 0.0, %v1717
      %1719 = vmatmul.f32.gmra.mxu0 %v1393
      %v1720 = vpop.f32.mrf.mxu0
      %v1721 = vadd.f32 0.0, %v1720
      %1722 = vmatmul.f32.gmra.mxu0 %v1396
      %v1723 = vpop.f32.mrf.mxu0
      %v1724 = vadd.f32 0.0, %v1723
      %1725 = vmatmul.f32.gmra.mxu0 %v1399
      %v1726 = vpop.f32.mrf.mxu0
      %v1727 = vadd.f32 0.0, %v1726
      %1728 = vmatmul.f32.gmra.mxu0 %v1402
      %v1729 = vpop.f32.mrf.mxu0
      %v1730 = vadd.f32 0.0, %v1729
      %1731 = vmatmul.f32.gmra.mxu0 %v1405
      %v1732 = vpop.f32.mrf.mxu0
      %v1733 = vadd.f32 0.0, %v1732
      %1734 = vmatmul.f32.gmra.mxu0 %v1408
      %v1735 = vpop.f32.mrf.mxu0
      %v1736 = vadd.f32 0.0, %v1735
      %1737 = vdwg.mxu0
      %v1738 = vadd.f32 %v905, %v1434
      %v1739 = vadd.f32 %v1066, %v1595
      %v1740 = vadd.f32 %v908, %v1437
      %v1741 = vadd.f32 %v1069, %v1598
      %v1742 = vadd.f32 %v911, %v1440
      %v1743 = vadd.f32 %v1072, %v1601
      %v1744 = vadd.f32 %v914, %v1443
      %v1745 = vadd.f32 %v1075, %v1604
      %v1746 = vadd.f32 %v917, %v1446
      %v1747 = vadd.f32 %v1078, %v1607
      %v1748 = vadd.f32 %v920, %v1449
      %v1749 = vadd.f32 %v1081, %v1610
      %v1750 = vadd.f32 %v923, %v1452
      %v1751 = vadd.f32 %v1084, %v1613
      %v1752 = vadd.f32 %v926, %v1455
      %v1753 = vadd.f32 %v1087, %v1616
      %v1754 = vadd.f32 %v929, %v1458
      %v1755 = vadd.f32 %v1090, %v1619
      %v1756 = vadd.f32 %v932, %v1461
      %v1757 = vadd.f32 %v1093, %v1622
      %v1758 = vadd.f32 %v935, %v1464
      %v1759 = vadd.f32 %v1096, %v1625
      %v1760 = vadd.f32 %v938, %v1467
      %v1761 = vadd.f32 %v1099, %v1628
      %v1762 = vadd.f32 %v941, %v1470
      %v1763 = vadd.f32 %v1102, %v1631
      %v1764 = vadd.f32 %v944, %v1473
      %v1765 = vadd.f32 %v1105, %v1634
      %v1766 = vadd.f32 %v947, %v1476
      %v1767 = vadd.f32 %v1108, %v1637
      %v1768 = vadd.f32 %v950, %v1479
      %v1769 = vadd.f32 %v1111, %v1640
      %v1770 = vadd.f32 %v953, %v1482
      %v1771 = vadd.f32 %v1114, %v1643
      %v1772 = vadd.f32 %v956, %v1485
      %v1773 = vadd.f32 %v1117, %v1646
      %v1774 = vadd.f32 %v959, %v1488
      %v1775 = vadd.f32 %v1120, %v1649
      %v1776 = vadd.f32 %v962, %v1491
      %v1777 = vadd.f32 %v1123, %v1652
      %v1778 = vadd.f32 %v965, %v1494
      %v1779 = vadd.f32 %v1126, %v1655
      %v1780 = vadd.f32 %v968, %v1497
      %v1781 = vadd.f32 %v1129, %v1658
      %v1782 = vadd.f32 %v971, %v1500
      %v1783 = vadd.f32 %v1132, %v1661
      %v1784 = vadd.f32 %v974, %v1503
      %v1785 = vadd.f32 %v1135, %v1664
      %v1786 = vadd.f32 %v977, %v1506
      %v1787 = vadd.f32 %v1138, %v1667
      %v1788 = vadd.f32 %v980, %v1509
      %v1789 = vadd.f32 %v1141, %v1670
      %v1790 = vadd.f32 %v983, %v1512
      %v1791 = vadd.f32 %v1144, %v1673
      %v1792 = vadd.f32 %v986, %v1515
      %v1793 = vadd.f32 %v1147, %v1676
      %v1794 = vadd.f32 %v989, %v1518
      %v1795 = vadd.f32 %v1150, %v1679
      %v1796 = vadd.f32 %v992, %v1521
      %v1797 = vadd.f32 %v1153, %v1682
      %v1798 = vadd.f32 %v995, %v1524
      %v1799 = vadd.f32 %v1156, %v1685
      %v1800 = vadd.f32 %v998, %v1527
      %v1801 = vadd.f32 %v1159, %v1688
      %v1802 = vadd.f32 %v1001, %v1530
      %v1803 = vadd.f32 %v1162, %v1691
      %v1804 = vadd.f32 %v1004, %v1533
      %v1805 = vadd.f32 %v1165, %v1694
      %v1806 = vadd.f32 %v1007, %v1536
      %v1807 = vadd.f32 %v1168, %v1697
      %v1808 = vadd.f32 %v1010, %v1539
      %v1809 = vadd.f32 %v1171, %v1700
      %v1810 = vadd.f32 %v1013, %v1542
      %v1811 = vadd.f32 %v1174, %v1703
      %v1812 = vadd.f32 %v1016, %v1545
      %v1813 = vadd.f32 %v1177, %v1706
      %v1814 = vadd.f32 %v1019, %v1548
      %v1815 = vadd.f32 %v1180, %v1709
      %v1816 = vadd.f32 %v1022, %v1551
      %v1817 = vadd.f32 %v1183, %v1712
      %v1818 = vadd.f32 %v1025, %v1554
      %v1819 = vadd.f32 %v1186, %v1715
      %v1820 = vadd.f32 %v1028, %v1557
      %v1821 = vadd.f32 %v1189, %v1718
      %v1822 = vadd.f32 %v1031, %v1560
      %v1823 = vadd.f32 %v1192, %v1721
      %v1824 = vadd.f32 %v1034, %v1563
      %v1825 = vadd.f32 %v1195, %v1724
      %v1826 = vadd.f32 %v1037, %v1566
      %v1827 = vadd.f32 %v1198, %v1727
      %v1828 = vadd.f32 %v1040, %v1569
      %v1829 = vadd.f32 %v1201, %v1730
      %v1830 = vadd.f32 %v1043, %v1572
      %v1831 = vadd.f32 %v1204, %v1733
      %v1832 = vadd.f32 %v1046, %v1575
      %v1833 = vadd.f32 %v1207, %v1736
      %v1834 = vld [vmem:[%s327 + $0x30] sm:$0xff]
      %v1835 = vld [vmem:[%s327 + $0x38] sm:$0xff]
      %v1836 = vld [vmem:[%s327 + $0x40] sm:$0xff]
      %v1837 = vld [vmem:[%s327 + $0x48] sm:$0xff]
      %v1838 = vld [vmem:[%s327 + $0x50] sm:$0xff]
      %v1839 = vld [vmem:[%s327 + $0x58] sm:$0xff]
      %v1840 = vld [vmem:[%s327 + $0x60] sm:$0xff]
      %v1841 = vld [vmem:[%s327 + $0x68] sm:$0xff]
      %v1842 = vld [vmem:[%s327 + $0x70] sm:$0xff]
      %v1843 = vld [vmem:[%s327 + $0x78] sm:$0xff]
      %v1844 = vld [vmem:[%s327 + $0x80] sm:$0xff]
      %v1845 = vld [vmem:[%s327 + $0x88] sm:$0xff]
      %v1846 = vld [vmem:[%s327 + $0x90] sm:$0xff]
      %v1847 = vld [vmem:[%s327 + $0x98] sm:$0xff]
      %v1848 = vld [vmem:[%s327 + $0xa0] sm:$0xff]
      %v1849 = vld [vmem:[%s327 + $0xa8] sm:$0xff]
      %v1850 = vld [vmem:[%s327 + $0xb0] sm:$0xff]
      %v1851 = vld [vmem:[%s327 + $0xb8] sm:$0xff]
      %v1852 = vld [vmem:[%s327 + $0xc0] sm:$0xff]
      %v1853 = vld [vmem:[%s327 + $0xc8] sm:$0xff]
      %v1854 = vld [vmem:[%s327 + $0xd0] sm:$0xff]
      %v1855 = vld [vmem:[%s327 + $0xd8] sm:$0xff]
      %v1856 = vld [vmem:[%s327 + $0xe0] sm:$0xff]
      %v1857 = vld [vmem:[%s327 + $0xe8] sm:$0xff]
      %v1858 = vld [vmem:[%s327 + $0xf0] sm:$0xff]
      %v1859 = vld [vmem:[%s327 + $0xf8] sm:$0xff]
      %v1860 = vld [vmem:[%s327 + $0x100] sm:$0xff]
      %v1861 = vld [vmem:[%s327 + $0x108] sm:$0xff]
      %v1862 = vld [vmem:[%s327 + $0x110] sm:$0xff]
      %v1863 = vld [vmem:[%s327 + $0x118] sm:$0xff]
      %v1864 = vld [vmem:[%s327 + $0x120] sm:$0xff]
      %v1865 = vld [vmem:[%s327 + $0x128] sm:$0xff]
      %v1866 = vld [vmem:[%s327 + $0x130] sm:$0xff]
      %v1867 = vld [vmem:[%s327 + $0x138] sm:$0xff]
      %v1868 = vld [vmem:[%s327 + $0x140] sm:$0xff]
      %v1869 = vld [vmem:[%s327 + $0x148] sm:$0xff]
      %v1870 = vld [vmem:[%s327 + $0x150] sm:$0xff]
      %v1871 = vld [vmem:[%s327 + $0x158] sm:$0xff]
      %v1872 = vld [vmem:[%s327 + $0x160] sm:$0xff]
      %v1873 = vld [vmem:[%s327 + $0x168] sm:$0xff]
      %v1874 = vld [vmem:[%s327 + $0x170] sm:$0xff]
      %v1875 = vld [vmem:[%s327 + $0x178] sm:$0xff]
      %v1876 = vld [vmem:[%s327 + $0x180] sm:$0xff]
      %v1877 = vld [vmem:[%s327 + $0x188] sm:$0xff]
      %v1878 = vld [vmem:[%s327 + $0x190] sm:$0xff]
      %v1879 = vld [vmem:[%s327 + $0x198] sm:$0xff]
      %v1880 = vld [vmem:[%s327 + $0x1a0] sm:$0xff]
      %v1881 = vld [vmem:[%s327 + $0x1a8] sm:$0xff]
      %s1882 = scalar_lea.vmem %s1, 192
      %v1883 = vld [vmem:[%s1882] sm:$0xff]
      %v1884 = vld [vmem:[%s1882 + $0x8] sm:$0xff]
      %v1885 = vld [vmem:[%s1882 + $0x10] sm:$0xff]
      %v1886 = vld [vmem:[%s1882 + $0x18] sm:$0xff]
      %v1887 = vld [vmem:[%s1882 + $0x20] sm:$0xff]
      %v1888 = vld [vmem:[%s1882 + $0x28] sm:$0xff]
      %v1889 = vld [vmem:[%s1882 + $0x30] sm:$0xf]
      %v1890 = vld [vmem:[%s1882 + $0x38] sm:$0xf]
      %v1892 = vsel %vm401, %v1834, 0
      %v1895 = vsel %vm401, %v1835, 0
      %v1898 = vsel %vm401, %v1836, 0
      %v1901 = vsel %vm401, %v1837, 0
      %v1904 = vsel %vm401, %v1838, 0
      %v1907 = vsel %vm401, %v1839, 0
      %v1910 = vsel %vm401, %v1840, 0
      %v1913 = vsel %vm401, %v1841, 0
      %v1916 = vsel %vm401, %v1842, 0
      %v1919 = vsel %vm401, %v1843, 0
      %v1922 = vsel %vm401, %v1844, 0
      %v1925 = vsel %vm401, %v1845, 0
      %v1928 = vsel %vm401, %v1846, 0
      %v1931 = vsel %vm401, %v1847, 0
      %v1934 = vsel %vm401, %v1848, 0
      %v1937 = vsel %vm401, %v1849, 0
      %v1940 = vsel %vm401, %v1850, 0
      %v1943 = vsel %vm401, %v1851, 0
      %v1946 = vsel %vm401, %v1852, 0
      %v1949 = vsel %vm401, %v1853, 0
      %v1952 = vsel %vm401, %v1854, 0
      %v1955 = vsel %vm401, %v1855, 0
      %v1958 = vsel %vm401, %v1856, 0
      %v1961 = vsel %vm401, %v1857, 0
      %v1964 = vsel %vm401, %v1858, 0
      %v1967 = vsel %vm401, %v1859, 0
      %v1970 = vsel %vm401, %v1860, 0
      %v1973 = vsel %vm401, %v1861, 0
      %v1976 = vsel %vm401, %v1862, 0
      %v1979 = vsel %vm401, %v1863, 0
      %v1982 = vsel %vm401, %v1864, 0
      %v1985 = vsel %vm401, %v1865, 0
      %v1988 = vsel %vm401, %v1866, 0
      %v1991 = vsel %vm401, %v1867, 0
      %v1994 = vsel %vm401, %v1868, 0
      %v1997 = vsel %vm401, %v1869, 0
      %v2000 = vsel %vm401, %v1870, 0
      %v2003 = vsel %vm401, %v1871, 0
      %v2006 = vsel %vm401, %v1872, 0
      %v2009 = vsel %vm401, %v1873, 0
      %v2012 = vsel %vm401, %v1874, 0
      %v2015 = vsel %vm401, %v1875, 0
      %v2018 = vsel %vm401, %v1876, 0
      %v2021 = vsel %vm401, %v1877, 0
      %v2024 = vsel %vm401, %v1878, 0
      %v2027 = vsel %vm401, %v1879, 0
      %v2030 = vsel %vm401, %v1880, 0
      %v2033 = vsel %vm401, %v1881, 0
      %v2036 = vsel %vm546, %v1889, 0
      %v2039 = vsel %vm546, %v1890, 0
      %2041 = vmatpush.msra.mxu0 0.0
      %2042 = vmatpush.msra.mxu0 0.0
      %2043 = vmatpush.msra.mxu0 0.0
      %2044 = vmatpush.msra.mxu0 0.0
      %2045 = vmatpush.msra.mxu0 0.0
      %2046 = vmatpush.msra.mxu0 0.0
      %2047 = vmatpush.msra.mxu0 0.0
      %2048 = vmatpush.msra.mxu0 0.0
      %2049 = vmatpush.msra.mxu0 0.0
      %2050 = vmatpush.msra.mxu0 0.0
      %2051 = vmatpush.msra.mxu0 0.0
      %2052 = vmatpush.msra.mxu0 0.0
      %2053 = vmatpush.msra.mxu0 %v2036
      %2054 = vmatpush.msra.mxu0 %v1887
      %2055 = vmatpush.msra.mxu0 %v1885
      %2056 = vmatpush.msra.mxu0 %v1883
      %2057 = vmatmul.f32.gmra.mxu0 %v1892
      %v2058 = vpop.f32.mrf.mxu0
      %v2059 = vadd.f32 0.0, %v2058
      %2060 = vmatmul.f32.gmra.mxu0 %v1895
      %v2061 = vpop.f32.mrf.mxu0
      %v2062 = vadd.f32 0.0, %v2061
      %2063 = vmatmul.f32.gmra.mxu0 %v1898
      %v2064 = vpop.f32.mrf.mxu0
      %v2065 = vadd.f32 0.0, %v2064
      %2066 = vmatmul.f32.gmra.mxu0 %v1901
      %v2067 = vpop.f32.mrf.mxu0
      %v2068 = vadd.f32 0.0, %v2067
      %2069 = vmatmul.f32.gmra.mxu0 %v1904
      %v2070 = vpop.f32.mrf.mxu0
      %v2071 = vadd.f32 0.0, %v2070
      %2072 = vmatmul.f32.gmra.mxu0 %v1907
      %v2073 = vpop.f32.mrf.mxu0
      %v2074 = vadd.f32 0.0, %v2073
      %2075 = vmatmul.f32.gmra.mxu0 %v1910
      %v2076 = vpop.f32.mrf.mxu0
      %v2077 = vadd.f32 0.0, %v2076
      %2078 = vmatmul.f32.gmra.mxu0 %v1913
      %v2079 = vpop.f32.mrf.mxu0
      %v2080 = vadd.f32 0.0, %v2079
      %2081 = vmatmul.f32.gmra.mxu0 %v1916
      %v2082 = vpop.f32.mrf.mxu0
      %v2083 = vadd.f32 0.0, %v2082
      %2084 = vmatmul.f32.gmra.mxu0 %v1919
      %v2085 = vpop.f32.mrf.mxu0
      %v2086 = vadd.f32 0.0, %v2085
      %2087 = vmatmul.f32.gmra.mxu0 %v1922
      %v2088 = vpop.f32.mrf.mxu0
      %v2089 = vadd.f32 0.0, %v2088
      %2090 = vmatmul.f32.gmra.mxu0 %v1925
      %v2091 = vpop.f32.mrf.mxu0
      %v2092 = vadd.f32 0.0, %v2091
      %2093 = vmatmul.f32.gmra.mxu0 %v1928
      %v2094 = vpop.f32.mrf.mxu0
      %v2095 = vadd.f32 0.0, %v2094
      %2096 = vmatmul.f32.gmra.mxu0 %v1931
      %v2097 = vpop.f32.mrf.mxu0
      %v2098 = vadd.f32 0.0, %v2097
      %2099 = vmatmul.f32.gmra.mxu0 %v1934
      %v2100 = vpop.f32.mrf.mxu0
      %v2101 = vadd.f32 0.0, %v2100
      %2102 = vmatmul.f32.gmra.mxu0 %v1937
      %v2103 = vpop.f32.mrf.mxu0
      %v2104 = vadd.f32 0.0, %v2103
      %2105 = vmatmul.f32.gmra.mxu0 %v1940
      %v2106 = vpop.f32.mrf.mxu0
      %v2107 = vadd.f32 0.0, %v2106
      %2108 = vmatmul.f32.gmra.mxu0 %v1943
      %v2109 = vpop.f32.mrf.mxu0
      %v2110 = vadd.f32 0.0, %v2109
      %2111 = vmatmul.f32.gmra.mxu0 %v1946
      %v2112 = vpop.f32.mrf.mxu0
      %v2113 = vadd.f32 0.0, %v2112
      %2114 = vmatmul.f32.gmra.mxu0 %v1949
      %v2115 = vpop.f32.mrf.mxu0
      %v2116 = vadd.f32 0.0, %v2115
      %2117 = vmatmul.f32.gmra.mxu0 %v1952
      %v2118 = vpop.f32.mrf.mxu0
      %v2119 = vadd.f32 0.0, %v2118
      %2120 = vmatmul.f32.gmra.mxu0 %v1955
      %v2121 = vpop.f32.mrf.mxu0
      %v2122 = vadd.f32 0.0, %v2121
      %2123 = vmatmul.f32.gmra.mxu0 %v1958
      %v2124 = vpop.f32.mrf.mxu0
      %v2125 = vadd.f32 0.0, %v2124
      %2126 = vmatmul.f32.gmra.mxu0 %v1961
      %v2127 = vpop.f32.mrf.mxu0
      %v2128 = vadd.f32 0.0, %v2127
      %2129 = vmatmul.f32.gmra.mxu0 %v1964
      %v2130 = vpop.f32.mrf.mxu0
      %v2131 = vadd.f32 0.0, %v2130
      %2132 = vmatmul.f32.gmra.mxu0 %v1967
      %v2133 = vpop.f32.mrf.mxu0
      %v2134 = vadd.f32 0.0, %v2133
      %2135 = vmatmul.f32.gmra.mxu0 %v1970
      %v2136 = vpop.f32.mrf.mxu0
      %v2137 = vadd.f32 0.0, %v2136
      %2138 = vmatmul.f32.gmra.mxu0 %v1973
      %v2139 = vpop.f32.mrf.mxu0
      %v2140 = vadd.f32 0.0, %v2139
      %2141 = vmatmul.f32.gmra.mxu0 %v1976
      %v2142 = vpop.f32.mrf.mxu0
      %v2143 = vadd.f32 0.0, %v2142
      %2144 = vmatmul.f32.gmra.mxu0 %v1979
      %v2145 = vpop.f32.mrf.mxu0
      %v2146 = vadd.f32 0.0, %v2145
      %2147 = vmatmul.f32.gmra.mxu0 %v1982
      %v2148 = vpop.f32.mrf.mxu0
      %v2149 = vadd.f32 0.0, %v2148
      %2150 = vmatmul.f32.gmra.mxu0 %v1985
      %v2151 = vpop.f32.mrf.mxu0
      %v2152 = vadd.f32 0.0, %v2151
      %2153 = vmatmul.f32.gmra.mxu0 %v1988
      %v2154 = vpop.f32.mrf.mxu0
      %v2155 = vadd.f32 0.0, %v2154
      %2156 = vmatmul.f32.gmra.mxu0 %v1991
      %v2157 = vpop.f32.mrf.mxu0
      %v2158 = vadd.f32 0.0, %v2157
      %2159 = vmatmul.f32.gmra.mxu0 %v1994
      %v2160 = vpop.f32.mrf.mxu0
      %v2161 = vadd.f32 0.0, %v2160
      %2162 = vmatmul.f32.gmra.mxu0 %v1997
      %v2163 = vpop.f32.mrf.mxu0
      %v2164 = vadd.f32 0.0, %v2163
      %2165 = vmatmul.f32.gmra.mxu0 %v2000
      %v2166 = vpop.f32.mrf.mxu0
      %v2167 = vadd.f32 0.0, %v2166
      %2168 = vmatmul.f32.gmra.mxu0 %v2003
      %v2169 = vpop.f32.mrf.mxu0
      %v2170 = vadd.f32 0.0, %v2169
      %2171 = vmatmul.f32.gmra.mxu0 %v2006
      %v2172 = vpop.f32.mrf.mxu0
      %v2173 = vadd.f32 0.0, %v2172
      %2174 = vmatmul.f32.gmra.mxu0 %v2009
      %v2175 = vpop.f32.mrf.mxu0
      %v2176 = vadd.f32 0.0, %v2175
      %2177 = vmatmul.f32.gmra.mxu0 %v2012
      %v2178 = vpop.f32.mrf.mxu0
      %v2179 = vadd.f32 0.0, %v2178
      %2180 = vmatmul.f32.gmra.mxu0 %v2015
      %v2181 = vpop.f32.mrf.mxu0
      %v2182 = vadd.f32 0.0, %v2181
      %2183 = vmatmul.f32.gmra.mxu0 %v2018
      %v2184 = vpop.f32.mrf.mxu0
      %v2185 = vadd.f32 0.0, %v2184
      %2186 = vmatmul.f32.gmra.mxu0 %v2021
      %v2187 = vpop.f32.mrf.mxu0
      %v2188 = vadd.f32 0.0, %v2187
      %2189 = vmatmul.f32.gmra.mxu0 %v2024
      %v2190 = vpop.f32.mrf.mxu0
      %v2191 = vadd.f32 0.0, %v2190
      %2192 = vmatmul.f32.gmra.mxu0 %v2027
      %v2193 = vpop.f32.mrf.mxu0
      %v2194 = vadd.f32 0.0, %v2193
      %2195 = vmatmul.f32.gmra.mxu0 %v2030
      %v2196 = vpop.f32.mrf.mxu0
      %v2197 = vadd.f32 0.0, %v2196
      %2198 = vmatmul.f32.gmra.mxu0 %v2033
      %v2199 = vpop.f32.mrf.mxu0
      %v2200 = vadd.f32 0.0, %v2199
      %2201 = vdwg.mxu0
      %2202 = vmatpush.msra.mxu0 0.0
      %2203 = vmatpush.msra.mxu0 0.0
      %2204 = vmatpush.msra.mxu0 0.0
      %2205 = vmatpush.msra.mxu0 0.0
      %2206 = vmatpush.msra.mxu0 0.0
      %2207 = vmatpush.msra.mxu0 0.0
      %2208 = vmatpush.msra.mxu0 0.0
      %2209 = vmatpush.msra.mxu0 0.0
      %2210 = vmatpush.msra.mxu0 0.0
      %2211 = vmatpush.msra.mxu0 0.0
      %2212 = vmatpush.msra.mxu0 0.0
      %2213 = vmatpush.msra.mxu0 0.0
      %2214 = vmatpush.msra.mxu0 %v2039
      %2215 = vmatpush.msra.mxu0 %v1888
      %2216 = vmatpush.msra.mxu0 %v1886
      %2217 = vmatpush.msra.mxu0 %v1884
      %2218 = vmatmul.f32.gmra.mxu0 %v1892
      %v2219 = vpop.f32.mrf.mxu0
      %v2220 = vadd.f32 0.0, %v2219
      %2221 = vmatmul.f32.gmra.mxu0 %v1895
      %v2222 = vpop.f32.mrf.mxu0
      %v2223 = vadd.f32 0.0, %v2222
      %2224 = vmatmul.f32.gmra.mxu0 %v1898
      %v2225 = vpop.f32.mrf.mxu0
      %v2226 = vadd.f32 0.0, %v2225
      %2227 = vmatmul.f32.gmra.mxu0 %v1901
      %v2228 = vpop.f32.mrf.mxu0
      %v2229 = vadd.f32 0.0, %v2228
      %2230 = vmatmul.f32.gmra.mxu0 %v1904
      %v2231 = vpop.f32.mrf.mxu0
      %v2232 = vadd.f32 0.0, %v2231
      %2233 = vmatmul.f32.gmra.mxu0 %v1907
      %v2234 = vpop.f32.mrf.mxu0
      %v2235 = vadd.f32 0.0, %v2234
      %2236 = vmatmul.f32.gmra.mxu0 %v1910
      %v2237 = vpop.f32.mrf.mxu0
      %v2238 = vadd.f32 0.0, %v2237
      %2239 = vmatmul.f32.gmra.mxu0 %v1913
      %v2240 = vpop.f32.mrf.mxu0
      %v2241 = vadd.f32 0.0, %v2240
      %2242 = vmatmul.f32.gmra.mxu0 %v1916
      %v2243 = vpop.f32.mrf.mxu0
      %v2244 = vadd.f32 0.0, %v2243
      %2245 = vmatmul.f32.gmra.mxu0 %v1919
      %v2246 = vpop.f32.mrf.mxu0
      %v2247 = vadd.f32 0.0, %v2246
      %2248 = vmatmul.f32.gmra.mxu0 %v1922
      %v2249 = vpop.f32.mrf.mxu0
      %v2250 = vadd.f32 0.0, %v2249
      %2251 = vmatmul.f32.gmra.mxu0 %v1925
      %v2252 = vpop.f32.mrf.mxu0
      %v2253 = vadd.f32 0.0, %v2252
      %2254 = vmatmul.f32.gmra.mxu0 %v1928
      %v2255 = vpop.f32.mrf.mxu0
      %v2256 = vadd.f32 0.0, %v2255
      %2257 = vmatmul.f32.gmra.mxu0 %v1931
      %v2258 = vpop.f32.mrf.mxu0
      %v2259 = vadd.f32 0.0, %v2258
      %2260 = vmatmul.f32.gmra.mxu0 %v1934
      %v2261 = vpop.f32.mrf.mxu0
      %v2262 = vadd.f32 0.0, %v2261
      %2263 = vmatmul.f32.gmra.mxu0 %v1937
      %v2264 = vpop.f32.mrf.mxu0
      %v2265 = vadd.f32 0.0, %v2264
      %2266 = vmatmul.f32.gmra.mxu0 %v1940
      %v2267 = vpop.f32.mrf.mxu0
      %v2268 = vadd.f32 0.0, %v2267
      %2269 = vmatmul.f32.gmra.mxu0 %v1943
      %v2270 = vpop.f32.mrf.mxu0
      %v2271 = vadd.f32 0.0, %v2270
      %2272 = vmatmul.f32.gmra.mxu0 %v1946
      %v2273 = vpop.f32.mrf.mxu0
      %v2274 = vadd.f32 0.0, %v2273
      %2275 = vmatmul.f32.gmra.mxu0 %v1949
      %v2276 = vpop.f32.mrf.mxu0
      %v2277 = vadd.f32 0.0, %v2276
      %2278 = vmatmul.f32.gmra.mxu0 %v1952
      %v2279 = vpop.f32.mrf.mxu0
      %v2280 = vadd.f32 0.0, %v2279
      %2281 = vmatmul.f32.gmra.mxu0 %v1955
      %v2282 = vpop.f32.mrf.mxu0
      %v2283 = vadd.f32 0.0, %v2282
      %2284 = vmatmul.f32.gmra.mxu0 %v1958
      %v2285 = vpop.f32.mrf.mxu0
      %v2286 = vadd.f32 0.0, %v2285
      %2287 = vmatmul.f32.gmra.mxu0 %v1961
      %v2288 = vpop.f32.mrf.mxu0
      %v2289 = vadd.f32 0.0, %v2288
      %2290 = vmatmul.f32.gmra.mxu0 %v1964
      %v2291 = vpop.f32.mrf.mxu0
      %v2292 = vadd.f32 0.0, %v2291
      %2293 = vmatmul.f32.gmra.mxu0 %v1967
      %v2294 = vpop.f32.mrf.mxu0
      %v2295 = vadd.f32 0.0, %v2294
      %2296 = vmatmul.f32.gmra.mxu0 %v1970
      %v2297 = vpop.f32.mrf.mxu0
      %v2298 = vadd.f32 0.0, %v2297
      %2299 = vmatmul.f32.gmra.mxu0 %v1973
      %v2300 = vpop.f32.mrf.mxu0
      %v2301 = vadd.f32 0.0, %v2300
      %2302 = vmatmul.f32.gmra.mxu0 %v1976
      %v2303 = vpop.f32.mrf.mxu0
      %v2304 = vadd.f32 0.0, %v2303
      %2305 = vmatmul.f32.gmra.mxu0 %v1979
      %v2306 = vpop.f32.mrf.mxu0
      %v2307 = vadd.f32 0.0, %v2306
      %2308 = vmatmul.f32.gmra.mxu0 %v1982
      %v2309 = vpop.f32.mrf.mxu0
      %v2310 = vadd.f32 0.0, %v2309
      %2311 = vmatmul.f32.gmra.mxu0 %v1985
      %v2312 = vpop.f32.mrf.mxu0
      %v2313 = vadd.f32 0.0, %v2312
      %2314 = vmatmul.f32.gmra.mxu0 %v1988
      %v2315 = vpop.f32.mrf.mxu0
      %v2316 = vadd.f32 0.0, %v2315
      %2317 = vmatmul.f32.gmra.mxu0 %v1991
      %v2318 = vpop.f32.mrf.mxu0
      %v2319 = vadd.f32 0.0, %v2318
      %2320 = vmatmul.f32.gmra.mxu0 %v1994
      %v2321 = vpop.f32.mrf.mxu0
      %v2322 = vadd.f32 0.0, %v2321
      %2323 = vmatmul.f32.gmra.mxu0 %v1997
      %v2324 = vpop.f32.mrf.mxu0
      %v2325 = vadd.f32 0.0, %v2324
      %2326 = vmatmul.f32.gmra.mxu0 %v2000
      %v2327 = vpop.f32.mrf.mxu0
      %v2328 = vadd.f32 0.0, %v2327
      %2329 = vmatmul.f32.gmra.mxu0 %v2003
      %v2330 = vpop.f32.mrf.mxu0
      %v2331 = vadd.f32 0.0, %v2330
      %2332 = vmatmul.f32.gmra.mxu0 %v2006
      %v2333 = vpop.f32.mrf.mxu0
      %v2334 = vadd.f32 0.0, %v2333
      %2335 = vmatmul.f32.gmra.mxu0 %v2009
      %v2336 = vpop.f32.mrf.mxu0
      %v2337 = vadd.f32 0.0, %v2336
      %2338 = vmatmul.f32.gmra.mxu0 %v2012
      %v2339 = vpop.f32.mrf.mxu0
      %v2340 = vadd.f32 0.0, %v2339
      %2341 = vmatmul.f32.gmra.mxu0 %v2015
      %v2342 = vpop.f32.mrf.mxu0
      %v2343 = vadd.f32 0.0, %v2342
      %2344 = vmatmul.f32.gmra.mxu0 %v2018
      %v2345 = vpop.f32.mrf.mxu0
      %v2346 = vadd.f32 0.0, %v2345
      %2347 = vmatmul.f32.gmra.mxu0 %v2021
      %v2348 = vpop.f32.mrf.mxu0
      %v2349 = vadd.f32 0.0, %v2348
      %2350 = vmatmul.f32.gmra.mxu0 %v2024
      %v2351 = vpop.f32.mrf.mxu0
      %v2352 = vadd.f32 0.0, %v2351
      %2353 = vmatmul.f32.gmra.mxu0 %v2027
      %v2354 = vpop.f32.mrf.mxu0
      %v2355 = vadd.f32 0.0, %v2354
      %2356 = vmatmul.f32.gmra.mxu0 %v2030
      %v2357 = vpop.f32.mrf.mxu0
      %v2358 = vadd.f32 0.0, %v2357
      %2359 = vmatmul.f32.gmra.mxu0 %v2033
      %v2360 = vpop.f32.mrf.mxu0
      %v2361 = vadd.f32 0.0, %v2360
      %2362 = vdwg.mxu0
      %v2363 = vadd.f32 %v1738, %v2059
      %v2364 = vadd.f32 %v1739, %v2220
      %v2365 = vadd.f32 %v1740, %v2062
      %v2366 = vadd.f32 %v1741, %v2223
      %v2367 = vadd.f32 %v1742, %v2065
      %v2368 = vadd.f32 %v1743, %v2226
      %v2369 = vadd.f32 %v1744, %v2068
      %v2370 = vadd.f32 %v1745, %v2229
      %v2371 = vadd.f32 %v1746, %v2071
      %v2372 = vadd.f32 %v1747, %v2232
      %v2373 = vadd.f32 %v1748, %v2074
      %v2374 = vadd.f32 %v1749, %v2235
      %v2375 = vadd.f32 %v1750, %v2077
      %v2376 = vadd.f32 %v1751, %v2238
      %v2377 = vadd.f32 %v1752, %v2080
      %v2378 = vadd.f32 %v1753, %v2241
      %v2379 = vadd.f32 %v1754, %v2083
      %v2380 = vadd.f32 %v1755, %v2244
      %v2381 = vadd.f32 %v1756, %v2086
      %v2382 = vadd.f32 %v1757, %v2247
      %v2383 = vadd.f32 %v1758, %v2089
      %v2384 = vadd.f32 %v1759, %v2250
      %v2385 = vadd.f32 %v1760, %v2092
      %v2386 = vadd.f32 %v1761, %v2253
      %v2387 = vadd.f32 %v1762, %v2095
      %v2388 = vadd.f32 %v1763, %v2256
      %v2389 = vadd.f32 %v1764, %v2098
      %v2390 = vadd.f32 %v1765, %v2259
      %v2391 = vadd.f32 %v1766, %v2101
      %v2392 = vadd.f32 %v1767, %v2262
      %v2393 = vadd.f32 %v1768, %v2104
      %v2394 = vadd.f32 %v1769, %v2265
      %v2395 = vadd.f32 %v1770, %v2107
      %v2396 = vadd.f32 %v1771, %v2268
      %v2397 = vadd.f32 %v1772, %v2110
      %v2398 = vadd.f32 %v1773, %v2271
      %v2399 = vadd.f32 %v1774, %v2113
      %v2400 = vadd.f32 %v1775, %v2274
      %v2401 = vadd.f32 %v1776, %v2116
      %v2402 = vadd.f32 %v1777, %v2277
      %v2403 = vadd.f32 %v1778, %v2119
      %v2404 = vadd.f32 %v1779, %v2280
      %v2405 = vadd.f32 %v1780, %v2122
      %v2406 = vadd.f32 %v1781, %v2283
      %v2407 = vadd.f32 %v1782, %v2125
      %v2408 = vadd.f32 %v1783, %v2286
      %v2409 = vadd.f32 %v1784, %v2128
      %v2410 = vadd.f32 %v1785, %v2289
      %v2411 = vadd.f32 %v1786, %v2131
      %v2412 = vadd.f32 %v1787, %v2292
      %v2413 = vadd.f32 %v1788, %v2134
      %v2414 = vadd.f32 %v1789, %v2295
      %v2415 = vadd.f32 %v1790, %v2137
      %v2416 = vadd.f32 %v1791, %v2298
      %v2417 = vadd.f32 %v1792, %v2140
      %v2418 = vadd.f32 %v1793, %v2301
      %v2419 = vadd.f32 %v1794, %v2143
      %v2420 = vadd.f32 %v1795, %v2304
      %v2421 = vadd.f32 %v1796, %v2146
      %v2422 = vadd.f32 %v1797, %v2307
      %v2423 = vadd.f32 %v1798, %v2149
      %v2424 = vadd.f32 %v1799, %v2310
      %v2425 = vadd.f32 %v1800, %v2152
      %v2426 = vadd.f32 %v1801, %v2313
      %v2427 = vadd.f32 %v1802, %v2155
      %v2428 = vadd.f32 %v1803, %v2316
      %v2429 = vadd.f32 %v1804, %v2158
      %v2430 = vadd.f32 %v1805, %v2319
      %v2431 = vadd.f32 %v1806, %v2161
      %v2432 = vadd.f32 %v1807, %v2322
      %v2433 = vadd.f32 %v1808, %v2164
      %v2434 = vadd.f32 %v1809, %v2325
      %v2435 = vadd.f32 %v1810, %v2167
      %v2436 = vadd.f32 %v1811, %v2328
      %v2437 = vadd.f32 %v1812, %v2170
      %v2438 = vadd.f32 %v1813, %v2331
      %v2439 = vadd.f32 %v1814, %v2173
      %v2440 = vadd.f32 %v1815, %v2334
      %v2441 = vadd.f32 %v1816, %v2176
      %v2442 = vadd.f32 %v1817, %v2337
      %v2443 = vadd.f32 %v1818, %v2179
      %v2444 = vadd.f32 %v1819, %v2340
      %v2445 = vadd.f32 %v1820, %v2182
      %v2446 = vadd.f32 %v1821, %v2343
      %v2447 = vadd.f32 %v1822, %v2185
      %v2448 = vadd.f32 %v1823, %v2346
      %v2449 = vadd.f32 %v1824, %v2188
      %v2450 = vadd.f32 %v1825, %v2349
      %v2451 = vadd.f32 %v1826, %v2191
      %v2452 = vadd.f32 %v1827, %v2352
      %v2453 = vadd.f32 %v1828, %v2194
      %v2454 = vadd.f32 %v1829, %v2355
      %v2455 = vadd.f32 %v1830, %v2197
      %v2456 = vadd.f32 %v1831, %v2358
      %v2457 = vadd.f32 %v1832, %v2200
      %v2458 = vadd.f32 %v1833, %v2361
      %v2459 = vld [vmem:[%s327 + $0x40] sm:$0xff]
      %v2460 = vld [vmem:[%s327 + $0x48] sm:$0xff]
      %v2461 = vld [vmem:[%s327 + $0x50] sm:$0xff]
      %v2462 = vld [vmem:[%s327 + $0x58] sm:$0xff]
      %v2463 = vld [vmem:[%s327 + $0x60] sm:$0xff]
      %v2464 = vld [vmem:[%s327 + $0x68] sm:$0xff]
      %v2465 = vld [vmem:[%s327 + $0x70] sm:$0xff]
      %v2466 = vld [vmem:[%s327 + $0x78] sm:$0xff]
      %v2467 = vld [vmem:[%s327 + $0x80] sm:$0xff]
      %v2468 = vld [vmem:[%s327 + $0x88] sm:$0xff]
      %v2469 = vld [vmem:[%s327 + $0x90] sm:$0xff]
      %v2470 = vld [vmem:[%s327 + $0x98] sm:$0xff]
      %v2471 = vld [vmem:[%s327 + $0xa0] sm:$0xff]
      %v2472 = vld [vmem:[%s327 + $0xa8] sm:$0xff]
      %v2473 = vld [vmem:[%s327 + $0xb0] sm:$0xff]
      %v2474 = vld [vmem:[%s327 + $0xb8] sm:$0xff]
      %v2475 = vld [vmem:[%s327 + $0xc0] sm:$0xff]
      %v2476 = vld [vmem:[%s327 + $0xc8] sm:$0xff]
      %v2477 = vld [vmem:[%s327 + $0xd0] sm:$0xff]
      %v2478 = vld [vmem:[%s327 + $0xd8] sm:$0xff]
      %v2479 = vld [vmem:[%s327 + $0xe0] sm:$0xff]
      %v2480 = vld [vmem:[%s327 + $0xe8] sm:$0xff]
      %v2481 = vld [vmem:[%s327 + $0xf0] sm:$0xff]
      %v2482 = vld [vmem:[%s327 + $0xf8] sm:$0xff]
      %v2483 = vld [vmem:[%s327 + $0x100] sm:$0xff]
      %v2484 = vld [vmem:[%s327 + $0x108] sm:$0xff]
      %v2485 = vld [vmem:[%s327 + $0x110] sm:$0xff]
      %v2486 = vld [vmem:[%s327 + $0x118] sm:$0xff]
      %v2487 = vld [vmem:[%s327 + $0x120] sm:$0xff]
      %v2488 = vld [vmem:[%s327 + $0x128] sm:$0xff]
      %v2489 = vld [vmem:[%s327 + $0x130] sm:$0xff]
      %v2490 = vld [vmem:[%s327 + $0x138] sm:$0xff]
      %v2491 = vld [vmem:[%s327 + $0x140] sm:$0xff]
      %v2492 = vld [vmem:[%s327 + $0x148] sm:$0xff]
      %v2493 = vld [vmem:[%s327 + $0x150] sm:$0xff]
      %v2494 = vld [vmem:[%s327 + $0x158] sm:$0xff]
      %v2495 = vld [vmem:[%s327 + $0x160] sm:$0xff]
      %v2496 = vld [vmem:[%s327 + $0x168] sm:$0xff]
      %v2497 = vld [vmem:[%s327 + $0x170] sm:$0xff]
      %v2498 = vld [vmem:[%s327 + $0x178] sm:$0xff]
      %v2499 = vld [vmem:[%s327 + $0x180] sm:$0xff]
      %v2500 = vld [vmem:[%s327 + $0x188] sm:$0xff]
      %v2501 = vld [vmem:[%s327 + $0x190] sm:$0xff]
      %v2502 = vld [vmem:[%s327 + $0x198] sm:$0xff]
      %v2503 = vld [vmem:[%s327 + $0x1a0] sm:$0xff]
      %v2504 = vld [vmem:[%s327 + $0x1a8] sm:$0xff]
      %v2505 = vld [vmem:[%s327 + $0x1b0] sm:$0xff]
      %v2506 = vld [vmem:[%s327 + $0x1b8] sm:$0xff]
      %s2507 = scalar_lea.vmem %s1, 256
      %v2508 = vld [vmem:[%s2507] sm:$0xff]
      %v2509 = vld [vmem:[%s2507 + $0x8] sm:$0xff]
      %v2510 = vld [vmem:[%s2507 + $0x10] sm:$0xff]
      %v2511 = vld [vmem:[%s2507 + $0x18] sm:$0xff]
      %v2512 = vld [vmem:[%s2507 + $0x20] sm:$0xff]
      %v2513 = vld [vmem:[%s2507 + $0x28] sm:$0xff]
      %v2514 = vld [vmem:[%s2507 + $0x30] sm:$0xf]
      %v2515 = vld [vmem:[%s2507 + $0x38] sm:$0xf]
      %v2517 = vsel %vm401, %v2459, 0
      %v2520 = vsel %vm401, %v2460, 0
      %v2523 = vsel %vm401, %v2461, 0
      %v2526 = vsel %vm401, %v2462, 0
      %v2529 = vsel %vm401, %v2463, 0
      %v2532 = vsel %vm401, %v2464, 0
      %v2535 = vsel %vm401, %v2465, 0
      %v2538 = vsel %vm401, %v2466, 0
      %v2541 = vsel %vm401, %v2467, 0
      %v2544 = vsel %vm401, %v2468, 0
      %v2547 = vsel %vm401, %v2469, 0
      %v2550 = vsel %vm401, %v2470, 0
      %v2553 = vsel %vm401, %v2471, 0
      %v2556 = vsel %vm401, %v2472, 0
      %v2559 = vsel %vm401, %v2473, 0
      %v2562 = vsel %vm401, %v2474, 0
      %v2565 = vsel %vm401, %v2475, 0
      %v2568 = vsel %vm401, %v2476, 0
      %v2571 = vsel %vm401, %v2477, 0
      %v2574 = vsel %vm401, %v2478, 0
      %v2577 = vsel %vm401, %v2479, 0
      %v2580 = vsel %vm401, %v2480, 0
      %v2583 = vsel %vm401, %v2481, 0
      %v2586 = vsel %vm401, %v2482, 0
      %v2589 = vsel %vm401, %v2483, 0
      %v2592 = vsel %vm401, %v2484, 0
      %v2595 = vsel %vm401, %v2485, 0
      %v2598 = vsel %vm401, %v2486, 0
      %v2601 = vsel %vm401, %v2487, 0
      %v2604 = vsel %vm401, %v2488, 0
      %v2607 = vsel %vm401, %v2489, 0
      %v2610 = vsel %vm401, %v2490, 0
      %v2613 = vsel %vm401, %v2491, 0
      %v2616 = vsel %vm401, %v2492, 0
      %v2619 = vsel %vm401, %v2493, 0
      %v2622 = vsel %vm401, %v2494, 0
      %v2625 = vsel %vm401, %v2495, 0
      %v2628 = vsel %vm401, %v2496, 0
      %v2631 = vsel %vm401, %v2497, 0
      %v2634 = vsel %vm401, %v2498, 0
      %v2637 = vsel %vm401, %v2499, 0
      %v2640 = vsel %vm401, %v2500, 0
      %v2643 = vsel %vm401, %v2501, 0
      %v2646 = vsel %vm401, %v2502, 0
      %v2649 = vsel %vm401, %v2503, 0
      %v2652 = vsel %vm401, %v2504, 0
      %v2655 = vsel %vm401, %v2505, 0
      %v2658 = vsel %vm401, %v2506, 0
      %v2661 = vsel %vm546, %v2514, 0
      %v2664 = vsel %vm546, %v2515, 0
      %2666 = vmatpush.msra.mxu0 0.0
      %2667 = vmatpush.msra.mxu0 0.0
      %2668 = vmatpush.msra.mxu0 0.0
      %2669 = vmatpush.msra.mxu0 0.0
      %2670 = vmatpush.msra.mxu0 0.0
      %2671 = vmatpush.msra.mxu0 0.0
      %2672 = vmatpush.msra.mxu0 0.0
      %2673 = vmatpush.msra.mxu0 0.0
      %2674 = vmatpush.msra.mxu0 0.0
      %2675 = vmatpush.msra.mxu0 0.0
      %2676 = vmatpush.msra.mxu0 0.0
      %2677 = vmatpush.msra.mxu0 0.0
      %2678 = vmatpush.msra.mxu0 %v2661
      %2679 = vmatpush.msra.mxu0 %v2512
      %2680 = vmatpush.msra.mxu0 %v2510
      %2681 = vmatpush.msra.mxu0 %v2508
      %2682 = vmatmul.f32.gmra.mxu0 %v2517
      %v2683 = vpop.f32.mrf.mxu0
      %v2684 = vadd.f32 0.0, %v2683
      %2685 = vmatmul.f32.gmra.mxu0 %v2520
      %v2686 = vpop.f32.mrf.mxu0
      %v2687 = vadd.f32 0.0, %v2686
      %2688 = vmatmul.f32.gmra.mxu0 %v2523
      %v2689 = vpop.f32.mrf.mxu0
      %v2690 = vadd.f32 0.0, %v2689
      %2691 = vmatmul.f32.gmra.mxu0 %v2526
      %v2692 = vpop.f32.mrf.mxu0
      %v2693 = vadd.f32 0.0, %v2692
      %2694 = vmatmul.f32.gmra.mxu0 %v2529
      %v2695 = vpop.f32.mrf.mxu0
      %v2696 = vadd.f32 0.0, %v2695
      %2697 = vmatmul.f32.gmra.mxu0 %v2532
      %v2698 = vpop.f32.mrf.mxu0
      %v2699 = vadd.f32 0.0, %v2698
      %2700 = vmatmul.f32.gmra.mxu0 %v2535
      %v2701 = vpop.f32.mrf.mxu0
      %v2702 = vadd.f32 0.0, %v2701
      %2703 = vmatmul.f32.gmra.mxu0 %v2538
      %v2704 = vpop.f32.mrf.mxu0
      %v2705 = vadd.f32 0.0, %v2704
      %2706 = vmatmul.f32.gmra.mxu0 %v2541
      %v2707 = vpop.f32.mrf.mxu0
      %v2708 = vadd.f32 0.0, %v2707
      %2709 = vmatmul.f32.gmra.mxu0 %v2544
      %v2710 = vpop.f32.mrf.mxu0
      %v2711 = vadd.f32 0.0, %v2710
      %2712 = vmatmul.f32.gmra.mxu0 %v2547
      %v2713 = vpop.f32.mrf.mxu0
      %v2714 = vadd.f32 0.0, %v2713
      %2715 = vmatmul.f32.gmra.mxu0 %v2550
      %v2716 = vpop.f32.mrf.mxu0
      %v2717 = vadd.f32 0.0, %v2716
      %2718 = vmatmul.f32.gmra.mxu0 %v2553
      %v2719 = vpop.f32.mrf.mxu0
      %v2720 = vadd.f32 0.0, %v2719
      %2721 = vmatmul.f32.gmra.mxu0 %v2556
      %v2722 = vpop.f32.mrf.mxu0
      %v2723 = vadd.f32 0.0, %v2722
      %2724 = vmatmul.f32.gmra.mxu0 %v2559
      %v2725 = vpop.f32.mrf.mxu0
      %v2726 = vadd.f32 0.0, %v2725
      %2727 = vmatmul.f32.gmra.mxu0 %v2562
      %v2728 = vpop.f32.mrf.mxu0
      %v2729 = vadd.f32 0.0, %v2728
      %2730 = vmatmul.f32.gmra.mxu0 %v2565
      %v2731 = vpop.f32.mrf.mxu0
      %v2732 = vadd.f32 0.0, %v2731
      %2733 = vmatmul.f32.gmra.mxu0 %v2568
      %v2734 = vpop.f32.mrf.mxu0
      %v2735 = vadd.f32 0.0, %v2734
      %2736 = vmatmul.f32.gmra.mxu0 %v2571
      %v2737 = vpop.f32.mrf.mxu0
      %v2738 = vadd.f32 0.0, %v2737
      %2739 = vmatmul.f32.gmra.mxu0 %v2574
      %v2740 = vpop.f32.mrf.mxu0
      %v2741 = vadd.f32 0.0, %v2740
      %2742 = vmatmul.f32.gmra.mxu0 %v2577
      %v2743 = vpop.f32.mrf.mxu0
      %v2744 = vadd.f32 0.0, %v2743
      %2745 = vmatmul.f32.gmra.mxu0 %v2580
      %v2746 = vpop.f32.mrf.mxu0
      %v2747 = vadd.f32 0.0, %v2746
      %2748 = vmatmul.f32.gmra.mxu0 %v2583
      %v2749 = vpop.f32.mrf.mxu0
      %v2750 = vadd.f32 0.0, %v2749
      %2751 = vmatmul.f32.gmra.mxu0 %v2586
      %v2752 = vpop.f32.mrf.mxu0
      %v2753 = vadd.f32 0.0, %v2752
      %2754 = vmatmul.f32.gmra.mxu0 %v2589
      %v2755 = vpop.f32.mrf.mxu0
      %v2756 = vadd.f32 0.0, %v2755
      %2757 = vmatmul.f32.gmra.mxu0 %v2592
      %v2758 = vpop.f32.mrf.mxu0
      %v2759 = vadd.f32 0.0, %v2758
      %2760 = vmatmul.f32.gmra.mxu0 %v2595
      %v2761 = vpop.f32.mrf.mxu0
      %v2762 = vadd.f32 0.0, %v2761
      %2763 = vmatmul.f32.gmra.mxu0 %v2598
      %v2764 = vpop.f32.mrf.mxu0
      %v2765 = vadd.f32 0.0, %v2764
      %2766 = vmatmul.f32.gmra.mxu0 %v2601
      %v2767 = vpop.f32.mrf.mxu0
      %v2768 = vadd.f32 0.0, %v2767
      %2769 = vmatmul.f32.gmra.mxu0 %v2604
      %v2770 = vpop.f32.mrf.mxu0
      %v2771 = vadd.f32 0.0, %v2770
      %2772 = vmatmul.f32.gmra.mxu0 %v2607
      %v2773 = vpop.f32.mrf.mxu0
      %v2774 = vadd.f32 0.0, %v2773
      %2775 = vmatmul.f32.gmra.mxu0 %v2610
      %v2776 = vpop.f32.mrf.mxu0
      %v2777 = vadd.f32 0.0, %v2776
      %2778 = vmatmul.f32.gmra.mxu0 %v2613
      %v2779 = vpop.f32.mrf.mxu0
      %v2780 = vadd.f32 0.0, %v2779
      %2781 = vmatmul.f32.gmra.mxu0 %v2616
      %v2782 = vpop.f32.mrf.mxu0
      %v2783 = vadd.f32 0.0, %v2782
      %2784 = vmatmul.f32.gmra.mxu0 %v2619
      %v2785 = vpop.f32.mrf.mxu0
      %v2786 = vadd.f32 0.0, %v2785
      %2787 = vmatmul.f32.gmra.mxu0 %v2622
      %v2788 = vpop.f32.mrf.mxu0
      %v2789 = vadd.f32 0.0, %v2788
      %2790 = vmatmul.f32.gmra.mxu0 %v2625
      %v2791 = vpop.f32.mrf.mxu0
      %v2792 = vadd.f32 0.0, %v2791
      %2793 = vmatmul.f32.gmra.mxu0 %v2628
      %v2794 = vpop.f32.mrf.mxu0
      %v2795 = vadd.f32 0.0, %v2794
      %2796 = vmatmul.f32.gmra.mxu0 %v2631
      %v2797 = vpop.f32.mrf.mxu0
      %v2798 = vadd.f32 0.0, %v2797
      %2799 = vmatmul.f32.gmra.mxu0 %v2634
      %v2800 = vpop.f32.mrf.mxu0
      %v2801 = vadd.f32 0.0, %v2800
      %2802 = vmatmul.f32.gmra.mxu0 %v2637
      %v2803 = vpop.f32.mrf.mxu0
      %v2804 = vadd.f32 0.0, %v2803
      %2805 = vmatmul.f32.gmra.mxu0 %v2640
      %v2806 = vpop.f32.mrf.mxu0
      %v2807 = vadd.f32 0.0, %v2806
      %2808 = vmatmul.f32.gmra.mxu0 %v2643
      %v2809 = vpop.f32.mrf.mxu0
      %v2810 = vadd.f32 0.0, %v2809
      %2811 = vmatmul.f32.gmra.mxu0 %v2646
      %v2812 = vpop.f32.mrf.mxu0
      %v2813 = vadd.f32 0.0, %v2812
      %2814 = vmatmul.f32.gmra.mxu0 %v2649
      %v2815 = vpop.f32.mrf.mxu0
      %v2816 = vadd.f32 0.0, %v2815
      %2817 = vmatmul.f32.gmra.mxu0 %v2652
      %v2818 = vpop.f32.mrf.mxu0
      %v2819 = vadd.f32 0.0, %v2818
      %2820 = vmatmul.f32.gmra.mxu0 %v2655
      %v2821 = vpop.f32.mrf.mxu0
      %v2822 = vadd.f32 0.0, %v2821
      %2823 = vmatmul.f32.gmra.mxu0 %v2658
      %v2824 = vpop.f32.mrf.mxu0
      %v2825 = vadd.f32 0.0, %v2824
      %2826 = vdwg.mxu0
      %2827 = vmatpush.msra.mxu0 0.0
      %2828 = vmatpush.msra.mxu0 0.0
      %2829 = vmatpush.msra.mxu0 0.0
      %2830 = vmatpush.msra.mxu0 0.0
      %2831 = vmatpush.msra.mxu0 0.0
      %2832 = vmatpush.msra.mxu0 0.0
      %2833 = vmatpush.msra.mxu0 0.0
      %2834 = vmatpush.msra.mxu0 0.0
      %2835 = vmatpush.msra.mxu0 0.0
      %2836 = vmatpush.msra.mxu0 0.0
      %2837 = vmatpush.msra.mxu0 0.0
      %2838 = vmatpush.msra.mxu0 0.0
      %2839 = vmatpush.msra.mxu0 %v2664
      %2840 = vmatpush.msra.mxu0 %v2513
      %2841 = vmatpush.msra.mxu0 %v2511
      %2842 = vmatpush.msra.mxu0 %v2509
      %2843 = vmatmul.f32.gmra.mxu0 %v2517
      %v2844 = vpop.f32.mrf.mxu0
      %v2845 = vadd.f32 0.0, %v2844
      %2846 = vmatmul.f32.gmra.mxu0 %v2520
      %v2847 = vpop.f32.mrf.mxu0
      %v2848 = vadd.f32 0.0, %v2847
      %2849 = vmatmul.f32.gmra.mxu0 %v2523
      %v2850 = vpop.f32.mrf.mxu0
      %v2851 = vadd.f32 0.0, %v2850
      %2852 = vmatmul.f32.gmra.mxu0 %v2526
      %v2853 = vpop.f32.mrf.mxu0
      %v2854 = vadd.f32 0.0, %v2853
      %2855 = vmatmul.f32.gmra.mxu0 %v2529
      %v2856 = vpop.f32.mrf.mxu0
      %v2857 = vadd.f32 0.0, %v2856
      %2858 = vmatmul.f32.gmra.mxu0 %v2532
      %v2859 = vpop.f32.mrf.mxu0
      %v2860 = vadd.f32 0.0, %v2859
      %2861 = vmatmul.f32.gmra.mxu0 %v2535
      %v2862 = vpop.f32.mrf.mxu0
      %v2863 = vadd.f32 0.0, %v2862
      %2864 = vmatmul.f32.gmra.mxu0 %v2538
      %v2865 = vpop.f32.mrf.mxu0
      %v2866 = vadd.f32 0.0, %v2865
      %2867 = vmatmul.f32.gmra.mxu0 %v2541
      %v2868 = vpop.f32.mrf.mxu0
      %v2869 = vadd.f32 0.0, %v2868
      %2870 = vmatmul.f32.gmra.mxu0 %v2544
      %v2871 = vpop.f32.mrf.mxu0
      %v2872 = vadd.f32 0.0, %v2871
      %2873 = vmatmul.f32.gmra.mxu0 %v2547
      %v2874 = vpop.f32.mrf.mxu0
      %v2875 = vadd.f32 0.0, %v2874
      %2876 = vmatmul.f32.gmra.mxu0 %v2550
      %v2877 = vpop.f32.mrf.mxu0
      %v2878 = vadd.f32 0.0, %v2877
      %2879 = vmatmul.f32.gmra.mxu0 %v2553
      %v2880 = vpop.f32.mrf.mxu0
      %v2881 = vadd.f32 0.0, %v2880
      %2882 = vmatmul.f32.gmra.mxu0 %v2556
      %v2883 = vpop.f32.mrf.mxu0
      %v2884 = vadd.f32 0.0, %v2883
      %2885 = vmatmul.f32.gmra.mxu0 %v2559
      %v2886 = vpop.f32.mrf.mxu0
      %v2887 = vadd.f32 0.0, %v2886
      %2888 = vmatmul.f32.gmra.mxu0 %v2562
      %v2889 = vpop.f32.mrf.mxu0
      %v2890 = vadd.f32 0.0, %v2889
      %2891 = vmatmul.f32.gmra.mxu0 %v2565
      %v2892 = vpop.f32.mrf.mxu0
      %v2893 = vadd.f32 0.0, %v2892
      %2894 = vmatmul.f32.gmra.mxu0 %v2568
      %v2895 = vpop.f32.mrf.mxu0
      %v2896 = vadd.f32 0.0, %v2895
      %2897 = vmatmul.f32.gmra.mxu0 %v2571
      %v2898 = vpop.f32.mrf.mxu0
      %v2899 = vadd.f32 0.0, %v2898
      %2900 = vmatmul.f32.gmra.mxu0 %v2574
      %v2901 = vpop.f32.mrf.mxu0
      %v2902 = vadd.f32 0.0, %v2901
      %2903 = vmatmul.f32.gmra.mxu0 %v2577
      %v2904 = vpop.f32.mrf.mxu0
      %v2905 = vadd.f32 0.0, %v2904
      %2906 = vmatmul.f32.gmra.mxu0 %v2580
      %v2907 = vpop.f32.mrf.mxu0
      %v2908 = vadd.f32 0.0, %v2907
      %2909 = vmatmul.f32.gmra.mxu0 %v2583
      %v2910 = vpop.f32.mrf.mxu0
      %v2911 = vadd.f32 0.0, %v2910
      %2912 = vmatmul.f32.gmra.mxu0 %v2586
      %v2913 = vpop.f32.mrf.mxu0
      %v2914 = vadd.f32 0.0, %v2913
      %2915 = vmatmul.f32.gmra.mxu0 %v2589
      %v2916 = vpop.f32.mrf.mxu0
      %v2917 = vadd.f32 0.0, %v2916
      %2918 = vmatmul.f32.gmra.mxu0 %v2592
      %v2919 = vpop.f32.mrf.mxu0
      %v2920 = vadd.f32 0.0, %v2919
      %2921 = vmatmul.f32.gmra.mxu0 %v2595
      %v2922 = vpop.f32.mrf.mxu0
      %v2923 = vadd.f32 0.0, %v2922
      %2924 = vmatmul.f32.gmra.mxu0 %v2598
      %v2925 = vpop.f32.mrf.mxu0
      %v2926 = vadd.f32 0.0, %v2925
      %2927 = vmatmul.f32.gmra.mxu0 %v2601
      %v2928 = vpop.f32.mrf.mxu0
      %v2929 = vadd.f32 0.0, %v2928
      %2930 = vmatmul.f32.gmra.mxu0 %v2604
      %v2931 = vpop.f32.mrf.mxu0
      %v2932 = vadd.f32 0.0, %v2931
      %2933 = vmatmul.f32.gmra.mxu0 %v2607
      %v2934 = vpop.f32.mrf.mxu0
      %v2935 = vadd.f32 0.0, %v2934
      %2936 = vmatmul.f32.gmra.mxu0 %v2610
      %v2937 = vpop.f32.mrf.mxu0
      %v2938 = vadd.f32 0.0, %v2937
      %2939 = vmatmul.f32.gmra.mxu0 %v2613
      %v2940 = vpop.f32.mrf.mxu0
      %v2941 = vadd.f32 0.0, %v2940
      %2942 = vmatmul.f32.gmra.mxu0 %v2616
      %v2943 = vpop.f32.mrf.mxu0
      %v2944 = vadd.f32 0.0, %v2943
      %2945 = vmatmul.f32.gmra.mxu0 %v2619
      %v2946 = vpop.f32.mrf.mxu0
      %v2947 = vadd.f32 0.0, %v2946
      %2948 = vmatmul.f32.gmra.mxu0 %v2622
      %v2949 = vpop.f32.mrf.mxu0
      %v2950 = vadd.f32 0.0, %v2949
      %2951 = vmatmul.f32.gmra.mxu0 %v2625
      %v2952 = vpop.f32.mrf.mxu0
      %v2953 = vadd.f32 0.0, %v2952
      %2954 = vmatmul.f32.gmra.mxu0 %v2628
      %v2955 = vpop.f32.mrf.mxu0
      %v2956 = vadd.f32 0.0, %v2955
      %2957 = vmatmul.f32.gmra.mxu0 %v2631
      %v2958 = vpop.f32.mrf.mxu0
      %v2959 = vadd.f32 0.0, %v2958
      %2960 = vmatmul.f32.gmra.mxu0 %v2634
      %v2961 = vpop.f32.mrf.mxu0
      %v2962 = vadd.f32 0.0, %v2961
      %2963 = vmatmul.f32.gmra.mxu0 %v2637
      %v2964 = vpop.f32.mrf.mxu0
      %v2965 = vadd.f32 0.0, %v2964
      %2966 = vmatmul.f32.gmra.mxu0 %v2640
      %v2967 = vpop.f32.mrf.mxu0
      %v2968 = vadd.f32 0.0, %v2967
      %2969 = vmatmul.f32.gmra.mxu0 %v2643
      %v2970 = vpop.f32.mrf.mxu0
      %v2971 = vadd.f32 0.0, %v2970
      %2972 = vmatmul.f32.gmra.mxu0 %v2646
      %v2973 = vpop.f32.mrf.mxu0
      %v2974 = vadd.f32 0.0, %v2973
      %2975 = vmatmul.f32.gmra.mxu0 %v2649
      %v2976 = vpop.f32.mrf.mxu0
      %v2977 = vadd.f32 0.0, %v2976
      %2978 = vmatmul.f32.gmra.mxu0 %v2652
      %v2979 = vpop.f32.mrf.mxu0
      %v2980 = vadd.f32 0.0, %v2979
      %2981 = vmatmul.f32.gmra.mxu0 %v2655
      %v2982 = vpop.f32.mrf.mxu0
      %v2983 = vadd.f32 0.0, %v2982
      %2984 = vmatmul.f32.gmra.mxu0 %v2658
      %v2985 = vpop.f32.mrf.mxu0
      %v2986 = vadd.f32 0.0, %v2985
      %2987 = vdwg.mxu0
      %v2988 = vadd.f32 %v2363, %v2684
      %v2989 = vadd.f32 %v2364, %v2845
      %v2990 = vadd.f32 %v2365, %v2687
      %v2991 = vadd.f32 %v2366, %v2848
      %v2992 = vadd.f32 %v2367, %v2690
      %v2993 = vadd.f32 %v2368, %v2851
      %v2994 = vadd.f32 %v2369, %v2693
      %v2995 = vadd.f32 %v2370, %v2854
      %v2996 = vadd.f32 %v2371, %v2696
      %v2997 = vadd.f32 %v2372, %v2857
      %v2998 = vadd.f32 %v2373, %v2699
      %v2999 = vadd.f32 %v2374, %v2860
      %v3000 = vadd.f32 %v2375, %v2702
      %v3001 = vadd.f32 %v2376, %v2863
      %v3002 = vadd.f32 %v2377, %v2705
      %v3003 = vadd.f32 %v2378, %v2866
      %v3004 = vadd.f32 %v2379, %v2708
      %v3005 = vadd.f32 %v2380, %v2869
      %v3006 = vadd.f32 %v2381, %v2711
      %v3007 = vadd.f32 %v2382, %v2872
      %v3008 = vadd.f32 %v2383, %v2714
      %v3009 = vadd.f32 %v2384, %v2875
      %v3010 = vadd.f32 %v2385, %v2717
      %v3011 = vadd.f32 %v2386, %v2878
      %v3012 = vadd.f32 %v2387, %v2720
      %v3013 = vadd.f32 %v2388, %v2881
      %v3014 = vadd.f32 %v2389, %v2723
      %v3015 = vadd.f32 %v2390, %v2884
      %v3016 = vadd.f32 %v2391, %v2726
      %v3017 = vadd.f32 %v2392, %v2887
      %v3018 = vadd.f32 %v2393, %v2729
      %v3019 = vadd.f32 %v2394, %v2890
      %v3020 = vadd.f32 %v2395, %v2732
      %v3021 = vadd.f32 %v2396, %v2893
      %v3022 = vadd.f32 %v2397, %v2735
      %v3023 = vadd.f32 %v2398, %v2896
      %v3024 = vadd.f32 %v2399, %v2738
      %v3025 = vadd.f32 %v2400, %v2899
      %v3026 = vadd.f32 %v2401, %v2741
      %v3027 = vadd.f32 %v2402, %v2902
      %v3028 = vadd.f32 %v2403, %v2744
      %v3029 = vadd.f32 %v2404, %v2905
      %v3030 = vadd.f32 %v2405, %v2747
      %v3031 = vadd.f32 %v2406, %v2908
      %v3032 = vadd.f32 %v2407, %v2750
      %v3033 = vadd.f32 %v2408, %v2911
      %v3034 = vadd.f32 %v2409, %v2753
      %v3035 = vadd.f32 %v2410, %v2914
      %v3036 = vadd.f32 %v2411, %v2756
      %v3037 = vadd.f32 %v2412, %v2917
      %v3038 = vadd.f32 %v2413, %v2759
      %v3039 = vadd.f32 %v2414, %v2920
      %v3040 = vadd.f32 %v2415, %v2762
      %v3041 = vadd.f32 %v2416, %v2923
      %v3042 = vadd.f32 %v2417, %v2765
      %v3043 = vadd.f32 %v2418, %v2926
      %v3044 = vadd.f32 %v2419, %v2768
      %v3045 = vadd.f32 %v2420, %v2929
      %v3046 = vadd.f32 %v2421, %v2771
      %v3047 = vadd.f32 %v2422, %v2932
      %v3048 = vadd.f32 %v2423, %v2774
      %v3049 = vadd.f32 %v2424, %v2935
      %v3050 = vadd.f32 %v2425, %v2777
      %v3051 = vadd.f32 %v2426, %v2938
      %v3052 = vadd.f32 %v2427, %v2780
      %v3053 = vadd.f32 %v2428, %v2941
      %v3054 = vadd.f32 %v2429, %v2783
      %v3055 = vadd.f32 %v2430, %v2944
      %v3056 = vadd.f32 %v2431, %v2786
      %v3057 = vadd.f32 %v2432, %v2947
      %v3058 = vadd.f32 %v2433, %v2789
      %v3059 = vadd.f32 %v2434, %v2950
      %v3060 = vadd.f32 %v2435, %v2792
      %v3061 = vadd.f32 %v2436, %v2953
      %v3062 = vadd.f32 %v2437, %v2795
      %v3063 = vadd.f32 %v2438, %v2956
      %v3064 = vadd.f32 %v2439, %v2798
      %v3065 = vadd.f32 %v2440, %v2959
      %v3066 = vadd.f32 %v2441, %v2801
      %v3067 = vadd.f32 %v2442, %v2962
      %v3068 = vadd.f32 %v2443, %v2804
      %v3069 = vadd.f32 %v2444, %v2965
      %v3070 = vadd.f32 %v2445, %v2807
      %v3071 = vadd.f32 %v2446, %v2968
      %v3072 = vadd.f32 %v2447, %v2810
      %v3073 = vadd.f32 %v2448, %v2971
      %v3074 = vadd.f32 %v2449, %v2813
      %v3075 = vadd.f32 %v2450, %v2974
      %v3076 = vadd.f32 %v2451, %v2816
      %v3077 = vadd.f32 %v2452, %v2977
      %v3078 = vadd.f32 %v2453, %v2819
      %v3079 = vadd.f32 %v2454, %v2980
      %v3080 = vadd.f32 %v2455, %v2822
      %v3081 = vadd.f32 %v2456, %v2983
      %v3082 = vadd.f32 %v2457, %v2825
      %v3083 = vadd.f32 %v2458, %v2986
      %3180 = vrot.lane.b32.xlu0 %v2988, 8
      %v3181 = vpop.permute.xlu0 %3180
      %3182 = vrot.lane.b32.xlu0 %v2989, 8
      %v3183 = vpop.permute.xlu0 %3182
      %3184 = vrot.lane.b32.xlu0 %v2990, 8
      %v3185 = vpop.permute.xlu0 %3184
      %3186 = vrot.lane.b32.xlu0 %v2991, 8
      %v3187 = vpop.permute.xlu0 %3186
      %3188 = vrot.lane.b32.xlu0 %v2992, 8
      %v3189 = vpop.permute.xlu0 %3188
      %3190 = vrot.lane.b32.xlu0 %v2993, 8
      %v3191 = vpop.permute.xlu0 %3190
      %3192 = vrot.lane.b32.xlu0 %v2994, 8
      %v3193 = vpop.permute.xlu0 %3192
      %3194 = vrot.lane.b32.xlu0 %v2995, 8
      %v3195 = vpop.permute.xlu0 %3194
      %3196 = vrot.lane.b32.xlu0 %v2996, 8
      %v3197 = vpop.permute.xlu0 %3196
      %3198 = vrot.lane.b32.xlu0 %v2997, 8
      %v3199 = vpop.permute.xlu0 %3198
      %3200 = vrot.lane.b32.xlu0 %v2998, 8
      %v3201 = vpop.permute.xlu0 %3200
      %3202 = vrot.lane.b32.xlu0 %v2999, 8
      %v3203 = vpop.permute.xlu0 %3202
      %3204 = vrot.lane.b32.xlu0 %v3000, 8
      %v3205 = vpop.permute.xlu0 %3204
      %3206 = vrot.lane.b32.xlu0 %v3001, 8
      %v3207 = vpop.permute.xlu0 %3206
      %3208 = vrot.lane.b32.xlu0 %v3002, 8
      %v3209 = vpop.permute.xlu0 %3208
      %3210 = vrot.lane.b32.xlu0 %v3003, 8
      %v3211 = vpop.permute.xlu0 %3210
      %3212 = vrot.lane.b32.xlu0 %v3004, 8
      %v3213 = vpop.permute.xlu0 %3212
      %3214 = vrot.lane.b32.xlu0 %v3005, 8
      %v3215 = vpop.permute.xlu0 %3214
      %3216 = vrot.lane.b32.xlu0 %v3006, 8
      %v3217 = vpop.permute.xlu0 %3216
      %3218 = vrot.lane.b32.xlu0 %v3007, 8
      %v3219 = vpop.permute.xlu0 %3218
      %3220 = vrot.lane.b32.xlu0 %v3008, 8
      %v3221 = vpop.permute.xlu0 %3220
      %3222 = vrot.lane.b32.xlu0 %v3009, 8
      %v3223 = vpop.permute.xlu0 %3222
      %3224 = vrot.lane.b32.xlu0 %v3010, 8
      %v3225 = vpop.permute.xlu0 %3224
      %3226 = vrot.lane.b32.xlu0 %v3011, 8
      %v3227 = vpop.permute.xlu0 %3226
      %3228 = vrot.lane.b32.xlu0 %v3012, 8
      %v3229 = vpop.permute.xlu0 %3228
      %3230 = vrot.lane.b32.xlu0 %v3013, 8
      %v3231 = vpop.permute.xlu0 %3230
      %3232 = vrot.lane.b32.xlu0 %v3014, 8
      %v3233 = vpop.permute.xlu0 %3232
      %3234 = vrot.lane.b32.xlu0 %v3015, 8
      %v3235 = vpop.permute.xlu0 %3234
      %3236 = vrot.lane.b32.xlu0 %v3016, 8
      %v3237 = vpop.permute.xlu0 %3236
      %3238 = vrot.lane.b32.xlu0 %v3017, 8
      %v3239 = vpop.permute.xlu0 %3238
      %3240 = vrot.lane.b32.xlu0 %v3018, 8
      %v3241 = vpop.permute.xlu0 %3240
      %3242 = vrot.lane.b32.xlu0 %v3019, 8
      %v3243 = vpop.permute.xlu0 %3242
      %3244 = vrot.lane.b32.xlu0 %v3020, 8
      %v3245 = vpop.permute.xlu0 %3244
      %3246 = vrot.lane.b32.xlu0 %v3021, 8
      %v3247 = vpop.permute.xlu0 %3246
      %3248 = vrot.lane.b32.xlu0 %v3022, 8
      %v3249 = vpop.permute.xlu0 %3248
      %3250 = vrot.lane.b32.xlu0 %v3023, 8
      %v3251 = vpop.permute.xlu0 %3250
      %3252 = vrot.lane.b32.xlu0 %v3024, 8
      %v3253 = vpop.permute.xlu0 %3252
      %3254 = vrot.lane.b32.xlu0 %v3025, 8
      %v3255 = vpop.permute.xlu0 %3254
      %3256 = vrot.lane.b32.xlu0 %v3026, 8
      %v3257 = vpop.permute.xlu0 %3256
      %3258 = vrot.lane.b32.xlu0 %v3027, 8
      %v3259 = vpop.permute.xlu0 %3258
      %3260 = vrot.lane.b32.xlu0 %v3028, 8
      %v3261 = vpop.permute.xlu0 %3260
      %3262 = vrot.lane.b32.xlu0 %v3029, 8
      %v3263 = vpop.permute.xlu0 %3262
      %3264 = vrot.lane.b32.xlu0 %v3030, 8
      %v3265 = vpop.permute.xlu0 %3264
      %3266 = vrot.lane.b32.xlu0 %v3031, 8
      %v3267 = vpop.permute.xlu0 %3266
      %3268 = vrot.lane.b32.xlu0 %v3032, 8
      %v3269 = vpop.permute.xlu0 %3268
      %3270 = vrot.lane.b32.xlu0 %v3033, 8
      %v3271 = vpop.permute.xlu0 %3270
      %3272 = vrot.lane.b32.xlu0 %v3034, 8
      %v3273 = vpop.permute.xlu0 %3272
      %3274 = vrot.lane.b32.xlu0 %v3035, 8
      %v3275 = vpop.permute.xlu0 %3274
      %3276 = vrot.lane.b32.xlu0 %v3036, 8
      %v3277 = vpop.permute.xlu0 %3276
      %3278 = vrot.lane.b32.xlu0 %v3037, 8
      %v3279 = vpop.permute.xlu0 %3278
      %3280 = vrot.lane.b32.xlu0 %v3038, 8
      %v3281 = vpop.permute.xlu0 %3280
      %3282 = vrot.lane.b32.xlu0 %v3039, 8
      %v3283 = vpop.permute.xlu0 %3282
      %3284 = vrot.lane.b32.xlu0 %v3040, 8
      %v3285 = vpop.permute.xlu0 %3284
      %3286 = vrot.lane.b32.xlu0 %v3041, 8
      %v3287 = vpop.permute.xlu0 %3286
      %3288 = vrot.lane.b32.xlu0 %v3042, 8
      %v3289 = vpop.permute.xlu0 %3288
      %3290 = vrot.lane.b32.xlu0 %v3043, 8
      %v3291 = vpop.permute.xlu0 %3290
      %3292 = vrot.lane.b32.xlu0 %v3044, 8
      %v3293 = vpop.permute.xlu0 %3292
      %3294 = vrot.lane.b32.xlu0 %v3045, 8
      %v3295 = vpop.permute.xlu0 %3294
      %3296 = vrot.lane.b32.xlu0 %v3046, 8
      %v3297 = vpop.permute.xlu0 %3296
      %3298 = vrot.lane.b32.xlu0 %v3047, 8
      %v3299 = vpop.permute.xlu0 %3298
      %3300 = vrot.lane.b32.xlu0 %v3048, 8
      %v3301 = vpop.permute.xlu0 %3300
      %3302 = vrot.lane.b32.xlu0 %v3049, 8
      %v3303 = vpop.permute.xlu0 %3302
      %3304 = vrot.lane.b32.xlu0 %v3050, 8
      %v3305 = vpop.permute.xlu0 %3304
      %3306 = vrot.lane.b32.xlu0 %v3051, 8
      %v3307 = vpop.permute.xlu0 %3306
      %3308 = vrot.lane.b32.xlu0 %v3052, 8
      %v3309 = vpop.permute.xlu0 %3308
      %3310 = vrot.lane.b32.xlu0 %v3053, 8
      %v3311 = vpop.permute.xlu0 %3310
      %3312 = vrot.lane.b32.xlu0 %v3054, 8
      %v3313 = vpop.permute.xlu0 %3312
      %3314 = vrot.lane.b32.xlu0 %v3055, 8
      %v3315 = vpop.permute.xlu0 %3314
      %3316 = vrot.lane.b32.xlu0 %v3056, 8
      %v3317 = vpop.permute.xlu0 %3316
      %3318 = vrot.lane.b32.xlu0 %v3057, 8
      %v3319 = vpop.permute.xlu0 %3318
      %3320 = vrot.lane.b32.xlu0 %v3058, 8
      %v3321 = vpop.permute.xlu0 %3320
      %3322 = vrot.lane.b32.xlu0 %v3059, 8
      %v3323 = vpop.permute.xlu0 %3322
      %3324 = vrot.lane.b32.xlu0 %v3060, 8
      %v3325 = vpop.permute.xlu0 %3324
      %3326 = vrot.lane.b32.xlu0 %v3061, 8
      %v3327 = vpop.permute.xlu0 %3326
      %3328 = vrot.lane.b32.xlu0 %v3062, 8
      %v3329 = vpop.permute.xlu0 %3328
      %3330 = vrot.lane.b32.xlu0 %v3063, 8
      %v3331 = vpop.permute.xlu0 %3330
      %3332 = vrot.lane.b32.xlu0 %v3064, 8
      %v3333 = vpop.permute.xlu0 %3332
      %3334 = vrot.lane.b32.xlu0 %v3065, 8
      %v3335 = vpop.permute.xlu0 %3334
      %3336 = vrot.lane.b32.xlu0 %v3066, 8
      %v3337 = vpop.permute.xlu0 %3336
      %3338 = vrot.lane.b32.xlu0 %v3067, 8
      %v3339 = vpop.permute.xlu0 %3338
      %3340 = vrot.lane.b32.xlu0 %v3068, 8
      %v3341 = vpop.permute.xlu0 %3340
      %3342 = vrot.lane.b32.xlu0 %v3069, 8
      %v3343 = vpop.permute.xlu0 %3342
      %3344 = vrot.lane.b32.xlu0 %v3070, 8
      %v3345 = vpop.permute.xlu0 %3344
      %3346 = vrot.lane.b32.xlu0 %v3071, 8
      %v3347 = vpop.permute.xlu0 %3346
      %3348 = vrot.lane.b32.xlu0 %v3072, 8
      %v3349 = vpop.permute.xlu0 %3348
      %3350 = vrot.lane.b32.xlu0 %v3073, 8
      %v3351 = vpop.permute.xlu0 %3350
      %3352 = vrot.lane.b32.xlu0 %v3074, 8
      %v3353 = vpop.permute.xlu0 %3352
      %3354 = vrot.lane.b32.xlu0 %v3075, 8
      %v3355 = vpop.permute.xlu0 %3354
      %3356 = vrot.lane.b32.xlu0 %v3076, 8
      %v3357 = vpop.permute.xlu0 %3356
      %3358 = vrot.lane.b32.xlu0 %v3077, 8
      %v3359 = vpop.permute.xlu0 %3358
      %3360 = vrot.lane.b32.xlu0 %v3078, 8
      %v3361 = vpop.permute.xlu0 %3360
      %3362 = vrot.lane.b32.xlu0 %v3079, 8
      %v3363 = vpop.permute.xlu0 %3362
      %3364 = vrot.lane.b32.xlu0 %v3080, 8
      %v3365 = vpop.permute.xlu0 %3364
      %3366 = vrot.lane.b32.xlu0 %v3081, 8
      %v3367 = vpop.permute.xlu0 %3366
      %3368 = vrot.lane.b32.xlu0 %v3082, 8
      %v3369 = vpop.permute.xlu0 %3368
      %3370 = vrot.lane.b32.xlu0 %v3083, 8
      %v3371 = vpop.permute.xlu0 %3370
      %vm3372 = vcmask 64512
      %v3373 = vsel %vm3372, %v3181, %v3183
      %v3374 = vsel %vm3372, %v3185, %v3187
      %v3375 = vsel %vm3372, %v3189, %v3191
      %v3376 = vsel %vm3372, %v3193, %v3195
      %v3377 = vsel %vm3372, %v3197, %v3199
      %v3378 = vsel %vm3372, %v3201, %v3203
      %v3379 = vsel %vm3372, %v3205, %v3207
      %v3380 = vsel %vm3372, %v3209, %v3211
      %v3381 = vsel %vm3372, %v3213, %v3215
      %v3382 = vsel %vm3372, %v3217, %v3219
      %v3383 = vsel %vm3372, %v3221, %v3223
      %v3384 = vsel %vm3372, %v3225, %v3227
      %v3385 = vsel %vm3372, %v3229, %v3231
      %v3386 = vsel %vm3372, %v3233, %v3235
      %v3387 = vsel %vm3372, %v3237, %v3239
      %v3388 = vsel %vm3372, %v3241, %v3243
      %v3389 = vsel %vm3372, %v3245, %v3247
      %v3390 = vsel %vm3372, %v3249, %v3251
      %v3391 = vsel %vm3372, %v3253, %v3255
      %v3392 = vsel %vm3372, %v3257, %v3259
      %v3393 = vsel %vm3372, %v3261, %v3263
      %v3394 = vsel %vm3372, %v3265, %v3267
      %v3395 = vsel %vm3372, %v3269, %v3271
      %v3396 = vsel %vm3372, %v3273, %v3275
      %v3397 = vsel %vm3372, %v3277, %v3279
      %v3398 = vsel %vm3372, %v3281, %v3283
      %v3399 = vsel %vm3372, %v3285, %v3287
      %v3400 = vsel %vm3372, %v3289, %v3291
      %v3401 = vsel %vm3372, %v3293, %v3295
      %v3402 = vsel %vm3372, %v3297, %v3299
      %v3403 = vsel %vm3372, %v3301, %v3303
      %v3404 = vsel %vm3372, %v3305, %v3307
      %v3405 = vsel %vm3372, %v3309, %v3311
      %v3406 = vsel %vm3372, %v3313, %v3315
      %v3407 = vsel %vm3372, %v3317, %v3319
      %v3408 = vsel %vm3372, %v3321, %v3323
      %v3409 = vsel %vm3372, %v3325, %v3327
      %v3410 = vsel %vm3372, %v3329, %v3331
      %v3411 = vsel %vm3372, %v3333, %v3335
      %v3412 = vsel %vm3372, %v3337, %v3339
      %v3413 = vsel %vm3372, %v3341, %v3343
      %v3414 = vsel %vm3372, %v3345, %v3347
      %v3415 = vsel %vm3372, %v3349, %v3351
      %v3416 = vsel %vm3372, %v3353, %v3355
      %v3417 = vsel %vm3372, %v3357, %v3359
      %v3418 = vsel %vm3372, %v3361, %v3363
      %v3419 = vsel %vm3372, %v3365, %v3367
      %v3420 = vsel %vm3372, %v3369, %v3371
      %v3469 = vmax.f32 %v2988, %v3373
      %v3470 = vmax.f32 %v2990, %v3374
      %v3471 = vmax.f32 %v2992, %v3375
      %v3472 = vmax.f32 %v2994, %v3376
      %v3473 = vmax.f32 %v2996, %v3377
      %v3474 = vmax.f32 %v2998, %v3378
      %v3475 = vmax.f32 %v3000, %v3379
      %v3476 = vmax.f32 %v3002, %v3380
      %v3477 = vmax.f32 %v3004, %v3381
      %v3478 = vmax.f32 %v3006, %v3382
      %v3479 = vmax.f32 %v3008, %v3383
      %v3480 = vmax.f32 %v3010, %v3384
      %v3481 = vmax.f32 %v3012, %v3385
      %v3482 = vmax.f32 %v3014, %v3386
      %v3483 = vmax.f32 %v3016, %v3387
      %v3484 = vmax.f32 %v3018, %v3388
      %v3485 = vmax.f32 %v3020, %v3389
      %v3486 = vmax.f32 %v3022, %v3390
      %v3487 = vmax.f32 %v3024, %v3391
      %v3488 = vmax.f32 %v3026, %v3392
      %v3489 = vmax.f32 %v3028, %v3393
      %v3490 = vmax.f32 %v3030, %v3394
      %v3491 = vmax.f32 %v3032, %v3395
      %v3492 = vmax.f32 %v3034, %v3396
      %v3493 = vmax.f32 %v3036, %v3397
      %v3494 = vmax.f32 %v3038, %v3398
      %v3495 = vmax.f32 %v3040, %v3399
      %v3496 = vmax.f32 %v3042, %v3400
      %v3497 = vmax.f32 %v3044, %v3401
      %v3498 = vmax.f32 %v3046, %v3402
      %v3499 = vmax.f32 %v3048, %v3403
      %v3500 = vmax.f32 %v3050, %v3404
      %v3501 = vmax.f32 %v3052, %v3405
      %v3502 = vmax.f32 %v3054, %v3406
      %v3503 = vmax.f32 %v3056, %v3407
      %v3504 = vmax.f32 %v3058, %v3408
      %v3505 = vmax.f32 %v3060, %v3409
      %v3506 = vmax.f32 %v3062, %v3410
      %v3507 = vmax.f32 %v3064, %v3411
      %v3508 = vmax.f32 %v3066, %v3412
      %v3509 = vmax.f32 %v3068, %v3413
      %v3510 = vmax.f32 %v3070, %v3414
      %v3511 = vmax.f32 %v3072, %v3415
      %v3512 = vmax.f32 %v3074, %v3416
      %v3513 = vmax.f32 %v3076, %v3417
      %v3514 = vmax.f32 %v3078, %v3418
      %v3515 = vmax.f32 %v3080, %v3419
      %v3516 = vmax.f32 %v3082, %v3420
      %v3517 = vmax.f32 %v3469, %v3471
      %v3518 = vmax.f32 %v3470, %v3472
      %v3519 = vmax.f32 %v3473, %v3475
      %v3520 = vmax.f32 %v3474, %v3476
      %v3521 = vmax.f32 %v3477, %v3479
      %v3522 = vmax.f32 %v3478, %v3480
      %v3523 = vmax.f32 %v3481, %v3483
      %v3524 = vmax.f32 %v3482, %v3484
      %v3525 = vmax.f32 %v3485, %v3487
      %v3526 = vmax.f32 %v3486, %v3488
      %v3527 = vmax.f32 %v3489, %v3491
      %v3528 = vmax.f32 %v3490, %v3492
      %v3529 = vmax.f32 %v3493, %v3495
      %v3530 = vmax.f32 %v3494, %v3496
      %v3531 = vmax.f32 %v3497, %v3499
      %v3532 = vmax.f32 %v3498, %v3500
      %v3533 = vmax.f32 %v3501, %v3503
      %v3534 = vmax.f32 %v3502, %v3504
      %v3535 = vmax.f32 %v3505, %v3507
      %v3536 = vmax.f32 %v3506, %v3508
      %v3537 = vmax.f32 %v3509, %v3511
      %v3538 = vmax.f32 %v3510, %v3512
      %v3539 = vmax.f32 %v3513, %v3515
      %v3540 = vmax.f32 %v3514, %v3516
      %v3541 = vld [vmem:[%s2] sm:$0x1]
      %v3543 = vperm.slane %v3541, 0
      %v3545 = vadd.f32 %v3517, %v3543
      %v3546 = vadd.f32 %v3518, %v3543
      %v3547 = vadd.f32 %v3519, %v3543
      %v3548 = vadd.f32 %v3520, %v3543
      %v3549 = vadd.f32 %v3521, %v3543
      %v3550 = vadd.f32 %v3522, %v3543
      %v3551 = vadd.f32 %v3523, %v3543
      %v3552 = vadd.f32 %v3524, %v3543
      %v3553 = vadd.f32 %v3525, %v3543
      %v3554 = vadd.f32 %v3526, %v3543
      %v3555 = vadd.f32 %v3527, %v3543
      %v3556 = vadd.f32 %v3528, %v3543
      %v3557 = vadd.f32 %v3529, %v3543
      %v3558 = vadd.f32 %v3530, %v3543
      %v3559 = vadd.f32 %v3531, %v3543
      %v3560 = vadd.f32 %v3532, %v3543
      %v3561 = vadd.f32 %v3533, %v3543
      %v3562 = vadd.f32 %v3534, %v3543
      %v3563 = vadd.f32 %v3535, %v3543
      %v3564 = vadd.f32 %v3536, %v3543
      %v3565 = vadd.f32 %v3537, %v3543
      %v3566 = vadd.f32 %v3538, %v3543
      %v3567 = vadd.f32 %v3539, %v3543
      %v3568 = vadd.f32 %v3540, %v3543
      %v3569 = vmax.f32 %v3545, 0.0
      %v3570 = vmax.f32 %v3546, 0.0
      %v3571 = vmax.f32 %v3547, 0.0
      %v3572 = vmax.f32 %v3548, 0.0
      %v3573 = vmax.f32 %v3549, 0.0
      %v3574 = vmax.f32 %v3550, 0.0
      %v3575 = vmax.f32 %v3551, 0.0
      %v3576 = vmax.f32 %v3552, 0.0
      %v3577 = vmax.f32 %v3553, 0.0
      %v3578 = vmax.f32 %v3554, 0.0
      %v3579 = vmax.f32 %v3555, 0.0
      %v3580 = vmax.f32 %v3556, 0.0
      %v3581 = vmax.f32 %v3557, 0.0
      %v3582 = vmax.f32 %v3558, 0.0
      %v3583 = vmax.f32 %v3559, 0.0
      %v3584 = vmax.f32 %v3560, 0.0
      %v3585 = vmax.f32 %v3561, 0.0
      %v3586 = vmax.f32 %v3562, 0.0
      %v3587 = vmax.f32 %v3563, 0.0
      %v3588 = vmax.f32 %v3564, 0.0
      %v3589 = vmax.f32 %v3565, 0.0
      %v3590 = vmax.f32 %v3566, 0.0
      %v3591 = vmax.f32 %v3567, 0.0
      %v3592 = vmax.f32 %v3568, 0.0
      %v3593 = vld [vmem:[%s3] sm:$0xff]
      %v3594 = vld [vmem:[%s3 + $0x8] sm:$0xff]
      %v3595 = vld [vmem:[%s3 + $0x10] sm:$0xff]
      %v3596 = vld [vmem:[%s3 + $0x18] sm:$0xff]
      %v3597 = vld [vmem:[%s3 + $0x20] sm:$0xff]
      %v3598 = vld [vmem:[%s3 + $0x28] sm:$0xff]
      %v3599 = vld [vmem:[%s3 + $0x30] sm:$0xff]
      %v3600 = vld [vmem:[%s3 + $0x38] sm:$0xff]
      %v3601 = vld [vmem:[%s3 + $0x40] sm:$0xff]
      %v3602 = vld [vmem:[%s3 + $0x48] sm:$0xff]
      %v3603 = vld [vmem:[%s3 + $0x50] sm:$0xff]
      %v3604 = vld [vmem:[%s3 + $0x58] sm:$0xff]
      %v3605 = vld [vmem:[%s3 + $0x60] sm:$0xff]
      %v3606 = vld [vmem:[%s3 + $0x68] sm:$0xff]
      %v3607 = vld [vmem:[%s3 + $0x70] sm:$0xff]
      %v3608 = vld [vmem:[%s3 + $0x78] sm:$0xff]
      %v3609 = vld [vmem:[%s3 + $0x80] sm:$0xff]
      %v3610 = vld [vmem:[%s3 + $0x88] sm:$0xff]
      %v3611 = vld [vmem:[%s3 + $0x90] sm:$0xff]
      %v3612 = vld [vmem:[%s3 + $0x98] sm:$0xff]
      %v3613 = vld [vmem:[%s3 + $0xa0] sm:$0xff]
      %v3614 = vld [vmem:[%s3 + $0xa8] sm:$0xff]
      %v3615 = vld [vmem:[%s3 + $0xb0] sm:$0xff]
      %v3616 = vld [vmem:[%s3 + $0xb8] sm:$0xff]
      %v3617 = vld [vmem:[%s3 + $0xc0] sm:$0xff]
      %v3618 = vld [vmem:[%s3 + $0xc8] sm:$0xff]
      %v3619 = vld [vmem:[%s3 + $0xd0] sm:$0xff]
      %v3620 = vld [vmem:[%s3 + $0xd8] sm:$0xff]
      %v3621 = vld [vmem:[%s3 + $0xe0] sm:$0xff]
      %v3622 = vld [vmem:[%s3 + $0xe8] sm:$0xff]
      %s3623 = scalar_lea.vmem %s3, 240
      %v3624 = vld [vmem:[%s3623] sm:$0xff]
      %v3625 = vld [vmem:[%s3623 + $0x8] sm:$0xff]
      %v3626 = vld [vmem:[%s3623 + $0x10] sm:$0xff]
      %v3627 = vld [vmem:[%s3623 + $0x18] sm:$0xff]
      %v3628 = vld [vmem:[%s3623 + $0x20] sm:$0xff]
      %v3629 = vld [vmem:[%s3623 + $0x28] sm:$0xff]
      %v3630 = vld [vmem:[%s3623 + $0x30] sm:$0xff]
      %v3631 = vld [vmem:[%s3623 + $0x38] sm:$0xff]
      %v3632 = vld [vmem:[%s3623 + $0x40] sm:$0xff]
      %v3633 = vld [vmem:[%s3623 + $0x48] sm:$0xff]
      %v3634 = vld [vmem:[%s3623 + $0x50] sm:$0xff]
      %v3635 = vld [vmem:[%s3623 + $0x58] sm:$0xff]
      %v3636 = vld [vmem:[%s3623 + $0x60] sm:$0xff]
      %v3637 = vld [vmem:[%s3623 + $0x68] sm:$0xff]
      %v3638 = vld [vmem:[%s3623 + $0x70] sm:$0xff]
      %v3639 = vld [vmem:[%s3623 + $0x78] sm:$0xff]
      %v3640 = vld [vmem:[%s3623 + $0x80] sm:$0xff]
      %v3641 = vld [vmem:[%s3623 + $0x88] sm:$0xff]
      %v3642 = vld [vmem:[%s3623 + $0x90] sm:$0xff]
      %v3643 = vld [vmem:[%s3623 + $0x98] sm:$0xff]
      %v3644 = vld [vmem:[%s3623 + $0xa0] sm:$0xff]
      %v3645 = vld [vmem:[%s3623 + $0xa8] sm:$0xff]
      %v3646 = vld [vmem:[%s3623 + $0xb0] sm:$0xff]
      %v3647 = vld [vmem:[%s3623 + $0xb8] sm:$0xff]
      %v3648 = vld [vmem:[%s3623 + $0xc0] sm:$0xff]
      %v3649 = vld [vmem:[%s3623 + $0xc8] sm:$0xff]
      %v3650 = vld [vmem:[%s3623 + $0xd0] sm:$0xff]
      %v3651 = vld [vmem:[%s3623 + $0xd8] sm:$0xff]
      %v3652 = vld [vmem:[%s3623 + $0xe0] sm:$0xff]
      %v3653 = vld [vmem:[%s3623 + $0xe8] sm:$0xff]
      %vm3654 = vcmask 982016
      %v3656 = vsel %vm3654, %v3571, 0
      %v3659 = vsel %vm3654, %v3572, 0
      %v3662 = vsel %vm3654, %v3573, 0
      %v3665 = vsel %vm3654, %v3574, 0
      %v3668 = vsel %vm3654, %v3575, 0
      %v3671 = vsel %vm3654, %v3576, 0
      %v3674 = vsel %vm3654, %v3577, 0
      %v3677 = vsel %vm3654, %v3578, 0
      %v3680 = vsel %vm3654, %v3579, 0
      %v3683 = vsel %vm3654, %v3580, 0
      %v3686 = vsel %vm3654, %v3581, 0
      %v3689 = vsel %vm3654, %v3582, 0
      %v3692 = vsel %vm3654, %v3583, 0
      %v3695 = vsel %vm3654, %v3584, 0
      %v3698 = vsel %vm3654, %v3585, 0
      %v3701 = vsel %vm3654, %v3586, 0
      %3703 = vmatpush.msra.mxu0 0.0
      %3704 = vmatpush.msra.mxu0 %v3652
      %3705 = vmatpush.msra.mxu0 %v3650
      %3706 = vmatpush.msra.mxu0 %v3648
      %3707 = vmatpush.msra.mxu0 %v3646
      %3708 = vmatpush.msra.mxu0 %v3644
      %3709 = vmatpush.msra.mxu0 %v3642
      %3710 = vmatpush.msra.mxu0 %v3640
      %3711 = vmatpush.msra.mxu0 %v3638
      %3712 = vmatpush.msra.mxu0 %v3636
      %3713 = vmatpush.msra.mxu0 %v3634
      %3714 = vmatpush.msra.mxu0 %v3632
      %3715 = vmatpush.msra.mxu0 %v3630
      %3716 = vmatpush.msra.mxu0 %v3628
      %3717 = vmatpush.msra.mxu0 %v3626
      %3718 = vmatpush.msra.mxu0 %v3624
      %3719 = vmatmul.f32.gmra.mxu0 %v3656
      %v3720 = vpop.f32.mrf.mxu0
      %v3721 = vadd.f32 0.0, %v3720
      %3722 = vmatmul.f32.gmra.mxu0 %v3659
      %v3723 = vpop.f32.mrf.mxu0
      %v3724 = vadd.f32 0.0, %v3723
      %3725 = vmatmul.f32.gmra.mxu0 %v3662
      %v3726 = vpop.f32.mrf.mxu0
      %v3727 = vadd.f32 0.0, %v3726
      %3728 = vmatmul.f32.gmra.mxu0 %v3665
      %v3729 = vpop.f32.mrf.mxu0
      %v3730 = vadd.f32 0.0, %v3729
      %3731 = vmatmul.f32.gmra.mxu0 %v3668
      %v3732 = vpop.f32.mrf.mxu0
      %v3733 = vadd.f32 0.0, %v3732
      %3734 = vmatmul.f32.gmra.mxu0 %v3671
      %v3735 = vpop.f32.mrf.mxu0
      %v3736 = vadd.f32 0.0, %v3735
      %3737 = vmatmul.f32.gmra.mxu0 %v3674
      %v3738 = vpop.f32.mrf.mxu0
      %v3739 = vadd.f32 0.0, %v3738
      %3740 = vmatmul.f32.gmra.mxu0 %v3677
      %v3741 = vpop.f32.mrf.mxu0
      %v3742 = vadd.f32 0.0, %v3741
      %3743 = vmatmul.f32.gmra.mxu0 %v3680
      %v3744 = vpop.f32.mrf.mxu0
      %v3745 = vadd.f32 0.0, %v3744
      %3746 = vmatmul.f32.gmra.mxu0 %v3683
      %v3747 = vpop.f32.mrf.mxu0
      %v3748 = vadd.f32 0.0, %v3747
      %3749 = vmatmul.f32.gmra.mxu0 %v3686
      %v3750 = vpop.f32.mrf.mxu0
      %v3751 = vadd.f32 0.0, %v3750
      %3752 = vmatmul.f32.gmra.mxu0 %v3689
      %v3753 = vpop.f32.mrf.mxu0
      %v3754 = vadd.f32 0.0, %v3753
      %3755 = vmatmul.f32.gmra.mxu0 %v3692
      %v3756 = vpop.f32.mrf.mxu0
      %v3757 = vadd.f32 0.0, %v3756
      %3758 = vmatmul.f32.gmra.mxu0 %v3695
      %v3759 = vpop.f32.mrf.mxu0
      %v3760 = vadd.f32 0.0, %v3759
      %3761 = vmatmul.f32.gmra.mxu0 %v3698
      %v3762 = vpop.f32.mrf.mxu0
      %v3763 = vadd.f32 0.0, %v3762
      %3764 = vmatmul.f32.gmra.mxu0 %v3701
      %v3765 = vpop.f32.mrf.mxu0
      %v3766 = vadd.f32 0.0, %v3765
      %3767 = vdwg.mxu0
      %3768 = vmatpush.msra.mxu0 0.0
      %3769 = vmatpush.msra.mxu0 %v3653
      %3770 = vmatpush.msra.mxu0 %v3651
      %3771 = vmatpush.msra.mxu0 %v3649
      %3772 = vmatpush.msra.mxu0 %v3647
      %3773 = vmatpush.msra.mxu0 %v3645
      %3774 = vmatpush.msra.mxu0 %v3643
      %3775 = vmatpush.msra.mxu0 %v3641
      %3776 = vmatpush.msra.mxu0 %v3639
      %3777 = vmatpush.msra.mxu0 %v3637
      %3778 = vmatpush.msra.mxu0 %v3635
      %3779 = vmatpush.msra.mxu0 %v3633
      %3780 = vmatpush.msra.mxu0 %v3631
      %3781 = vmatpush.msra.mxu0 %v3629
      %3782 = vmatpush.msra.mxu0 %v3627
      %3783 = vmatpush.msra.mxu0 %v3625
      %3784 = vmatmul.f32.gmra.mxu0 %v3656
      %v3785 = vpop.f32.mrf.mxu0
      %v3786 = vadd.f32 0.0, %v3785
      %3787 = vmatmul.f32.gmra.mxu0 %v3659
      %v3788 = vpop.f32.mrf.mxu0
      %v3789 = vadd.f32 0.0, %v3788
      %3790 = vmatmul.f32.gmra.mxu0 %v3662
      %v3791 = vpop.f32.mrf.mxu0
      %v3792 = vadd.f32 0.0, %v3791
      %3793 = vmatmul.f32.gmra.mxu0 %v3665
      %v3794 = vpop.f32.mrf.mxu0
      %v3795 = vadd.f32 0.0, %v3794
      %3796 = vmatmul.f32.gmra.mxu0 %v3668
      %v3797 = vpop.f32.mrf.mxu0
      %v3798 = vadd.f32 0.0, %v3797
      %3799 = vmatmul.f32.gmra.mxu0 %v3671
      %v3800 = vpop.f32.mrf.mxu0
      %v3801 = vadd.f32 0.0, %v3800
      %3802 = vmatmul.f32.gmra.mxu0 %v3674
      %v3803 = vpop.f32.mrf.mxu0
      %v3804 = vadd.f32 0.0, %v3803
      %3805 = vmatmul.f32.gmra.mxu0 %v3677
      %v3806 = vpop.f32.mrf.mxu0
      %v3807 = vadd.f32 0.0, %v3806
      %3808 = vmatmul.f32.gmra.mxu0 %v3680
      %v3809 = vpop.f32.mrf.mxu0
      %v3810 = vadd.f32 0.0, %v3809
      %3811 = vmatmul.f32.gmra.mxu0 %v3683
      %v3812 = vpop.f32.mrf.mxu0
      %v3813 = vadd.f32 0.0, %v3812
      %3814 = vmatmul.f32.gmra.mxu0 %v3686
      %v3815 = vpop.f32.mrf.mxu0
      %v3816 = vadd.f32 0.0, %v3815
      %3817 = vmatmul.f32.gmra.mxu0 %v3689
      %v3818 = vpop.f32.mrf.mxu0
      %v3819 = vadd.f32 0.0, %v3818
      %3820 = vmatmul.f32.gmra.mxu0 %v3692
      %v3821 = vpop.f32.mrf.mxu0
      %v3822 = vadd.f32 0.0, %v3821
      %3823 = vmatmul.f32.gmra.mxu0 %v3695
      %v3824 = vpop.f32.mrf.mxu0
      %v3825 = vadd.f32 0.0, %v3824
      %3826 = vmatmul.f32.gmra.mxu0 %v3698
      %v3827 = vpop.f32.mrf.mxu0
      %v3828 = vadd.f32 0.0, %v3827
      %3829 = vmatmul.f32.gmra.mxu0 %v3701
      %v3830 = vpop.f32.mrf.mxu0
      %v3831 = vadd.f32 0.0, %v3830
      %3832 = vdwg.mxu0
      %v3834 = vsel %vm3654, %v3569, 0
      %v3837 = vsel %vm3654, %v3570, 0
      %3839 = vmatpush.msra.mxu0 0.0
      %3840 = vmatpush.msra.mxu0 %v3621
      %3841 = vmatpush.msra.mxu0 %v3619
      %3842 = vmatpush.msra.mxu0 %v3617
      %3843 = vmatpush.msra.mxu0 %v3615
      %3844 = vmatpush.msra.mxu0 %v3613
      %3845 = vmatpush.msra.mxu0 %v3611
      %3846 = vmatpush.msra.mxu0 %v3609
      %3847 = vmatpush.msra.mxu0 %v3607
      %3848 = vmatpush.msra.mxu0 %v3605
      %3849 = vmatpush.msra.mxu0 %v3603
      %3850 = vmatpush.msra.mxu0 %v3601
      %3851 = vmatpush.msra.mxu0 %v3599
      %3852 = vmatpush.msra.mxu0 %v3597
      %3853 = vmatpush.msra.mxu0 %v3595
      %3854 = vmatpush.msra.mxu0 %v3593
      %3855 = vmatmul.f32.gmra.mxu0 %v3834
      %v3856 = vpop.f32.mrf.mxu0
      %v3857 = vadd.f32 %v3721, %v3856
      %3858 = vmatmul.f32.gmra.mxu0 %v3837
      %v3859 = vpop.f32.mrf.mxu0
      %v3860 = vadd.f32 %v3724, %v3859
      %3861 = vmatmul.f32.gmra.mxu0 %v3656
      %v3862 = vpop.f32.mrf.mxu0
      %v3863 = vadd.f32 %v3727, %v3862
      %3864 = vmatmul.f32.gmra.mxu0 %v3659
      %v3865 = vpop.f32.mrf.mxu0
      %v3866 = vadd.f32 %v3730, %v3865
      %3867 = vmatmul.f32.gmra.mxu0 %v3662
      %v3868 = vpop.f32.mrf.mxu0
      %v3869 = vadd.f32 %v3733, %v3868
      %3870 = vmatmul.f32.gmra.mxu0 %v3665
      %v3871 = vpop.f32.mrf.mxu0
      %v3872 = vadd.f32 %v3736, %v3871
      %3873 = vmatmul.f32.gmra.mxu0 %v3668
      %v3874 = vpop.f32.mrf.mxu0
      %v3875 = vadd.f32 %v3739, %v3874
      %3876 = vmatmul.f32.gmra.mxu0 %v3671
      %v3877 = vpop.f32.mrf.mxu0
      %v3878 = vadd.f32 %v3742, %v3877
      %3879 = vmatmul.f32.gmra.mxu0 %v3674
      %v3880 = vpop.f32.mrf.mxu0
      %v3881 = vadd.f32 %v3745, %v3880
      %3882 = vmatmul.f32.gmra.mxu0 %v3677
      %v3883 = vpop.f32.mrf.mxu0
      %v3884 = vadd.f32 %v3748, %v3883
      %3885 = vmatmul.f32.gmra.mxu0 %v3680
      %v3886 = vpop.f32.mrf.mxu0
      %v3887 = vadd.f32 %v3751, %v3886
      %3888 = vmatmul.f32.gmra.mxu0 %v3683
      %v3889 = vpop.f32.mrf.mxu0
      %v3890 = vadd.f32 %v3754, %v3889
      %3891 = vmatmul.f32.gmra.mxu0 %v3686
      %v3892 = vpop.f32.mrf.mxu0
      %v3893 = vadd.f32 %v3757, %v3892
      %3894 = vmatmul.f32.gmra.mxu0 %v3689
      %v3895 = vpop.f32.mrf.mxu0
      %v3896 = vadd.f32 %v3760, %v3895
      %3897 = vmatmul.f32.gmra.mxu0 %v3692
      %v3898 = vpop.f32.mrf.mxu0
      %v3899 = vadd.f32 %v3763, %v3898
      %3900 = vmatmul.f32.gmra.mxu0 %v3695
      %v3901 = vpop.f32.mrf.mxu0
      %v3902 = vadd.f32 %v3766, %v3901
      %3903 = vdwg.mxu0
      %3904 = vmatpush.msra.mxu0 0.0
      %3905 = vmatpush.msra.mxu0 %v3622
      %3906 = vmatpush.msra.mxu0 %v3620
      %3907 = vmatpush.msra.mxu0 %v3618
      %3908 = vmatpush.msra.mxu0 %v3616
      %3909 = vmatpush.msra.mxu0 %v3614
      %3910 = vmatpush.msra.mxu0 %v3612
      %3911 = vmatpush.msra.mxu0 %v3610
      %3912 = vmatpush.msra.mxu0 %v3608
      %3913 = vmatpush.msra.mxu0 %v3606
      %3914 = vmatpush.msra.mxu0 %v3604
      %3915 = vmatpush.msra.mxu0 %v3602
      %3916 = vmatpush.msra.mxu0 %v3600
      %3917 = vmatpush.msra.mxu0 %v3598
      %3918 = vmatpush.msra.mxu0 %v3596
      %3919 = vmatpush.msra.mxu0 %v3594
      %3920 = vmatmul.f32.gmra.mxu0 %v3834
      %v3921 = vpop.f32.mrf.mxu0
      %v3922 = vadd.f32 %v3786, %v3921
      %3923 = vmatmul.f32.gmra.mxu0 %v3837
      %v3924 = vpop.f32.mrf.mxu0
      %v3925 = vadd.f32 %v3789, %v3924
      %3926 = vmatmul.f32.gmra.mxu0 %v3656
      %v3927 = vpop.f32.mrf.mxu0
      %v3928 = vadd.f32 %v3792, %v3927
      %3929 = vmatmul.f32.gmra.mxu0 %v3659
      %v3930 = vpop.f32.mrf.mxu0
      %v3931 = vadd.f32 %v3795, %v3930
      %3932 = vmatmul.f32.gmra.mxu0 %v3662
      %v3933 = vpop.f32.mrf.mxu0
      %v3934 = vadd.f32 %v3798, %v3933
      %3935 = vmatmul.f32.gmra.mxu0 %v3665
      %v3936 = vpop.f32.mrf.mxu0
      %v3937 = vadd.f32 %v3801, %v3936
      %3938 = vmatmul.f32.gmra.mxu0 %v3668
      %v3939 = vpop.f32.mrf.mxu0
      %v3940 = vadd.f32 %v3804, %v3939
      %3941 = vmatmul.f32.gmra.mxu0 %v3671
      %v3942 = vpop.f32.mrf.mxu0
      %v3943 = vadd.f32 %v3807, %v3942
      %3944 = vmatmul.f32.gmra.mxu0 %v3674
      %v3945 = vpop.f32.mrf.mxu0
      %v3946 = vadd.f32 %v3810, %v3945
      %3947 = vmatmul.f32.gmra.mxu0 %v3677
      %v3948 = vpop.f32.mrf.mxu0
      %v3949 = vadd.f32 %v3813, %v3948
      %3950 = vmatmul.f32.gmra.mxu0 %v3680
      %v3951 = vpop.f32.mrf.mxu0
      %v3952 = vadd.f32 %v3816, %v3951
      %3953 = vmatmul.f32.gmra.mxu0 %v3683
      %v3954 = vpop.f32.mrf.mxu0
      %v3955 = vadd.f32 %v3819, %v3954
      %3956 = vmatmul.f32.gmra.mxu0 %v3686
      %v3957 = vpop.f32.mrf.mxu0
      %v3958 = vadd.f32 %v3822, %v3957
      %3959 = vmatmul.f32.gmra.mxu0 %v3689
      %v3960 = vpop.f32.mrf.mxu0
      %v3961 = vadd.f32 %v3825, %v3960
      %3962 = vmatmul.f32.gmra.mxu0 %v3692
      %v3963 = vpop.f32.mrf.mxu0
      %v3964 = vadd.f32 %v3828, %v3963
      %3965 = vmatmul.f32.gmra.mxu0 %v3695
      %v3966 = vpop.f32.mrf.mxu0
      %v3967 = vadd.f32 %v3831, %v3966
      %3968 = vdwg.mxu0
      %s3969 = scalar_lea.vmem %s3, 480
      %v3970 = vld [vmem:[%s3969] sm:$0xff]
      %v3971 = vld [vmem:[%s3969 + $0x8] sm:$0xff]
      %v3972 = vld [vmem:[%s3969 + $0x10] sm:$0xff]
      %v3973 = vld [vmem:[%s3969 + $0x18] sm:$0xff]
      %v3974 = vld [vmem:[%s3969 + $0x20] sm:$0xff]
      %v3975 = vld [vmem:[%s3969 + $0x28] sm:$0xff]
      %v3976 = vld [vmem:[%s3969 + $0x30] sm:$0xff]
      %v3977 = vld [vmem:[%s3969 + $0x38] sm:$0xff]
      %v3978 = vld [vmem:[%s3969 + $0x40] sm:$0xff]
      %v3979 = vld [vmem:[%s3969 + $0x48] sm:$0xff]
      %v3980 = vld [vmem:[%s3969 + $0x50] sm:$0xff]
      %v3981 = vld [vmem:[%s3969 + $0x58] sm:$0xff]
      %v3982 = vld [vmem:[%s3969 + $0x60] sm:$0xff]
      %v3983 = vld [vmem:[%s3969 + $0x68] sm:$0xff]
      %v3984 = vld [vmem:[%s3969 + $0x70] sm:$0xff]
      %v3985 = vld [vmem:[%s3969 + $0x78] sm:$0xff]
      %v3986 = vld [vmem:[%s3969 + $0x80] sm:$0xff]
      %v3987 = vld [vmem:[%s3969 + $0x88] sm:$0xff]
      %v3988 = vld [vmem:[%s3969 + $0x90] sm:$0xff]
      %v3989 = vld [vmem:[%s3969 + $0x98] sm:$0xff]
      %v3990 = vld [vmem:[%s3969 + $0xa0] sm:$0xff]
      %v3991 = vld [vmem:[%s3969 + $0xa8] sm:$0xff]
      %v3992 = vld [vmem:[%s3969 + $0xb0] sm:$0xff]
      %v3993 = vld [vmem:[%s3969 + $0xb8] sm:$0xff]
      %v3994 = vld [vmem:[%s3969 + $0xc0] sm:$0xff]
      %v3995 = vld [vmem:[%s3969 + $0xc8] sm:$0xff]
      %v3996 = vld [vmem:[%s3969 + $0xd0] sm:$0xff]
      %v3997 = vld [vmem:[%s3969 + $0xd8] sm:$0xff]
      %v3998 = vld [vmem:[%s3969 + $0xe0] sm:$0xff]
      %v3999 = vld [vmem:[%s3969 + $0xe8] sm:$0xff]
      %v4001 = vsel %vm3654, %v3587, 0
      %v4004 = vsel %vm3654, %v3588, 0
      %4006 = vmatpush.msra.mxu0 0.0
      %4007 = vmatpush.msra.mxu0 %v3998
      %4008 = vmatpush.msra.mxu0 %v3996
      %4009 = vmatpush.msra.mxu0 %v3994
      %4010 = vmatpush.msra.mxu0 %v3992
      %4011 = vmatpush.msra.mxu0 %v3990
      %4012 = vmatpush.msra.mxu0 %v3988
      %4013 = vmatpush.msra.mxu0 %v3986
      %4014 = vmatpush.msra.mxu0 %v3984
      %4015 = vmatpush.msra.mxu0 %v3982
      %4016 = vmatpush.msra.mxu0 %v3980
      %4017 = vmatpush.msra.mxu0 %v3978
      %4018 = vmatpush.msra.mxu0 %v3976
      %4019 = vmatpush.msra.mxu0 %v3974
      %4020 = vmatpush.msra.mxu0 %v3972
      %4021 = vmatpush.msra.mxu0 %v3970
      %4022 = vmatmul.f32.gmra.mxu0 %v3662
      %v4023 = vpop.f32.mrf.mxu0
      %v4024 = vadd.f32 0.0, %v4023
      %4025 = vmatmul.f32.gmra.mxu0 %v3665
      %v4026 = vpop.f32.mrf.mxu0
      %v4027 = vadd.f32 0.0, %v4026
      %4028 = vmatmul.f32.gmra.mxu0 %v3668
      %v4029 = vpop.f32.mrf.mxu0
      %v4030 = vadd.f32 0.0, %v4029
      %4031 = vmatmul.f32.gmra.mxu0 %v3671
      %v4032 = vpop.f32.mrf.mxu0
      %v4033 = vadd.f32 0.0, %v4032
      %4034 = vmatmul.f32.gmra.mxu0 %v3674
      %v4035 = vpop.f32.mrf.mxu0
      %v4036 = vadd.f32 0.0, %v4035
      %4037 = vmatmul.f32.gmra.mxu0 %v3677
      %v4038 = vpop.f32.mrf.mxu0
      %v4039 = vadd.f32 0.0, %v4038
      %4040 = vmatmul.f32.gmra.mxu0 %v3680
      %v4041 = vpop.f32.mrf.mxu0
      %v4042 = vadd.f32 0.0, %v4041
      %4043 = vmatmul.f32.gmra.mxu0 %v3683
      %v4044 = vpop.f32.mrf.mxu0
      %v4045 = vadd.f32 0.0, %v4044
      %4046 = vmatmul.f32.gmra.mxu0 %v3686
      %v4047 = vpop.f32.mrf.mxu0
      %v4048 = vadd.f32 0.0, %v4047
      %4049 = vmatmul.f32.gmra.mxu0 %v3689
      %v4050 = vpop.f32.mrf.mxu0
      %v4051 = vadd.f32 0.0, %v4050
      %4052 = vmatmul.f32.gmra.mxu0 %v3692
      %v4053 = vpop.f32.mrf.mxu0
      %v4054 = vadd.f32 0.0, %v4053
      %4055 = vmatmul.f32.gmra.mxu0 %v3695
      %v4056 = vpop.f32.mrf.mxu0
      %v4057 = vadd.f32 0.0, %v4056
      %4058 = vmatmul.f32.gmra.mxu0 %v3698
      %v4059 = vpop.f32.mrf.mxu0
      %v4060 = vadd.f32 0.0, %v4059
      %4061 = vmatmul.f32.gmra.mxu0 %v3701
      %v4062 = vpop.f32.mrf.mxu0
      %v4063 = vadd.f32 0.0, %v4062
      %4064 = vmatmul.f32.gmra.mxu0 %v4001
      %v4065 = vpop.f32.mrf.mxu0
      %v4066 = vadd.f32 0.0, %v4065
      %4067 = vmatmul.f32.gmra.mxu0 %v4004
      %v4068 = vpop.f32.mrf.mxu0
      %v4069 = vadd.f32 0.0, %v4068
      %4070 = vdwg.mxu0
      %4071 = vmatpush.msra.mxu0 0.0
      %4072 = vmatpush.msra.mxu0 %v3999
      %4073 = vmatpush.msra.mxu0 %v3997
      %4074 = vmatpush.msra.mxu0 %v3995
      %4075 = vmatpush.msra.mxu0 %v3993
      %4076 = vmatpush.msra.mxu0 %v3991
      %4077 = vmatpush.msra.mxu0 %v3989
      %4078 = vmatpush.msra.mxu0 %v3987
      %4079 = vmatpush.msra.mxu0 %v3985
      %4080 = vmatpush.msra.mxu0 %v3983
      %4081 = vmatpush.msra.mxu0 %v3981
      %4082 = vmatpush.msra.mxu0 %v3979
      %4083 = vmatpush.msra.mxu0 %v3977
      %4084 = vmatpush.msra.mxu0 %v3975
      %4085 = vmatpush.msra.mxu0 %v3973
      %4086 = vmatpush.msra.mxu0 %v3971
      %4087 = vmatmul.f32.gmra.mxu0 %v3662
      %v4088 = vpop.f32.mrf.mxu0
      %v4089 = vadd.f32 0.0, %v4088
      %4090 = vmatmul.f32.gmra.mxu0 %v3665
      %v4091 = vpop.f32.mrf.mxu0
      %v4092 = vadd.f32 0.0, %v4091
      %4093 = vmatmul.f32.gmra.mxu0 %v3668
      %v4094 = vpop.f32.mrf.mxu0
      %v4095 = vadd.f32 0.0, %v4094
      %4096 = vmatmul.f32.gmra.mxu0 %v3671
      %v4097 = vpop.f32.mrf.mxu0
      %v4098 = vadd.f32 0.0, %v4097
      %4099 = vmatmul.f32.gmra.mxu0 %v3674
      %v4100 = vpop.f32.mrf.mxu0
      %v4101 = vadd.f32 0.0, %v4100
      %4102 = vmatmul.f32.gmra.mxu0 %v3677
      %v4103 = vpop.f32.mrf.mxu0
      %v4104 = vadd.f32 0.0, %v4103
      %4105 = vmatmul.f32.gmra.mxu0 %v3680
      %v4106 = vpop.f32.mrf.mxu0
      %v4107 = vadd.f32 0.0, %v4106
      %4108 = vmatmul.f32.gmra.mxu0 %v3683
      %v4109 = vpop.f32.mrf.mxu0
      %v4110 = vadd.f32 0.0, %v4109
      %4111 = vmatmul.f32.gmra.mxu0 %v3686
      %v4112 = vpop.f32.mrf.mxu0
      %v4113 = vadd.f32 0.0, %v4112
      %4114 = vmatmul.f32.gmra.mxu0 %v3689
      %v4115 = vpop.f32.mrf.mxu0
      %v4116 = vadd.f32 0.0, %v4115
      %4117 = vmatmul.f32.gmra.mxu0 %v3692
      %v4118 = vpop.f32.mrf.mxu0
      %v4119 = vadd.f32 0.0, %v4118
      %4120 = vmatmul.f32.gmra.mxu0 %v3695
      %v4121 = vpop.f32.mrf.mxu0
      %v4122 = vadd.f32 0.0, %v4121
      %4123 = vmatmul.f32.gmra.mxu0 %v3698
      %v4124 = vpop.f32.mrf.mxu0
      %v4125 = vadd.f32 0.0, %v4124
      %4126 = vmatmul.f32.gmra.mxu0 %v3701
      %v4127 = vpop.f32.mrf.mxu0
      %v4128 = vadd.f32 0.0, %v4127
      %4129 = vmatmul.f32.gmra.mxu0 %v4001
      %v4130 = vpop.f32.mrf.mxu0
      %v4131 = vadd.f32 0.0, %v4130
      %4132 = vmatmul.f32.gmra.mxu0 %v4004
      %v4133 = vpop.f32.mrf.mxu0
      %v4134 = vadd.f32 0.0, %v4133
      %4135 = vdwg.mxu0
      %v4136 = vadd.f32 %v3857, %v4024
      %v4137 = vadd.f32 %v3922, %v4089
      %v4138 = vadd.f32 %v3860, %v4027
      %v4139 = vadd.f32 %v3925, %v4092
      %v4140 = vadd.f32 %v3863, %v4030
      %v4141 = vadd.f32 %v3928, %v4095
      %v4142 = vadd.f32 %v3866, %v4033
      %v4143 = vadd.f32 %v3931, %v4098
      %v4144 = vadd.f32 %v3869, %v4036
      %v4145 = vadd.f32 %v3934, %v4101
      %v4146 = vadd.f32 %v3872, %v4039
      %v4147 = vadd.f32 %v3937, %v4104
      %v4148 = vadd.f32 %v3875, %v4042
      %v4149 = vadd.f32 %v3940, %v4107
      %v4150 = vadd.f32 %v3878, %v4045
      %v4151 = vadd.f32 %v3943, %v4110
      %v4152 = vadd.f32 %v3881, %v4048
      %v4153 = vadd.f32 %v3946, %v4113
      %v4154 = vadd.f32 %v3884, %v4051
      %v4155 = vadd.f32 %v3949, %v4116
      %v4156 = vadd.f32 %v3887, %v4054
      %v4157 = vadd.f32 %v3952, %v4119
      %v4158 = vadd.f32 %v3890, %v4057
      %v4159 = vadd.f32 %v3955, %v4122
      %v4160 = vadd.f32 %v3893, %v4060
      %v4161 = vadd.f32 %v3958, %v4125
      %v4162 = vadd.f32 %v3896, %v4063
      %v4163 = vadd.f32 %v3961, %v4128
      %v4164 = vadd.f32 %v3899, %v4066
      %v4165 = vadd.f32 %v3964, %v4131
      %v4166 = vadd.f32 %v3902, %v4069
      %v4167 = vadd.f32 %v3967, %v4134
      %s4168 = scalar_lea.vmem %s3, 720
      %v4169 = vld [vmem:[%s4168] sm:$0xff]
      %v4170 = vld [vmem:[%s4168 + $0x8] sm:$0xff]
      %v4171 = vld [vmem:[%s4168 + $0x10] sm:$0xff]
      %v4172 = vld [vmem:[%s4168 + $0x18] sm:$0xff]
      %v4173 = vld [vmem:[%s4168 + $0x20] sm:$0xff]
      %v4174 = vld [vmem:[%s4168 + $0x28] sm:$0xff]
      %v4175 = vld [vmem:[%s4168 + $0x30] sm:$0xff]
      %v4176 = vld [vmem:[%s4168 + $0x38] sm:$0xff]
      %v4177 = vld [vmem:[%s4168 + $0x40] sm:$0xff]
      %v4178 = vld [vmem:[%s4168 + $0x48] sm:$0xff]
      %v4179 = vld [vmem:[%s4168 + $0x50] sm:$0xff]
      %v4180 = vld [vmem:[%s4168 + $0x58] sm:$0xff]
      %v4181 = vld [vmem:[%s4168 + $0x60] sm:$0xff]
      %v4182 = vld [vmem:[%s4168 + $0x68] sm:$0xff]
      %v4183 = vld [vmem:[%s4168 + $0x70] sm:$0xff]
      %v4184 = vld [vmem:[%s4168 + $0x78] sm:$0xff]
      %v4185 = vld [vmem:[%s4168 + $0x80] sm:$0xff]
      %v4186 = vld [vmem:[%s4168 + $0x88] sm:$0xff]
      %v4187 = vld [vmem:[%s4168 + $0x90] sm:$0xff]
      %v4188 = vld [vmem:[%s4168 + $0x98] sm:$0xff]
      %v4189 = vld [vmem:[%s4168 + $0xa0] sm:$0xff]
      %v4190 = vld [vmem:[%s4168 + $0xa8] sm:$0xff]
      %v4191 = vld [vmem:[%s4168 + $0xb0] sm:$0xff]
      %v4192 = vld [vmem:[%s4168 + $0xb8] sm:$0xff]
      %v4193 = vld [vmem:[%s4168 + $0xc0] sm:$0xff]
      %v4194 = vld [vmem:[%s4168 + $0xc8] sm:$0xff]
      %v4195 = vld [vmem:[%s4168 + $0xd0] sm:$0xff]
      %v4196 = vld [vmem:[%s4168 + $0xd8] sm:$0xff]
      %v4197 = vld [vmem:[%s4168 + $0xe0] sm:$0xff]
      %v4198 = vld [vmem:[%s4168 + $0xe8] sm:$0xff]
      %v4200 = vsel %vm3654, %v3589, 0
      %v4203 = vsel %vm3654, %v3590, 0
      %4205 = vmatpush.msra.mxu0 0.0
      %4206 = vmatpush.msra.mxu0 %v4197
      %4207 = vmatpush.msra.mxu0 %v4195
      %4208 = vmatpush.msra.mxu0 %v4193
      %4209 = vmatpush.msra.mxu0 %v4191
      %4210 = vmatpush.msra.mxu0 %v4189
      %4211 = vmatpush.msra.mxu0 %v4187
      %4212 = vmatpush.msra.mxu0 %v4185
      %4213 = vmatpush.msra.mxu0 %v4183
      %4214 = vmatpush.msra.mxu0 %v4181
      %4215 = vmatpush.msra.mxu0 %v4179
      %4216 = vmatpush.msra.mxu0 %v4177
      %4217 = vmatpush.msra.mxu0 %v4175
      %4218 = vmatpush.msra.mxu0 %v4173
      %4219 = vmatpush.msra.mxu0 %v4171
      %4220 = vmatpush.msra.mxu0 %v4169
      %4221 = vmatmul.f32.gmra.mxu0 %v3668
      %v4222 = vpop.f32.mrf.mxu0
      %v4223 = vadd.f32 0.0, %v4222
      %4224 = vmatmul.f32.gmra.mxu0 %v3671
      %v4225 = vpop.f32.mrf.mxu0
      %v4226 = vadd.f32 0.0, %v4225
      %4227 = vmatmul.f32.gmra.mxu0 %v3674
      %v4228 = vpop.f32.mrf.mxu0
      %v4229 = vadd.f32 0.0, %v4228
      %4230 = vmatmul.f32.gmra.mxu0 %v3677
      %v4231 = vpop.f32.mrf.mxu0
      %v4232 = vadd.f32 0.0, %v4231
      %4233 = vmatmul.f32.gmra.mxu0 %v3680
      %v4234 = vpop.f32.mrf.mxu0
      %v4235 = vadd.f32 0.0, %v4234
      %4236 = vmatmul.f32.gmra.mxu0 %v3683
      %v4237 = vpop.f32.mrf.mxu0
      %v4238 = vadd.f32 0.0, %v4237
      %4239 = vmatmul.f32.gmra.mxu0 %v3686
      %v4240 = vpop.f32.mrf.mxu0
      %v4241 = vadd.f32 0.0, %v4240
      %4242 = vmatmul.f32.gmra.mxu0 %v3689
      %v4243 = vpop.f32.mrf.mxu0
      %v4244 = vadd.f32 0.0, %v4243
      %4245 = vmatmul.f32.gmra.mxu0 %v3692
      %v4246 = vpop.f32.mrf.mxu0
      %v4247 = vadd.f32 0.0, %v4246
      %4248 = vmatmul.f32.gmra.mxu0 %v3695
      %v4249 = vpop.f32.mrf.mxu0
      %v4250 = vadd.f32 0.0, %v4249
      %4251 = vmatmul.f32.gmra.mxu0 %v3698
      %v4252 = vpop.f32.mrf.mxu0
      %v4253 = vadd.f32 0.0, %v4252
      %4254 = vmatmul.f32.gmra.mxu0 %v3701
      %v4255 = vpop.f32.mrf.mxu0
      %v4256 = vadd.f32 0.0, %v4255
      %4257 = vmatmul.f32.gmra.mxu0 %v4001
      %v4258 = vpop.f32.mrf.mxu0
      %v4259 = vadd.f32 0.0, %v4258
      %4260 = vmatmul.f32.gmra.mxu0 %v4004
      %v4261 = vpop.f32.mrf.mxu0
      %v4262 = vadd.f32 0.0, %v4261
      %4263 = vmatmul.f32.gmra.mxu0 %v4200
      %v4264 = vpop.f32.mrf.mxu0
      %v4265 = vadd.f32 0.0, %v4264
      %4266 = vmatmul.f32.gmra.mxu0 %v4203
      %v4267 = vpop.f32.mrf.mxu0
      %v4268 = vadd.f32 0.0, %v4267
      %4269 = vdwg.mxu0
      %4270 = vmatpush.msra.mxu0 0.0
      %4271 = vmatpush.msra.mxu0 %v4198
      %4272 = vmatpush.msra.mxu0 %v4196
      %4273 = vmatpush.msra.mxu0 %v4194
      %4274 = vmatpush.msra.mxu0 %v4192
      %4275 = vmatpush.msra.mxu0 %v4190
      %4276 = vmatpush.msra.mxu0 %v4188
      %4277 = vmatpush.msra.mxu0 %v4186
      %4278 = vmatpush.msra.mxu0 %v4184
      %4279 = vmatpush.msra.mxu0 %v4182
      %4280 = vmatpush.msra.mxu0 %v4180
      %4281 = vmatpush.msra.mxu0 %v4178
      %4282 = vmatpush.msra.mxu0 %v4176
      %4283 = vmatpush.msra.mxu0 %v4174
      %4284 = vmatpush.msra.mxu0 %v4172
      %4285 = vmatpush.msra.mxu0 %v4170
      %4286 = vmatmul.f32.gmra.mxu0 %v3668
      %v4287 = vpop.f32.mrf.mxu0
      %v4288 = vadd.f32 0.0, %v4287
      %4289 = vmatmul.f32.gmra.mxu0 %v3671
      %v4290 = vpop.f32.mrf.mxu0
      %v4291 = vadd.f32 0.0, %v4290
      %4292 = vmatmul.f32.gmra.mxu0 %v3674
      %v4293 = vpop.f32.mrf.mxu0
      %v4294 = vadd.f32 0.0, %v4293
      %4295 = vmatmul.f32.gmra.mxu0 %v3677
      %v4296 = vpop.f32.mrf.mxu0
      %v4297 = vadd.f32 0.0, %v4296
      %4298 = vmatmul.f32.gmra.mxu0 %v3680
      %v4299 = vpop.f32.mrf.mxu0
      %v4300 = vadd.f32 0.0, %v4299
      %4301 = vmatmul.f32.gmra.mxu0 %v3683
      %v4302 = vpop.f32.mrf.mxu0
      %v4303 = vadd.f32 0.0, %v4302
      %4304 = vmatmul.f32.gmra.mxu0 %v3686
      %v4305 = vpop.f32.mrf.mxu0
      %v4306 = vadd.f32 0.0, %v4305
      %4307 = vmatmul.f32.gmra.mxu0 %v3689
      %v4308 = vpop.f32.mrf.mxu0
      %v4309 = vadd.f32 0.0, %v4308
      %4310 = vmatmul.f32.gmra.mxu0 %v3692
      %v4311 = vpop.f32.mrf.mxu0
      %v4312 = vadd.f32 0.0, %v4311
      %4313 = vmatmul.f32.gmra.mxu0 %v3695
      %v4314 = vpop.f32.mrf.mxu0
      %v4315 = vadd.f32 0.0, %v4314
      %4316 = vmatmul.f32.gmra.mxu0 %v3698
      %v4317 = vpop.f32.mrf.mxu0
      %v4318 = vadd.f32 0.0, %v4317
      %4319 = vmatmul.f32.gmra.mxu0 %v3701
      %v4320 = vpop.f32.mrf.mxu0
      %v4321 = vadd.f32 0.0, %v4320
      %4322 = vmatmul.f32.gmra.mxu0 %v4001
      %v4323 = vpop.f32.mrf.mxu0
      %v4324 = vadd.f32 0.0, %v4323
      %4325 = vmatmul.f32.gmra.mxu0 %v4004
      %v4326 = vpop.f32.mrf.mxu0
      %v4327 = vadd.f32 0.0, %v4326
      %4328 = vmatmul.f32.gmra.mxu0 %v4200
      %v4329 = vpop.f32.mrf.mxu0
      %v4330 = vadd.f32 0.0, %v4329
      %4331 = vmatmul.f32.gmra.mxu0 %v4203
      %v4332 = vpop.f32.mrf.mxu0
      %v4333 = vadd.f32 0.0, %v4332
      %4334 = vdwg.mxu0
      %v4335 = vadd.f32 %v4136, %v4223
      %v4336 = vadd.f32 %v4137, %v4288
      %v4337 = vadd.f32 %v4138, %v4226
      %v4338 = vadd.f32 %v4139, %v4291
      %v4339 = vadd.f32 %v4140, %v4229
      %v4340 = vadd.f32 %v4141, %v4294
      %v4341 = vadd.f32 %v4142, %v4232
      %v4342 = vadd.f32 %v4143, %v4297
      %v4343 = vadd.f32 %v4144, %v4235
      %v4344 = vadd.f32 %v4145, %v4300
      %v4345 = vadd.f32 %v4146, %v4238
      %v4346 = vadd.f32 %v4147, %v4303
      %v4347 = vadd.f32 %v4148, %v4241
      %v4348 = vadd.f32 %v4149, %v4306
      %v4349 = vadd.f32 %v4150, %v4244
      %v4350 = vadd.f32 %v4151, %v4309
      %v4351 = vadd.f32 %v4152, %v4247
      %v4352 = vadd.f32 %v4153, %v4312
      %v4353 = vadd.f32 %v4154, %v4250
      %v4354 = vadd.f32 %v4155, %v4315
      %v4355 = vadd.f32 %v4156, %v4253
      %v4356 = vadd.f32 %v4157, %v4318
      %v4357 = vadd.f32 %v4158, %v4256
      %v4358 = vadd.f32 %v4159, %v4321
      %v4359 = vadd.f32 %v4160, %v4259
      %v4360 = vadd.f32 %v4161, %v4324
      %v4361 = vadd.f32 %v4162, %v4262
      %v4362 = vadd.f32 %v4163, %v4327
      %v4363 = vadd.f32 %v4164, %v4265
      %v4364 = vadd.f32 %v4165, %v4330
      %v4365 = vadd.f32 %v4166, %v4268
      %v4366 = vadd.f32 %v4167, %v4333
      %s4367 = scalar_lea.vmem %s3, 960
      %v4368 = vld [vmem:[%s4367] sm:$0xff]
      %v4369 = vld [vmem:[%s4367 + $0x8] sm:$0xff]
      %v4370 = vld [vmem:[%s4367 + $0x10] sm:$0xff]
      %v4371 = vld [vmem:[%s4367 + $0x18] sm:$0xff]
      %v4372 = vld [vmem:[%s4367 + $0x20] sm:$0xff]
      %v4373 = vld [vmem:[%s4367 + $0x28] sm:$0xff]
      %v4374 = vld [vmem:[%s4367 + $0x30] sm:$0xff]
      %v4375 = vld [vmem:[%s4367 + $0x38] sm:$0xff]
      %v4376 = vld [vmem:[%s4367 + $0x40] sm:$0xff]
      %v4377 = vld [vmem:[%s4367 + $0x48] sm:$0xff]
      %v4378 = vld [vmem:[%s4367 + $0x50] sm:$0xff]
      %v4379 = vld [vmem:[%s4367 + $0x58] sm:$0xff]
      %v4380 = vld [vmem:[%s4367 + $0x60] sm:$0xff]
      %v4381 = vld [vmem:[%s4367 + $0x68] sm:$0xff]
      %v4382 = vld [vmem:[%s4367 + $0x70] sm:$0xff]
      %v4383 = vld [vmem:[%s4367 + $0x78] sm:$0xff]
      %v4384 = vld [vmem:[%s4367 + $0x80] sm:$0xff]
      %v4385 = vld [vmem:[%s4367 + $0x88] sm:$0xff]
      %v4386 = vld [vmem:[%s4367 + $0x90] sm:$0xff]
      %v4387 = vld [vmem:[%s4367 + $0x98] sm:$0xff]
      %v4388 = vld [vmem:[%s4367 + $0xa0] sm:$0xff]
      %v4389 = vld [vmem:[%s4367 + $0xa8] sm:$0xff]
      %v4390 = vld [vmem:[%s4367 + $0xb0] sm:$0xff]
      %v4391 = vld [vmem:[%s4367 + $0xb8] sm:$0xff]
      %v4392 = vld [vmem:[%s4367 + $0xc0] sm:$0xff]
      %v4393 = vld [vmem:[%s4367 + $0xc8] sm:$0xff]
      %v4394 = vld [vmem:[%s4367 + $0xd0] sm:$0xff]
      %v4395 = vld [vmem:[%s4367 + $0xd8] sm:$0xff]
      %v4396 = vld [vmem:[%s4367 + $0xe0] sm:$0xff]
      %v4397 = vld [vmem:[%s4367 + $0xe8] sm:$0xff]
      %v4399 = vsel %vm3654, %v3591, 0
      %v4402 = vsel %vm3654, %v3592, 0
      %4404 = vmatpush.msra.mxu0 0.0
      %4405 = vmatpush.msra.mxu0 %v4396
      %4406 = vmatpush.msra.mxu0 %v4394
      %4407 = vmatpush.msra.mxu0 %v4392
      %4408 = vmatpush.msra.mxu0 %v4390
      %4409 = vmatpush.msra.mxu0 %v4388
      %4410 = vmatpush.msra.mxu0 %v4386
      %4411 = vmatpush.msra.mxu0 %v4384
      %4412 = vmatpush.msra.mxu0 %v4382
      %4413 = vmatpush.msra.mxu0 %v4380
      %4414 = vmatpush.msra.mxu0 %v4378
      %4415 = vmatpush.msra.mxu0 %v4376
      %4416 = vmatpush.msra.mxu0 %v4374
      %4417 = vmatpush.msra.mxu0 %v4372
      %4418 = vmatpush.msra.mxu0 %v4370
      %4419 = vmatpush.msra.mxu0 %v4368
      %4420 = vmatmul.f32.gmra.mxu0 %v3674
      %v4421 = vpop.f32.mrf.mxu0
      %v4422 = vadd.f32 0.0, %v4421
      %4423 = vmatmul.f32.gmra.mxu0 %v3677
      %v4424 = vpop.f32.mrf.mxu0
      %v4425 = vadd.f32 0.0, %v4424
      %4426 = vmatmul.f32.gmra.mxu0 %v3680
      %v4427 = vpop.f32.mrf.mxu0
      %v4428 = vadd.f32 0.0, %v4427
      %4429 = vmatmul.f32.gmra.mxu0 %v3683
      %v4430 = vpop.f32.mrf.mxu0
      %v4431 = vadd.f32 0.0, %v4430
      %4432 = vmatmul.f32.gmra.mxu0 %v3686
      %v4433 = vpop.f32.mrf.mxu0
      %v4434 = vadd.f32 0.0, %v4433
      %4435 = vmatmul.f32.gmra.mxu0 %v3689
      %v4436 = vpop.f32.mrf.mxu0
      %v4437 = vadd.f32 0.0, %v4436
      %4438 = vmatmul.f32.gmra.mxu0 %v3692
      %v4439 = vpop.f32.mrf.mxu0
      %v4440 = vadd.f32 0.0, %v4439
      %4441 = vmatmul.f32.gmra.mxu0 %v3695
      %v4442 = vpop.f32.mrf.mxu0
      %v4443 = vadd.f32 0.0, %v4442
      %4444 = vmatmul.f32.gmra.mxu0 %v3698
      %v4445 = vpop.f32.mrf.mxu0
      %v4446 = vadd.f32 0.0, %v4445
      %4447 = vmatmul.f32.gmra.mxu0 %v3701
      %v4448 = vpop.f32.mrf.mxu0
      %v4449 = vadd.f32 0.0, %v4448
      %4450 = vmatmul.f32.gmra.mxu0 %v4001
      %v4451 = vpop.f32.mrf.mxu0
      %v4452 = vadd.f32 0.0, %v4451
      %4453 = vmatmul.f32.gmra.mxu0 %v4004
      %v4454 = vpop.f32.mrf.mxu0
      %v4455 = vadd.f32 0.0, %v4454
      %4456 = vmatmul.f32.gmra.mxu0 %v4200
      %v4457 = vpop.f32.mrf.mxu0
      %v4458 = vadd.f32 0.0, %v4457
      %4459 = vmatmul.f32.gmra.mxu0 %v4203
      %v4460 = vpop.f32.mrf.mxu0
      %v4461 = vadd.f32 0.0, %v4460
      %4462 = vmatmul.f32.gmra.mxu0 %v4399
      %v4463 = vpop.f32.mrf.mxu0
      %v4464 = vadd.f32 0.0, %v4463
      %4465 = vmatmul.f32.gmra.mxu0 %v4402
      %v4466 = vpop.f32.mrf.mxu0
      %v4467 = vadd.f32 0.0, %v4466
      %4468 = vdwg.mxu0
      %4469 = vmatpush.msra.mxu0 0.0
      %4470 = vmatpush.msra.mxu0 %v4397
      %4471 = vmatpush.msra.mxu0 %v4395
      %4472 = vmatpush.msra.mxu0 %v4393
      %4473 = vmatpush.msra.mxu0 %v4391
      %4474 = vmatpush.msra.mxu0 %v4389
      %4475 = vmatpush.msra.mxu0 %v4387
      %4476 = vmatpush.msra.mxu0 %v4385
      %4477 = vmatpush.msra.mxu0 %v4383
      %4478 = vmatpush.msra.mxu0 %v4381
      %4479 = vmatpush.msra.mxu0 %v4379
      %4480 = vmatpush.msra.mxu0 %v4377
      %4481 = vmatpush.msra.mxu0 %v4375
      %4482 = vmatpush.msra.mxu0 %v4373
      %4483 = vmatpush.msra.mxu0 %v4371
      %4484 = vmatpush.msra.mxu0 %v4369
      %4485 = vmatmul.f32.gmra.mxu0 %v3674
      %v4486 = vpop.f32.mrf.mxu0
      %v4487 = vadd.f32 0.0, %v4486
      %4488 = vmatmul.f32.gmra.mxu0 %v3677
      %v4489 = vpop.f32.mrf.mxu0
      %v4490 = vadd.f32 0.0, %v4489
      %4491 = vmatmul.f32.gmra.mxu0 %v3680
      %v4492 = vpop.f32.mrf.mxu0
      %v4493 = vadd.f32 0.0, %v4492
      %4494 = vmatmul.f32.gmra.mxu0 %v3683
      %v4495 = vpop.f32.mrf.mxu0
      %v4496 = vadd.f32 0.0, %v4495
      %4497 = vmatmul.f32.gmra.mxu0 %v3686
      %v4498 = vpop.f32.mrf.mxu0
      %v4499 = vadd.f32 0.0, %v4498
      %4500 = vmatmul.f32.gmra.mxu0 %v3689
      %v4501 = vpop.f32.mrf.mxu0
      %v4502 = vadd.f32 0.0, %v4501
      %4503 = vmatmul.f32.gmra.mxu0 %v3692
      %v4504 = vpop.f32.mrf.mxu0
      %v4505 = vadd.f32 0.0, %v4504
      %4506 = vmatmul.f32.gmra.mxu0 %v3695
      %v4507 = vpop.f32.mrf.mxu0
      %v4508 = vadd.f32 0.0, %v4507
      %4509 = vmatmul.f32.gmra.mxu0 %v3698
      %v4510 = vpop.f32.mrf.mxu0
      %v4511 = vadd.f32 0.0, %v4510
      %4512 = vmatmul.f32.gmra.mxu0 %v3701
      %v4513 = vpop.f32.mrf.mxu0
      %v4514 = vadd.f32 0.0, %v4513
      %4515 = vmatmul.f32.gmra.mxu0 %v4001
      %v4516 = vpop.f32.mrf.mxu0
      %v4517 = vadd.f32 0.0, %v4516
      %4518 = vmatmul.f32.gmra.mxu0 %v4004
      %v4519 = vpop.f32.mrf.mxu0
      %v4520 = vadd.f32 0.0, %v4519
      %4521 = vmatmul.f32.gmra.mxu0 %v4200
      %v4522 = vpop.f32.mrf.mxu0
      %v4523 = vadd.f32 0.0, %v4522
      %4524 = vmatmul.f32.gmra.mxu0 %v4203
      %v4525 = vpop.f32.mrf.mxu0
      %v4526 = vadd.f32 0.0, %v4525
      %4527 = vmatmul.f32.gmra.mxu0 %v4399
      %v4528 = vpop.f32.mrf.mxu0
      %v4529 = vadd.f32 0.0, %v4528
      %4530 = vmatmul.f32.gmra.mxu0 %v4402
      %v4531 = vpop.f32.mrf.mxu0
      %v4532 = vadd.f32 0.0, %v4531
      %4533 = vdwg.mxu0
      %v4534 = vadd.f32 %v4335, %v4422
      %v4535 = vadd.f32 %v4336, %v4487
      %v4536 = vadd.f32 %v4337, %v4425
      %v4537 = vadd.f32 %v4338, %v4490
      %v4538 = vadd.f32 %v4339, %v4428
      %v4539 = vadd.f32 %v4340, %v4493
      %v4540 = vadd.f32 %v4341, %v4431
      %v4541 = vadd.f32 %v4342, %v4496
      %v4542 = vadd.f32 %v4343, %v4434
      %v4543 = vadd.f32 %v4344, %v4499
      %v4544 = vadd.f32 %v4345, %v4437
      %v4545 = vadd.f32 %v4346, %v4502
      %v4546 = vadd.f32 %v4347, %v4440
      %v4547 = vadd.f32 %v4348, %v4505
      %v4548 = vadd.f32 %v4349, %v4443
      %v4549 = vadd.f32 %v4350, %v4508
      %v4550 = vadd.f32 %v4351, %v4446
      %v4551 = vadd.f32 %v4352, %v4511
      %v4552 = vadd.f32 %v4353, %v4449
      %v4553 = vadd.f32 %v4354, %v4514
      %v4554 = vadd.f32 %v4355, %v4452
      %v4555 = vadd.f32 %v4356, %v4517
      %v4556 = vadd.f32 %v4357, %v4455
      %v4557 = vadd.f32 %v4358, %v4520
      %v4558 = vadd.f32 %v4359, %v4458
      %v4559 = vadd.f32 %v4360, %v4523
      %v4560 = vadd.f32 %v4361, %v4461
      %v4561 = vadd.f32 %v4362, %v4526
      %v4562 = vadd.f32 %v4363, %v4464
      %v4563 = vadd.f32 %v4364, %v4529
      %v4564 = vadd.f32 %v4365, %v4467
      %v4565 = vadd.f32 %v4366, %v4532
      %4598 = vrot.lane.b32.xlu0 %v4534, 48
      %v4599 = vpop.permute.xlu0 %4598
      %4600 = vrot.lane.b32.xlu0 %v4535, 48
      %v4601 = vpop.permute.xlu0 %4600
      %4602 = vrot.lane.b32.xlu0 %v4536, 48
      %v4603 = vpop.permute.xlu0 %4602
      %4604 = vrot.lane.b32.xlu0 %v4537, 48
      %v4605 = vpop.permute.xlu0 %4604
      %4606 = vrot.lane.b32.xlu0 %v4538, 48
      %v4607 = vpop.permute.xlu0 %4606
      %4608 = vrot.lane.b32.xlu0 %v4539, 48
      %v4609 = vpop.permute.xlu0 %4608
      %4610 = vrot.lane.b32.xlu0 %v4540, 48
      %v4611 = vpop.permute.xlu0 %4610
      %4612 = vrot.lane.b32.xlu0 %v4541, 48
      %v4613 = vpop.permute.xlu0 %4612
      %4614 = vrot.lane.b32.xlu0 %v4542, 48
      %v4615 = vpop.permute.xlu0 %4614
      %4616 = vrot.lane.b32.xlu0 %v4543, 48
      %v4617 = vpop.permute.xlu0 %4616
      %4618 = vrot.lane.b32.xlu0 %v4544, 48
      %v4619 = vpop.permute.xlu0 %4618
      %4620 = vrot.lane.b32.xlu0 %v4545, 48
      %v4621 = vpop.permute.xlu0 %4620
      %4622 = vrot.lane.b32.xlu0 %v4546, 48
      %v4623 = vpop.permute.xlu0 %4622
      %4624 = vrot.lane.b32.xlu0 %v4547, 48
      %v4625 = vpop.permute.xlu0 %4624
      %4626 = vrot.lane.b32.xlu0 %v4548, 48
      %v4627 = vpop.permute.xlu0 %4626
      %4628 = vrot.lane.b32.xlu0 %v4549, 48
      %v4629 = vpop.permute.xlu0 %4628
      %4630 = vrot.lane.b32.xlu0 %v4550, 48
      %v4631 = vpop.permute.xlu0 %4630
      %4632 = vrot.lane.b32.xlu0 %v4551, 48
      %v4633 = vpop.permute.xlu0 %4632
      %4634 = vrot.lane.b32.xlu0 %v4552, 48
      %v4635 = vpop.permute.xlu0 %4634
      %4636 = vrot.lane.b32.xlu0 %v4553, 48
      %v4637 = vpop.permute.xlu0 %4636
      %4638 = vrot.lane.b32.xlu0 %v4554, 48
      %v4639 = vpop.permute.xlu0 %4638
      %4640 = vrot.lane.b32.xlu0 %v4555, 48
      %v4641 = vpop.permute.xlu0 %4640
      %4642 = vrot.lane.b32.xlu0 %v4556, 48
      %v4643 = vpop.permute.xlu0 %4642
      %4644 = vrot.lane.b32.xlu0 %v4557, 48
      %v4645 = vpop.permute.xlu0 %4644
      %4646 = vrot.lane.b32.xlu0 %v4558, 48
      %v4647 = vpop.permute.xlu0 %4646
      %4648 = vrot.lane.b32.xlu0 %v4559, 48
      %v4649 = vpop.permute.xlu0 %4648
      %4650 = vrot.lane.b32.xlu0 %v4560, 48
      %v4651 = vpop.permute.xlu0 %4650
      %4652 = vrot.lane.b32.xlu0 %v4561, 48
      %v4653 = vpop.permute.xlu0 %4652
      %4654 = vrot.lane.b32.xlu0 %v4562, 48
      %v4655 = vpop.permute.xlu0 %4654
      %4656 = vrot.lane.b32.xlu0 %v4563, 48
      %v4657 = vpop.permute.xlu0 %4656
      %4658 = vrot.lane.b32.xlu0 %v4564, 48
      %v4659 = vpop.permute.xlu0 %4658
      %4660 = vrot.lane.b32.xlu0 %v4565, 48
      %v4661 = vpop.permute.xlu0 %4660
      %vm4662 = vcmask 392192
      %v4663 = vsel %vm4662, %v4599, %v4601
      %v4664 = vsel %vm4662, %v4603, %v4605
      %v4665 = vsel %vm4662, %v4607, %v4609
      %v4666 = vsel %vm4662, %v4611, %v4613
      %v4667 = vsel %vm4662, %v4615, %v4617
      %v4668 = vsel %vm4662, %v4619, %v4621
      %v4669 = vsel %vm4662, %v4623, %v4625
      %v4670 = vsel %vm4662, %v4627, %v4629
      %v4671 = vsel %vm4662, %v4631, %v4633
      %v4672 = vsel %vm4662, %v4635, %v4637
      %v4673 = vsel %vm4662, %v4639, %v4641
      %v4674 = vsel %vm4662, %v4643, %v4645
      %v4675 = vsel %vm4662, %v4647, %v4649
      %v4676 = vsel %vm4662, %v4651, %v4653
      %v4677 = vsel %vm4662, %v4655, %v4657
      %v4678 = vsel %vm4662, %v4659, %v4661
      %v4695 = vmax.f32 %v4534, %v4663
      %v4696 = vmax.f32 %v4536, %v4664
      %v4697 = vmax.f32 %v4538, %v4665
      %v4698 = vmax.f32 %v4540, %v4666
      %v4699 = vmax.f32 %v4542, %v4667
      %v4700 = vmax.f32 %v4544, %v4668
      %v4701 = vmax.f32 %v4546, %v4669
      %v4702 = vmax.f32 %v4548, %v4670
      %v4703 = vmax.f32 %v4550, %v4671
      %v4704 = vmax.f32 %v4552, %v4672
      %v4705 = vmax.f32 %v4554, %v4673
      %v4706 = vmax.f32 %v4556, %v4674
      %v4707 = vmax.f32 %v4558, %v4675
      %v4708 = vmax.f32 %v4560, %v4676
      %v4709 = vmax.f32 %v4562, %v4677
      %v4710 = vmax.f32 %v4564, %v4678
      %v4711 = vmax.f32 %v4695, %v4697
      %v4712 = vmax.f32 %v4696, %v4698
      %v4713 = vmax.f32 %v4699, %v4701
      %v4714 = vmax.f32 %v4700, %v4702
      %v4715 = vmax.f32 %v4703, %v4705
      %v4716 = vmax.f32 %v4704, %v4706
      %v4717 = vmax.f32 %v4707, %v4709
      %v4718 = vmax.f32 %v4708, %v4710
      %v4719 = vld [vmem:[%s4] sm:$0x1]
      %v4721 = vperm.slane %v4719, 0
      %v4723 = vadd.f32 %v4711, %v4721
      %v4724 = vadd.f32 %v4712, %v4721
      %v4725 = vadd.f32 %v4713, %v4721
      %v4726 = vadd.f32 %v4714, %v4721
      %v4727 = vadd.f32 %v4715, %v4721
      %v4728 = vadd.f32 %v4716, %v4721
      %v4729 = vadd.f32 %v4717, %v4721
      %v4730 = vadd.f32 %v4718, %v4721
      %v4731 = vmax.f32 %v4723, 0.0
      %v4732 = vmax.f32 %v4724, 0.0
      %v4733 = vmax.f32 %v4725, 0.0
      %v4734 = vmax.f32 %v4726, 0.0
      %v4735 = vmax.f32 %v4727, 0.0
      %v4736 = vmax.f32 %v4728, 0.0
      %v4737 = vmax.f32 %v4729, 0.0
      %v4738 = vmax.f32 %v4730, 0.0
      %v4739 = vld [vmem:[%s5] sm:$0xff]
      %v4740 = vld [vmem:[%s5 + $0x8] sm:$0xff]
      %v4741 = vld [vmem:[%s5 + $0x10] sm:$0xff]
      %v4742 = vld [vmem:[%s5 + $0x18] sm:$0xff]
      %v4743 = vld [vmem:[%s5 + $0x20] sm:$0xff]
      %v4744 = vld [vmem:[%s5 + $0x28] sm:$0xff]
      %v4745 = vld [vmem:[%s5 + $0x30] sm:$0xff]
      %v4746 = vld [vmem:[%s5 + $0x38] sm:$0xff]
      %v4747 = vld [vmem:[%s5 + $0x40] sm:$0xff]
      %v4748 = vld [vmem:[%s5 + $0x48] sm:$0xff]
      %s4749 = scalar_lea.vmem %s5, 80
      %v4750 = vld [vmem:[%s4749] sm:$0xff]
      %v4751 = vld [vmem:[%s4749 + $0x8] sm:$0xff]
      %v4752 = vld [vmem:[%s4749 + $0x10] sm:$0xff]
      %v4753 = vld [vmem:[%s4749 + $0x18] sm:$0xff]
      %v4754 = vld [vmem:[%s4749 + $0x20] sm:$0xff]
      %v4755 = vld [vmem:[%s4749 + $0x28] sm:$0xff]
      %v4756 = vld [vmem:[%s4749 + $0x30] sm:$0xff]
      %v4757 = vld [vmem:[%s4749 + $0x38] sm:$0xff]
      %v4758 = vld [vmem:[%s4749 + $0x40] sm:$0xff]
      %v4759 = vld [vmem:[%s4749 + $0x48] sm:$0xff]
      %vm4760 = vcmask 654336
      %v4762 = vsel %vm4760, %v4733, 0
      %v4765 = vsel %vm4760, %v4734, 0
      %4767 = vmatpush.msra.mxu0 0.0
      %4768 = vmatpush.msra.mxu0 0.0
      %4769 = vmatpush.msra.mxu0 0.0
      %4770 = vmatpush.msra.mxu0 0.0
      %4771 = vmatpush.msra.mxu0 0.0
      %4772 = vmatpush.msra.mxu0 0.0
      %4773 = vmatpush.msra.mxu0 %v4759
      %4774 = vmatpush.msra.mxu0 %v4758
      %4775 = vmatpush.msra.mxu0 %v4757
      %4776 = vmatpush.msra.mxu0 %v4756
      %4777 = vmatpush.msra.mxu0 %v4755
      %4778 = vmatpush.msra.mxu0 %v4754
      %4779 = vmatpush.msra.mxu0 %v4753
      %4780 = vmatpush.msra.mxu0 %v4752
      %4781 = vmatpush.msra.mxu0 %v4751
      %4782 = vmatpush.msra.mxu0 %v4750
      %4783 = vmatmul.f32.gmra.mxu0 %v4762
      %v4784 = vpop.f32.mrf.mxu0
      %v4785 = vadd.f32 0.0, %v4784
      %4786 = vmatmul.f32.gmra.mxu0 %v4765
      %v4787 = vpop.f32.mrf.mxu0
      %v4788 = vadd.f32 0.0, %v4787
      %4789 = vdwg.mxu0
      %v4791 = vsel %vm4760, %v4731, 0
      %v4794 = vsel %vm4760, %v4732, 0
      %4796 = vmatpush.msra.mxu0 0.0
      %4797 = vmatpush.msra.mxu0 0.0
      %4798 = vmatpush.msra.mxu0 0.0
      %4799 = vmatpush.msra.mxu0 0.0
      %4800 = vmatpush.msra.mxu0 0.0
      %4801 = vmatpush.msra.mxu0 0.0
      %4802 = vmatpush.msra.mxu0 %v4748
      %4803 = vmatpush.msra.mxu0 %v4747
      %4804 = vmatpush.msra.mxu0 %v4746
      %4805 = vmatpush.msra.mxu0 %v4745
      %4806 = vmatpush.msra.mxu0 %v4744
      %4807 = vmatpush.msra.mxu0 %v4743
      %4808 = vmatpush.msra.mxu0 %v4742
      %4809 = vmatpush.msra.mxu0 %v4741
      %4810 = vmatpush.msra.mxu0 %v4740
      %4811 = vmatpush.msra.mxu0 %v4739
      %4812 = vmatmul.f32.gmra.mxu0 %v4791
      %v4813 = vpop.f32.mrf.mxu0
      %v4814 = vadd.f32 %v4785, %v4813
      %4815 = vmatmul.f32.gmra.mxu0 %v4794
      %v4816 = vpop.f32.mrf.mxu0
      %v4817 = vadd.f32 %v4788, %v4816
      %4818 = vdwg.mxu0
      %s4819 = scalar_lea.vmem %s5, 160
      %v4820 = vld [vmem:[%s4819] sm:$0xff]
      %v4821 = vld [vmem:[%s4819 + $0x8] sm:$0xff]
      %v4822 = vld [vmem:[%s4819 + $0x10] sm:$0xff]
      %v4823 = vld [vmem:[%s4819 + $0x18] sm:$0xff]
      %v4824 = vld [vmem:[%s4819 + $0x20] sm:$0xff]
      %v4825 = vld [vmem:[%s4819 + $0x28] sm:$0xff]
      %v4826 = vld [vmem:[%s4819 + $0x30] sm:$0xff]
      %v4827 = vld [vmem:[%s4819 + $0x38] sm:$0xff]
      %v4828 = vld [vmem:[%s4819 + $0x40] sm:$0xff]
      %v4829 = vld [vmem:[%s4819 + $0x48] sm:$0xff]
      %v4831 = vsel %vm4760, %v4735, 0
      %v4834 = vsel %vm4760, %v4736, 0
      %4836 = vmatpush.msra.mxu0 0.0
      %4837 = vmatpush.msra.mxu0 0.0
      %4838 = vmatpush.msra.mxu0 0.0
      %4839 = vmatpush.msra.mxu0 0.0
      %4840 = vmatpush.msra.mxu0 0.0
      %4841 = vmatpush.msra.mxu0 0.0
      %4842 = vmatpush.msra.mxu0 %v4829
      %4843 = vmatpush.msra.mxu0 %v4828
      %4844 = vmatpush.msra.mxu0 %v4827
      %4845 = vmatpush.msra.mxu0 %v4826
      %4846 = vmatpush.msra.mxu0 %v4825
      %4847 = vmatpush.msra.mxu0 %v4824
      %4848 = vmatpush.msra.mxu0 %v4823
      %4849 = vmatpush.msra.mxu0 %v4822
      %4850 = vmatpush.msra.mxu0 %v4821
      %4851 = vmatpush.msra.mxu0 %v4820
      %4852 = vmatmul.f32.gmra.mxu0 %v4831
      %v4853 = vpop.f32.mrf.mxu0
      %v4854 = vadd.f32 0.0, %v4853
      %4855 = vmatmul.f32.gmra.mxu0 %v4834
      %v4856 = vpop.f32.mrf.mxu0
      %v4857 = vadd.f32 0.0, %v4856
      %4858 = vdwg.mxu0
      %v4859 = vadd.f32 %v4814, %v4854
      %v4860 = vadd.f32 %v4817, %v4857
      %s4861 = scalar_lea.vmem %s5, 240
      %v4862 = vld [vmem:[%s4861] sm:$0xff]
      %v4863 = vld [vmem:[%s4861 + $0x8] sm:$0xff]
      %v4864 = vld [vmem:[%s4861 + $0x10] sm:$0xff]
      %v4865 = vld [vmem:[%s4861 + $0x18] sm:$0xff]
      %v4866 = vld [vmem:[%s4861 + $0x20] sm:$0xff]
      %v4867 = vld [vmem:[%s4861 + $0x28] sm:$0xff]
      %v4868 = vld [vmem:[%s4861 + $0x30] sm:$0xff]
      %v4869 = vld [vmem:[%s4861 + $0x38] sm:$0xff]
      %v4870 = vld [vmem:[%s4861 + $0x40] sm:$0xff]
      %v4871 = vld [vmem:[%s4861 + $0x48] sm:$0xff]
      %v4873 = vsel %vm4760, %v4737, 0
      %v4876 = vsel %vm4760, %v4738, 0
      %4878 = vmatpush.msra.mxu0 0.0
      %4879 = vmatpush.msra.mxu0 0.0
      %4880 = vmatpush.msra.mxu0 0.0
      %4881 = vmatpush.msra.mxu0 0.0
      %4882 = vmatpush.msra.mxu0 0.0
      %4883 = vmatpush.msra.mxu0 0.0
      %4884 = vmatpush.msra.mxu0 %v4871
      %4885 = vmatpush.msra.mxu0 %v4870
      %4886 = vmatpush.msra.mxu0 %v4869
      %4887 = vmatpush.msra.mxu0 %v4868
      %4888 = vmatpush.msra.mxu0 %v4867
      %4889 = vmatpush.msra.mxu0 %v4866
      %4890 = vmatpush.msra.mxu0 %v4865
      %4891 = vmatpush.msra.mxu0 %v4864
      %4892 = vmatpush.msra.mxu0 %v4863
      %4893 = vmatpush.msra.mxu0 %v4862
      %4894 = vmatmul.f32.gmra.mxu0 %v4873
      %v4895 = vpop.f32.mrf.mxu0
      %v4896 = vadd.f32 0.0, %v4895
      %4897 = vmatmul.f32.gmra.mxu0 %v4876
      %v4898 = vpop.f32.mrf.mxu0
      %v4899 = vadd.f32 0.0, %v4898
      %4900 = vdwg.mxu0
      %v4901 = vadd.f32 %v4859, %v4896
      %v4902 = vadd.f32 %v4860, %v4899
      %v4903 = vld [vmem:[%s6] sm:$0x1]
      %v4905 = vperm.slane %v4903, 0
      %v4907 = vadd.f32 %v4901, %v4905
      %v4908 = vadd.f32 %v4902, %v4905
      %v4909 = vmax.f32 %v4907, 0.0
      %v4910 = vmax.f32 %v4908, 0.0
      %v4911 = vld [vmem:[%s7] sm:$0xff]
      %v4912 = vld [vmem:[%s7 + $0x8] sm:$0xff]
      %v4913 = vld [vmem:[%s7 + $0x10] sm:$0xff]
      %v4914 = vld [vmem:[%s7 + $0x18] sm:$0xff]
      %v4915 = vld [vmem:[%s7 + $0x20] sm:$0xff]
      %v4916 = vld [vmem:[%s7 + $0x28] sm:$0xff]
      %v4917 = vld [vmem:[%s7 + $0x30] sm:$0x3]
      %v4918 = vld [vmem:[%s8] sm:$0x1]
      %v4920 = vperm.slane %v4918, 0
      %vm4922 = vcmask 408576
      %v4924 = vsel %vm4922, %v4909, 0
      %v4927 = vsel %vm4922, %v4910, 0
      %vm4929 = vcmask 1041408
      %v4931 = vsel %vm4929, %v4917, 0
      %4933 = vmatpush.msra.mxu0 0.0
      %4934 = vmatpush.msra.mxu0 0.0
      %4935 = vmatpush.msra.mxu0 0.0
      %4936 = vmatpush.msra.mxu0 0.0
      %4937 = vmatpush.msra.mxu0 0.0
      %4938 = vmatpush.msra.mxu0 0.0
      %4939 = vmatpush.msra.mxu0 0.0
      %4940 = vmatpush.msra.mxu0 0.0
      %4941 = vmatpush.msra.mxu0 0.0
      %4942 = vmatpush.msra.mxu0 %v4931
      %4943 = vmatpush.msra.mxu0 %v4916
      %4944 = vmatpush.msra.mxu0 %v4915
      %4945 = vmatpush.msra.mxu0 %v4914
      %4946 = vmatpush.msra.mxu0 %v4913
      %4947 = vmatpush.msra.mxu0 %v4912
      %4948 = vmatpush.msra.mxu0 %v4911
      %4949 = vmatmul.f32.gmra.mxu0 %v4924
      %v4950 = vpop.f32.mrf.mxu0
      %v4951 = vadd.f32 %v4920, %v4950
      %4952 = vmatmul.f32.gmra.mxu0 %v4927
      %v4953 = vpop.f32.mrf.mxu0
      %v4954 = vadd.f32 %v4920, %v4953
      %4955 = vdwg.mxu0
      %vm4956 = vcmask 80896
      %v4957 = vsel %vm4956, %v4951, -inf
      %4958 = vmax.xlane.f32.xlu0 %v4957
      %v4959 = vpop.xlane.xlu0 %4958
      %v4960 = vsel %vm4956, %v4954, -inf
      %4961 = vmax.xlane.f32.xlu0 %v4960
      %v4962 = vpop.xlane.xlu0 %4961
      %v4963 = vsub.f32 %v4951, %v4959
      %v4964 = vsub.f32 %v4954, %v4962
      %v4965 = vmul.f32 %v4963, 1.442695
      %v4966 = vpow.pop %v4965
      %v4967 = vmul.f32 %v4964, 1.442695
      %v4968 = vpow.pop %v4967
      %v4969 = vsel %vm4956, %v4966, 0.0
      %4970 = vadd.xlane.f32.xlu0 %v4969
      %v4971 = vpop.xlane.xlu0 %4970
      %v4972 = vsel %vm4956, %v4968, 0.0
      %4973 = vadd.xlane.f32.xlu0 %v4972
      %v4974 = vpop.xlane.xlu0 %4973
      %v4975 = vlog2.pop %v4971
      %v4976 = vmul.f32 %v4975, 0.6931472
      %v4977 = vlog2.pop %v4974
      %v4978 = vmul.f32 %v4977, 0.6931472
      %v4979 = vadd.f32 %v4976, %v4959
      %v4980 = vadd.f32 %v4978, %v4962
      %v4981 = vsub.f32 %v4951, %v4979
      %v4982 = vsub.f32 %v4954, %v4980
      %4983 = vst.msk [vmem:[%s332] sm:$0xff] %vm4956, %v4981
      %4984 = vst.msk [vmem:[%s332 + $0x8] sm:$0xff] %vm4956, %v4982
      %s4985 = smul.u32 2, %s20
      %p4986 = scmp.lt.s32.totalorder %s4985, 3
      %s4987 = scalar_select %p4986, %s4985, 3
      %s4988 = smul.addr %s4987, 8
      %s4989 = scalar_lea.vmem %s9, %s4988
      // Predicated region
      $region57: #{net0_forward.1} parent=55 // pred_check
        %p4990 = pneg %p232
      $region58: #{net0_forward.1} parent=55 // pred_check_branch
        %4992 = sbr.rel (%p4990) target = $region60
      $region59: #{net0_forward.1} parent=55 // pred_region
        %s4993 = smul.u32 2, %s20
      $region60: #{net0_forward.1} parent=55 // pred_fallthru
        _
    $region56: #{net0_forward.1} parent=5 // pred_fallthru
      _
    %p4994 = scmp.le.s32.totalorder 2, %s15
    // Predicated region
    $region61: #{net0_forward.1} parent=5 // pred_check
      %p4995 = pneg %p4994
    $region62: #{net0_forward.1} parent=5 // pred_check_branch
      %4997 = sbr.rel (%p4995) target = $region64
    $region63: #{net0_forward.1} parent=5 // pred_region
      %s4998 = ssub.s32 %s15, 2
      // Predicated region
      $region65: #{net0_forward.1} parent=63 // pred_check
        %p4999 = pneg %p238
      $region66: #{net0_forward.1} parent=63 // pred_check_branch
        %5001 = sbr.rel (%p4999) target = $region68
      $region67: #{net0_forward.1} parent=63 // pred_region
        %s5002 = smul.u32 2, %s21
        %p5003 = scmp.lt.s32.totalorder %s5002, 3
        %s5004 = scalar_select %p5003, %s5002, 3
        %s5005 = smul.addr %s5004, 8
        %s5006 = scalar_lea.vmem %s9, %s5005
      $region68: #{net0_forward.1} parent=63 // pred_fallthru
        _
    $region64: #{net0_forward.1} parent=5 // pred_fallthru
      _
  $region6: #{net0_forward.1} parent=0 // loop_footer
    %s19 = sadd.s32 1, %s15
  $region7: #{net0_forward.1} parent=0 // loop_footer_branch
    %14 = sbr.rel target = $region3
  $region8: #{net0_forward.1} parent=0 // loop_exit
    _

</llo_original>
